<compile_context>
chip_gen: v7x
topology: tpu7x:2x2x1
jax: 0.10.0
libtpu: 0.0.40
codegen_flags: <defaults>
</compile_context>

<pallas_src>
import functools

import numpy as np
import jax
import jax.numpy as jnp
from jax import lax
from jax.experimental import pallas as pl
from jax.experimental.pallas import tpu as pltpu

_EPS = 1e-5          # nn.GroupNorm default eps
_GROUPS = 3          # GroupNorm(3, C_out) and channel_shuffle(groups=3)
_SE_RED = 3          # SeModule(channel, reduction=3)
_LANE_BLK = 128      # aligned lane block per channel in the layer3/output stage


def _activation(x):
    """torch.where(|x|<=3, Hardswish(x), clamp(x,0,6) + 0.01*clamp(x,max=0))."""
    c = jnp.clip(x + 3.0, 0.0, 6.0)
    hsw = x * c * (1.0 / 6.0)
    other = jnp.clip(x, 0.0, 6.0) + 0.01 * jnp.minimum(x, 0.0)
    return jnp.where(jnp.abs(x) <= 3.0, hsw, other)


# -----------------------------------------------------------------------------
# Fused kernel: whole forward for one batch sample, entirely in VMEM/SMEM.
# -----------------------------------------------------------------------------
def _fused_kernel(pvec_ref, x_ref, m1_ref, aux1_ref, bdb_ref, ph_ref, aux2_ref,
                  o_ref, *, dims, offs):
    c_out, h, w, k, h_out, w_out = dims
    cpg = c_out // _GROUPS
    cb = c_out * _LANE_BLK
    f32 = jnp.float32

    def prm(name, i):                           # scalar read from SMEM (prefetched)
        return pvec_ref[offs[name] + i]

    # ---- layer1: 1x1 ConvTranspose2d as ONE matmul (host-folded operator) ----------
    x = x_ref[0].astype(f32)                                            # (H, Cin*W)
    y = jnp.dot(x, m1_ref[...], preferred_element_type=f32)             # (H, Cout*W)
    y = y + aux1_ref[0:1, :]                                            # + b1 (bcast)

    # ---- GroupNorm #1: two-pass stats, group masks along lanes ---------------------
    inv_n1 = 1.0 / float(cpg * h * w)
    gm1 = [aux1_ref[3 + g:4 + g, :] for g in range(_GROUPS)]            # (1, Cout*W) 0/1
    mean1 = [jnp.sum(y * gm1[g]) * inv_n1 for g in range(_GROUPS)]
    mean1_b = mean1[0] * gm1[0]
    for g in range(1, _GROUPS):
        mean1_b = mean1_b + mean1[g] * gm1[g]
    yc = y - mean1_b
    yc2 = yc * yc
    inv1 = [lax.rsqrt(jnp.sum(yc2 * gm1[g]) * inv_n1 + _EPS) for g in range(_GROUPS)]
    inv1_b = inv1[0] * gm1[0]
    for g in range(1, _GROUPS):
        inv1_b = inv1_b + inv1[g] * gm1[g]
    y = yc * (inv1_b * aux1_ref[1:2, :]) + aux1_ref[2:3, :]

    # ---- layer3: depthwise dilated ConvTranspose2d as k+1 matmuls on the MXU -------
    # bd_b folds (weights x kw-placement x channel block-diag); ph holds the kh row
    # placements.  All slices are at lane multiples of 128 -> no relayouts, and the
    # stride/dilation structural zeros never generate VPU FMAs.
    z = None
    for kh in range(k):
        vk = jnp.dot(y, bdb_ref[:, kh * cb:(kh + 1) * cb],
                     preferred_element_type=f32)                        # (H, Cout*128)
        contrib = jnp.dot(ph_ref[kh], vk, preferred_element_type=f32)   # (H_out, Cout*128)
        z = contrib if z is None else z + contrib
    z = z + aux2_ref[0:1, :]               # bias (host-masked: 0 on padding lanes)
    z = _activation(z)                     # act(0) == 0 -> padding lanes stay 0

    # ---- GroupNorm #2 (two-pass, sums over the valid 35 lanes of each block) -------
    def ch_sum(t, c):
        return jnp.sum(t[:, c * _LANE_BLK:c * _LANE_BLK + w_out])

    inv_n2 = 1.0 / float(cpg * h_out * w_out)
    gm2 = [aux2_ref[3 + g:4 + g, :] for g in range(_GROUPS)]            # (1, Cout*128)
    mean2 = []
    for g in range(_GROUPS):
        sg = ch_sum(z, g * cpg)
        for cc in range(1, cpg):
            sg = sg + ch_sum(z, g * cpg + cc)
        mean2.append(sg * inv_n2)
    mean2_b = mean2[0] * gm2[0]
    for g in range(1, _GROUPS):
        mean2_b = mean2_b + mean2[g] * gm2[g]
    zc = z - mean2_b
    zc2 = zc * zc
    inv2 = []
    for g in range(_GROUPS):
        vg = ch_sum(zc2, g * cpg)
        for cc in range(1, cpg):
            vg = vg + ch_sum(zc2, g * cpg + cc)
        inv2.append(lax.rsqrt(vg * inv_n2 + _EPS))
    inv2_b = inv2[0] * gm2[0]
    for g in range(1, _GROUPS):
        inv2_b = inv2_b + inv2[g] * gm2[g]
    z = zc * (inv2_b * aux2_ref[1:2, :]) + aux2_ref[2:3, :]
    z = _activation(z)

    # ---- channel_shuffle(groups=3): pure re-indexing of channel lane-blocks (free) --
    if c_out % _GROUPS == 0:
        perm = [(j % _GROUPS) * cpg + (j // _GROUPS) for j in range(c_out)]
    else:
        perm = list(range(c_out))

    def blk(t, c):
        return t[:, c * _LANE_BLK:(c + 1) * _LANE_BLK]

    # ---- scSE = sSE (spatial gate) + cSE (channel gate) -----------------------------
    q = blk(z, perm[0]) * prm("wsse", 0)
    for j in range(1, c_out):
        q = q + blk(z, perm[j]) * prm("wsse", j)
    q = pl.reciprocal(1.0 + jnp.exp(-q), approx=True)                   # sigmoid on EUP
    qv = q[:, :w_out]

    inv_hw = 1.0 / float(h_out * w_out)
    avg = [ch_sum(z, c) * inv_hw for c in range(c_out)]                 # clean: valid lanes
    cr = c_out // _SE_RED
    hid = []
    for r in range(cr):
        t = avg[perm[0]] * prm("fc1", r * c_out)
        for j in range(1, c_out):
            t = t + avg[perm[j]] * prm("fc1", r * c_out + j)
        hid.append(jnp.maximum(t, 0.0))
    for j in range(c_out):
        t = hid[0] * prm("fc2", j * cr)
        for r in range(1, cr):
            t = t + hid[r] * prm("fc2", j * cr + r)
        gate = jnp.clip(t * (1.0 / 6.0) + 0.5, 0.0, 1.0)                # Hardsigmoid
        o_ref[0, j] = (blk(z, perm[j])[:, :w_out] * (qv + gate)).astype(o_ref.dtype)


# -----------------------------------------------------------------------------
# Wrapper: host-side folding of all weights into matmul operators + pallas_call.
# -----------------------------------------------------------------------------
def _pack_scalar_params(params, c_out):
    cr = c_out // _SE_RED
    pieces = dict(
        wsse=params["sse_w"].reshape(c_out),
        fc1=params["fc1_w"].reshape(cr * c_out),        # r*C_out + j
        fc2=params["fc2_w"].reshape(c_out * cr),        # j*cr + r
    )
    offs, flat, pos = {}, [], 0
    for name, arr in pieces.items():
        offs[name] = pos
        flat.append(arr.astype(jnp.float32))
        pos += arr.shape[0]
    return jnp.concatenate(flat), offs


def dilated_upsample_down_forward(x, params, *, kernel, stride, padding, dilation):
    n, c_in, h, w = x.shape
    c_out = params["gn_gamma"].shape[0]
    k, s, p, d = kernel, stride, padding, dilation
    assert c_out % _GROUPS == 0, "GroupNorm(3, C_out) requires C_out % 3 == 0"
    h_out = (h - 1) * s - 2 * p + d * (k - 1) + 1
    w_out = (w - 1) * s - 2 * p + d * (k - 1) + 1
    assert 0 < w_out <= _LANE_BLK and 0 < h_out, "this packing assumes W_out <= 128"
    cpg = c_out // _GROUPS
    f32 = jnp.float32

    # ---- static 0/1 placement tables (trace-time numpy constants) -------------------
    ph_np = np.zeros((k, h_out, h), np.float32)              # rows:  oh == ih*s - p + kh*d
    for kh in range(k):
        for ih in range(h):
            oh = ih * s - p + kh * d
            if 0 <= oh < h_out:
                ph_np[kh, oh, ih] = 1.0
    pw_np = np.zeros((k, w, _LANE_BLK), np.float32)          # cols:  ow == iw*s - p + kw*d
    for kw in range(k):
        for iw in range(w):
            ow = iw * s - p + kw * d
            if 0 <= ow < w_out:
                pw_np[kw, iw, ow] = 1.0
    grp = np.arange(c_out) // cpg
    gm1_np = np.zeros((_GROUPS, c_out * w), np.float32)
    gm2_np = np.zeros((_GROUPS, c_out * _LANE_BLK), np.float32)
    for c in range(c_out):
        gm1_np[grp[c], c * w:(c + 1) * w] = 1.0
        gm2_np[grp[c], c * _LANE_BLK:(c + 1) * _LANE_BLK] = 1.0
    valid_np = np.zeros((_LANE_BLK,), np.float32)
    valid_np[:w_out] = 1.0

    # ---- weight-dependent operators, folded on the host ----------------------------
    w1 = params["w1"].reshape(c_in, c_out).astype(f32)
    eye_w = jnp.asarray(np.eye(w, dtype=np.float32))
    m1 = (w1[:, None, :, None] * eye_w[None, :, None, :]).reshape(c_in * w, c_out * w)

    wd = params["w2"].reshape(c_out, k, k).astype(f32)       # (c, kh, kw) — unflipped
    # B[c, kh, iw, ow] = sum_kw wd[c,kh,kw] * [ow == iw*s - p + kw*d]   (exact: 0/1 select)
    bfull = jnp.einsum("chw,wio->chio", wd, jnp.asarray(pw_np),
                       precision=lax.Precision.HIGHEST)
    eye_c = jnp.asarray(np.eye(c_out, dtype=np.float32))
    bd = (jnp.transpose(bfull, (0, 2, 1, 3))[:, :, :, None, :]   # (C, W, kh, 1, 128)
          * eye_c[:, None, None, :, None])                        # channel block-diag
    bd_b = bd.reshape(c_out * w, k * c_out * _LANE_BLK)           # (C*W, k*C*128)

    gamma = params["gn_gamma"].astype(f32)
    beta = params["gn_beta"].astype(f32)
    aux1 = jnp.concatenate([
        jnp.repeat(params["b1"].astype(f32), w)[None],
        jnp.repeat(gamma, w)[None],
        jnp.repeat(beta, w)[None],
        jnp.asarray(gm1_np)], axis=0)                              # (3+G, C*W)
    aux2 = jnp.concatenate([
        (params["b2"].astype(f32)[:, None] * jnp.asarray(valid_np)[None, :]).reshape(1, -1),
        jnp.repeat(gamma, _LANE_BLK)[None],
        jnp.repeat(beta, _LANE_BLK)[None],
        jnp.asarray(gm2_np)], axis=0)                              # (3+G, C*128)

    pvec, offs = _pack_scalar_params(params, c_out)
    dims = (c_out, h, w, k, h_out, w_out)
    kern = functools.partial(_fused_kernel, dims=dims, offs=offs)

    # channel-stacked lane layout for the input: (N, H, C_in*W)
    xs = x.transpose(0, 2, 1, 3).reshape(n, h, c_in * w)

    grid_spec = pltpu.PrefetchScalarGridSpec(
        num_scalar_prefetch=1,
        grid=(n,),
        in_specs=[
            pl.BlockSpec((1, h, c_in * w), lambda i, pv: (i, 0, 0)),                 # sample
            pl.BlockSpec((c_in * w, c_out * w), lambda i, pv: (0, 0)),                # layer1 op
            pl.BlockSpec((3 + _GROUPS, c_out * w), lambda i, pv: (0, 0)),             # GN1 aux
            pl.BlockSpec((c_out * w, k * c_out * _LANE_BLK), lambda i, pv: (0, 0)),   # layer3 op
            pl.BlockSpec((k, h_out, h), lambda i, pv: (0, 0, 0)),                     # row placements
            pl.BlockSpec((3 + _GROUPS, c_out * _LANE_BLK), lambda i, pv: (0, 0)),     # GN2 aux
        ],
        out_specs=pl.BlockSpec((1, c_out, h_out, w_out), lambda i, pv: (i, 0, 0, 0)),
    )
    return pl.pallas_call(
        kern,
        out_shape=jax.ShapeDtypeStruct((n, c_out, h_out, w_out), x.dtype),
        grid_spec=grid_spec,
        compiler_params=pltpu.CompilerParams(dimension_semantics=("parallel",)),
    )(pvec, xs, m1, aux1, bd_b, jnp.asarray(ph_np), aux2)


# -----------------------------------------------------------------------------
# Pure-JAX reference (independent code path: XLA conv_general_dilated)
# -----------------------------------------------------------------------------
def _reference_forward(x, params, *, kernel, stride, padding, dilation):
    k, s, p, d = kernel, stride, padding, dilation
    n, c_in, h, w = x.shape
    c_out = params["gn_gamma"].shape[0]
    f32 = jnp.float32
    x = x.astype(f32)

    def gn(t):
        nn_, cc, hh, ww = t.shape
        tg = t.reshape(nn_, _GROUPS, (cc // _GROUPS) * hh * ww)
        m = tg.mean(axis=-1, keepdims=True)
        v = tg.var(axis=-1, keepdims=True)
        tg = (tg - m) / jnp.sqrt(v + _EPS)
        t = tg.reshape(nn_, cc, hh, ww)
        return (t * params["gn_gamma"].reshape(1, cc, 1, 1)
                + params["gn_beta"].reshape(1, cc, 1, 1))

    w1 = params["w1"].reshape(c_in, c_out).astype(f32)
    y = jnp.einsum("nchw,cd->ndhw", x, w1, precision=lax.Precision.HIGHEST)
    y = y + params["b1"].reshape(1, c_out, 1, 1)
    y = gn(y)

    w2f = params["w2"].reshape(c_out, 1, k, k).astype(f32)[:, :, ::-1, ::-1]
    pe = d * (k - 1) - p
    z = lax.conv_general_dilated(
        y, w2f, window_strides=(1, 1), padding=[(pe, pe), (pe, pe)],
        lhs_dilation=(s, s), rhs_dilation=(d, d),
        dimension_numbers=("NCHW", "OIHW", "NCHW"),
        feature_group_count=c_out, precision=lax.Precision.HIGHEST)
    z = z + params["b2"].reshape(1, c_out, 1, 1)
    z = _activation(z)
    z = gn(z)
    z = _activation(z)

    b_, cc, hh, ww = z.shape
    z = z.reshape(b_, _GROUPS, cc // _GROUPS, hh, ww)
    z = z.transpose(0, 2, 1, 3, 4).reshape(b_, cc, hh, ww)           # channel_shuffle

    wsse = params["sse_w"].reshape(1, c_out, 1, 1).astype(f32)
    q = 1.0 / (1.0 + jnp.exp(-jnp.sum(z * wsse, axis=1, keepdims=True)))
    u_sse = z * q
    avg = z.mean(axis=(2, 3))                                        # (N, C)
    hid = jnp.maximum(jnp.einsum("nc,jc->nj", avg, params["fc1_w"].astype(f32),
                                 precision=lax.Precision.HIGHEST), 0.0)
    gate = jnp.einsum("nj,cj->nc", hid, params["fc2_w"].astype(f32),
                      precision=lax.Precision.HIGHEST)
    gate = jnp.clip(gate / 6.0 + 0.5, 0.0, 1.0)
    u_cse = z * gate[:, :, None, None]
    return u_cse + u_sse


if __name__ == "__main__":
    # dilated_upsample_down(C_in=4, C_out=6, kernel=4, stride=2, padding=1, dilation=2)
    N, C_IN, H, W = 2, 4, 16, 16
    C_OUT, K, S, P, D = 6, 4, 2, 1, 2

    key = jax.random.PRNGKey(0)
    ks = jax.random.split(key, 10)
    x = 2.0 * jax.random.normal(ks[0], (N, C_IN, H, W), jnp.float32)

    params = dict(
        w1=0.3 * jax.random.normal(ks[1], (C_IN, C_OUT, 1, 1), jnp.float32),    # ConvT(c1,c2,1).weight
        b1=0.1 * jax.random.normal(ks[2], (C_OUT,), jnp.float32),
        gn_gamma=1.0 + 0.1 * jax.random.normal(ks[3], (C_OUT,), jnp.float32),   # self.GL (shared twice)
        gn_beta=0.1 * jax.random.normal(ks[4], (C_OUT,), jnp.float32),
        w2=0.2 * jax.random.normal(ks[5], (C_OUT, 1, K, K), jnp.float32),       # depthwise ConvT weight
        b2=0.1 * jax.random.normal(ks[6], (C_OUT,), jnp.float32),
        sse_w=0.3 * jax.random.normal(ks[7], (1, C_OUT, 1, 1), jnp.float32),    # sSE Conv1x1 (no bias)
        fc1_w=0.4 * jax.random.normal(ks[8], (C_OUT // 3, C_OUT), jnp.float32), # SeModule fc[0]
        fc2_w=0.4 * jax.random.normal(ks[9], (C_OUT, C_OUT // 3), jnp.float32), # SeModule fc[2]
    )

    fwd = jax.jit(functools.partial(dilated_upsample_down_forward,
                                    kernel=K, stride=S, padding=P, dilation=D))
    out = jax.block_until_ready(fwd(x, params))

    H_OUT = (H - 1) * S - 2 * P + D * (K - 1) + 1
    assert out.shape == (N, C_OUT, H_OUT, H_OUT), out.shape
    assert bool(jnp.all(jnp.isfinite(out)))

    ref = _reference_forward(x, params, kernel=K, stride=S, padding=P, dilation=D)
    err = float(jnp.max(jnp.abs(out.astype(jnp.float32) - ref)))
    assert err < 5e-2, f"mismatch vs pure-JAX reference: max abs err = {err}"
    print("KERNEL_OK")
</pallas_src>

<mosaic_0001>
module attributes {stable_mosaic.version = 11 : i64} {
  func.func @_fused_kernel(%arg0: i32, %arg1: memref<30xf32, #tpu.memory_space<smem>>, %arg2: memref<1x16x64xf32, #tpu.memory_space<vmem>>, %arg3: memref<64x96xf32, #tpu.memory_space<vmem>>, %arg4: memref<6x96xf32, #tpu.memory_space<vmem>>, %arg5: memref<96x3072xf32, #tpu.memory_space<vmem>>, %arg6: memref<4x35x16xf32, #tpu.memory_space<vmem>>, %arg7: memref<6x768xf32, #tpu.memory_space<vmem>>, %arg8: memref<1x6x35x35xf32, #tpu.memory_space<vmem>>) attributes {dimension_semantics = [#tpu.dimension_semantics<parallel>], iteration_bounds = array<i64: 2>, scalar_prefetch = 1 : i64, scratch_operands = 0 : i64, tpu.core_type = #tpu.core_type<tc>, window_params = [{transform_indices = @transform_0, window_bounds = array<i64: 1, 16, 64>}, {pipeline_mode = #tpu.pipeline_mode<synchronous>, transform_indices = @transform_1, window_bounds = array<i64: 64, 96>}, {pipeline_mode = #tpu.pipeline_mode<synchronous>, transform_indices = @transform_2, window_bounds = array<i64: 6, 96>}, {pipeline_mode = #tpu.pipeline_mode<synchronous>, transform_indices = @transform_3, window_bounds = array<i64: 96, 3072>}, {pipeline_mode = #tpu.pipeline_mode<synchronous>, transform_indices = @transform_4, window_bounds = array<i64: 4, 35, 16>}, {pipeline_mode = #tpu.pipeline_mode<synchronous>, transform_indices = @transform_5, window_bounds = array<i64: 6, 768>}, {transform_indices = @transform_6, window_bounds = array<i64: 1, 6, 35, 35>}]} {
    %c0 = arith.constant 0 : index
    %c0_0 = arith.constant 0 : index
    %c0_1 = arith.constant 0 : index
    %0 = vector.load %arg2[%c0, %c0_0, %c0_1] : memref<1x16x64xf32, #tpu.memory_space<vmem>>, vector<1x16x64xf32>
    %1 = vector.shape_cast %0 : vector<1x16x64xf32> to vector<16x64xf32>
    %c0_2 = arith.constant 0 : index
    %c0_3 = arith.constant 0 : index
    %2 = vector.load %arg3[%c0_2, %c0_3] : memref<64x96xf32, #tpu.memory_space<vmem>>, vector<64x96xf32>
    %cst = arith.constant dense<0.000000e+00> : vector<16x96xf32>
    %3 = tpu.matmul %1, %2, %cst {dimension_numbers = #tpu.dot_dimension_numbers<[1], [0], [0], [1], [0, 0, 1, 1], [], []>} : vector<16x64xf32>, vector<64x96xf32>, vector<16x96xf32> -> vector<16x96xf32>
    %c0_4 = arith.constant 0 : index
    %c0_5 = arith.constant 0 : index
    %4 = vector.load %arg4[%c0_4, %c0_5] : memref<6x96xf32, #tpu.memory_space<vmem>>, vector<1x96xf32>
    %5 = vector.broadcast %4 : vector<1x96xf32> to vector<16x96xf32>
    %6 = arith.addf %3, %5 : vector<16x96xf32>
    %c3 = arith.constant 3 : index
    %c0_6 = arith.constant 0 : index
    %7 = vector.load %arg4[%c3, %c0_6] : memref<6x96xf32, #tpu.memory_space<vmem>>, vector<1x96xf32>
    %c4 = arith.constant 4 : index
    %c0_7 = arith.constant 0 : index
    %8 = vector.load %arg4[%c4, %c0_7] : memref<6x96xf32, #tpu.memory_space<vmem>>, vector<1x96xf32>
    %c5 = arith.constant 5 : index
    %c0_8 = arith.constant 0 : index
    %9 = vector.load %arg4[%c5, %c0_8] : memref<6x96xf32, #tpu.memory_space<vmem>>, vector<1x96xf32>
    %10 = vector.broadcast %7 : vector<1x96xf32> to vector<16x96xf32>
    %11 = arith.mulf %6, %10 : vector<16x96xf32>
    %12 = vector.shape_cast %11 : vector<16x96xf32> to vector<1x16x96xf32>
    %cst_9 = arith.constant dense<0.000000e+00> : vector<1xf32>
    %13 = vector.multi_reduction <add>, %12, %cst_9 [1, 2] : vector<1x16x96xf32> to vector<1xf32>
    %14 = vector.shape_cast %13 : vector<1xf32> to vector<1x1x1xf32>
    %15 = vector.extract %14[0, 0, 0] : f32 from vector<1x1x1xf32>
    %cst_10 = arith.constant 0.001953125 : f32
    %16 = arith.mulf %15, %cst_10 : f32
    %17 = vector.broadcast %8 : vector<1x96xf32> to vector<16x96xf32>
    %18 = arith.mulf %6, %17 : vector<16x96xf32>
    %19 = vector.shape_cast %18 : vector<16x96xf32> to vector<1x16x96xf32>
    %cst_11 = arith.constant dense<0.000000e+00> : vector<1xf32>
    %20 = vector.multi_reduction <add>, %19, %cst_11 [1, 2] : vector<1x16x96xf32> to vector<1xf32>
    %21 = vector.shape_cast %20 : vector<1xf32> to vector<1x1x1xf32>
    %22 = vector.extract %21[0, 0, 0] : f32 from vector<1x1x1xf32>
    %cst_12 = arith.constant 0.001953125 : f32
    %23 = arith.mulf %22, %cst_12 : f32
    %24 = vector.broadcast %9 : vector<1x96xf32> to vector<16x96xf32>
    %25 = arith.mulf %6, %24 : vector<16x96xf32>
    %26 = vector.shape_cast %25 : vector<16x96xf32> to vector<1x16x96xf32>
    %cst_13 = arith.constant dense<0.000000e+00> : vector<1xf32>
    %27 = vector.multi_reduction <add>, %26, %cst_13 [1, 2] : vector<1x16x96xf32> to vector<1xf32>
    %28 = vector.shape_cast %27 : vector<1xf32> to vector<1x1x1xf32>
    %29 = vector.extract %28[0, 0, 0] : f32 from vector<1x1x1xf32>
    %cst_14 = arith.constant 0.001953125 : f32
    %30 = arith.mulf %29, %cst_14 : f32
    %31 = vector.broadcast %16 : f32 to vector<1x96xf32>
    %32 = arith.mulf %31, %7 : vector<1x96xf32>
    %33 = vector.broadcast %23 : f32 to vector<1x96xf32>
    %34 = arith.mulf %33, %8 : vector<1x96xf32>
    %35 = arith.addf %32, %34 : vector<1x96xf32>
    %36 = vector.broadcast %30 : f32 to vector<1x96xf32>
    %37 = arith.mulf %36, %9 : vector<1x96xf32>
    %38 = arith.addf %35, %37 : vector<1x96xf32>
    %39 = vector.broadcast %38 : vector<1x96xf32> to vector<16x96xf32>
    %40 = arith.subf %6, %39 : vector<16x96xf32>
    %41 = arith.mulf %40, %40 : vector<16x96xf32>
    %42 = vector.broadcast %7 : vector<1x96xf32> to vector<16x96xf32>
    %43 = arith.mulf %41, %42 : vector<16x96xf32>
    %44 = vector.shape_cast %43 : vector<16x96xf32> to vector<1x16x96xf32>
    %cst_15 = arith.constant dense<0.000000e+00> : vector<1xf32>
    %45 = vector.multi_reduction <add>, %44, %cst_15 [1, 2] : vector<1x16x96xf32> to vector<1xf32>
    %46 = vector.shape_cast %45 : vector<1xf32> to vector<1x1x1xf32>
    %47 = vector.extract %46[0, 0, 0] : f32 from vector<1x1x1xf32>
    %cst_16 = arith.constant 0.001953125 : f32
    %48 = arith.mulf %47, %cst_16 : f32
    %cst_17 = arith.constant 9.99999974E-6 : f32
    %49 = arith.addf %48, %cst_17 : f32
    %50 = math.rsqrt %49 : f32
    %51 = vector.broadcast %8 : vector<1x96xf32> to vector<16x96xf32>
    %52 = arith.mulf %41, %51 : vector<16x96xf32>
    %53 = vector.shape_cast %52 : vector<16x96xf32> to vector<1x16x96xf32>
    %cst_18 = arith.constant dense<0.000000e+00> : vector<1xf32>
    %54 = vector.multi_reduction <add>, %53, %cst_18 [1, 2] : vector<1x16x96xf32> to vector<1xf32>
    %55 = vector.shape_cast %54 : vector<1xf32> to vector<1x1x1xf32>
    %56 = vector.extract %55[0, 0, 0] : f32 from vector<1x1x1xf32>
    %cst_19 = arith.constant 0.001953125 : f32
    %57 = arith.mulf %56, %cst_19 : f32
    %cst_20 = arith.constant 9.99999974E-6 : f32
    %58 = arith.addf %57, %cst_20 : f32
    %59 = math.rsqrt %58 : f32
    %60 = vector.broadcast %9 : vector<1x96xf32> to vector<16x96xf32>
    %61 = arith.mulf %41, %60 : vector<16x96xf32>
    %62 = vector.shape_cast %61 : vector<16x96xf32> to vector<1x16x96xf32>
    %cst_21 = arith.constant dense<0.000000e+00> : vector<1xf32>
    %63 = vector.multi_reduction <add>, %62, %cst_21 [1, 2] : vector<1x16x96xf32> to vector<1xf32>
    %64 = vector.shape_cast %63 : vector<1xf32> to vector<1x1x1xf32>
    %65 = vector.extract %64[0, 0, 0] : f32 from vector<1x1x1xf32>
    %cst_22 = arith.constant 0.001953125 : f32
    %66 = arith.mulf %65, %cst_22 : f32
    %cst_23 = arith.constant 9.99999974E-6 : f32
    %67 = arith.addf %66, %cst_23 : f32
    %68 = math.rsqrt %67 : f32
    %69 = vector.broadcast %50 : f32 to vector<1x96xf32>
    %70 = arith.mulf %69, %7 : vector<1x96xf32>
    %71 = vector.broadcast %59 : f32 to vector<1x96xf32>
    %72 = arith.mulf %71, %8 : vector<1x96xf32>
    %73 = arith.addf %70, %72 : vector<1x96xf32>
    %74 = vector.broadcast %68 : f32 to vector<1x96xf32>
    %75 = arith.mulf %74, %9 : vector<1x96xf32>
    %76 = arith.addf %73, %75 : vector<1x96xf32>
    %c1 = arith.constant 1 : index
    %c0_24 = arith.constant 0 : index
    %77 = vector.load %arg4[%c1, %c0_24] : memref<6x96xf32, #tpu.memory_space<vmem>>, vector<1x96xf32>
    %78 = arith.mulf %76, %77 : vector<1x96xf32>
    %79 = vector.broadcast %78 : vector<1x96xf32> to vector<16x96xf32>
    %80 = arith.mulf %40, %79 : vector<16x96xf32>
    %c2 = arith.constant 2 : index
    %c0_25 = arith.constant 0 : index
    %81 = vector.load %arg4[%c2, %c0_25] : memref<6x96xf32, #tpu.memory_space<vmem>>, vector<1x96xf32>
    %82 = vector.broadcast %81 : vector<1x96xf32> to vector<16x96xf32>
    %83 = arith.addf %80, %82 : vector<16x96xf32>
    %c0_26 = arith.constant 0 : index
    %c0_27 = arith.constant 0 : index
    %84 = vector.load %arg5[%c0_26, %c0_27] : memref<96x3072xf32, #tpu.memory_space<vmem>>, vector<96x768xf32>
    %cst_28 = arith.constant dense<0.000000e+00> : vector<16x768xf32>
    %85 = tpu.matmul %83, %84, %cst_28 {dimension_numbers = #tpu.dot_dimension_numbers<[1], [0], [0], [1], [0, 0, 1, 1], [], []>} : vector<16x96xf32>, vector<96x768xf32>, vector<16x768xf32> -> vector<16x768xf32>
    %c0_29 = arith.constant 0 : index
    %c0_30 = arith.constant 0 : index
    %c0_31 = arith.constant 0 : index
    %86 = vector.load %arg6[%c0_29, %c0_30, %c0_31] : memref<4x35x16xf32, #tpu.memory_space<vmem>>, vector<1x35x16xf32>
    %87 = vector.shape_cast %86 : vector<1x35x16xf32> to vector<35x16xf32>
    %cst_32 = arith.constant dense<0.000000e+00> : vector<35x768xf32>
    %88 = tpu.matmul %87, %85, %cst_32 {dimension_numbers = #tpu.dot_dimension_numbers<[1], [0], [0], [1], [0, 0, 1, 1], [], []>} : vector<35x16xf32>, vector<16x768xf32>, vector<35x768xf32> -> vector<35x768xf32>
    %c0_33 = arith.constant 0 : index
    %c768 = arith.constant 768 : index
    %89 = vector.load %arg5[%c0_33, %c768] : memref<96x3072xf32, #tpu.memory_space<vmem>>, vector<96x768xf32>
    %cst_34 = arith.constant dense<0.000000e+00> : vector<16x768xf32>
    %90 = tpu.matmul %83, %89, %cst_34 {dimension_numbers = #tpu.dot_dimension_numbers<[1], [0], [0], [1], [0, 0, 1, 1], [], []>} : vector<16x96xf32>, vector<96x768xf32>, vector<16x768xf32> -> vector<16x768xf32>
    %c1_35 = arith.constant 1 : index
    %c0_36 = arith.constant 0 : index
    %c0_37 = arith.constant 0 : index
    %91 = vector.load %arg6[%c1_35, %c0_36, %c0_37] : memref<4x35x16xf32, #tpu.memory_space<vmem>>, vector<1x35x16xf32>
    %92 = vector.shape_cast %91 : vector<1x35x16xf32> to vector<35x16xf32>
    %cst_38 = arith.constant dense<0.000000e+00> : vector<35x768xf32>
    %93 = tpu.matmul %92, %90, %cst_38 {dimension_numbers = #tpu.dot_dimension_numbers<[1], [0], [0], [1], [0, 0, 1, 1], [], []>} : vector<35x16xf32>, vector<16x768xf32>, vector<35x768xf32> -> vector<35x768xf32>
    %94 = arith.addf %88, %93 : vector<35x768xf32>
    %c0_39 = arith.constant 0 : index
    %c1536 = arith.constant 1536 : index
    %95 = vector.load %arg5[%c0_39, %c1536] : memref<96x3072xf32, #tpu.memory_space<vmem>>, vector<96x768xf32>
    %cst_40 = arith.constant dense<0.000000e+00> : vector<16x768xf32>
    %96 = tpu.matmul %83, %95, %cst_40 {dimension_numbers = #tpu.dot_dimension_numbers<[1], [0], [0], [1], [0, 0, 1, 1], [], []>} : vector<16x96xf32>, vector<96x768xf32>, vector<16x768xf32> -> vector<16x768xf32>
    %c2_41 = arith.constant 2 : index
    %c0_42 = arith.constant 0 : index
    %c0_43 = arith.constant 0 : index
    %97 = vector.load %arg6[%c2_41, %c0_42, %c0_43] : memref<4x35x16xf32, #tpu.memory_space<vmem>>, vector<1x35x16xf32>
    %98 = vector.shape_cast %97 : vector<1x35x16xf32> to vector<35x16xf32>
    %cst_44 = arith.constant dense<0.000000e+00> : vector<35x768xf32>
    %99 = tpu.matmul %98, %96, %cst_44 {dimension_numbers = #tpu.dot_dimension_numbers<[1], [0], [0], [1], [0, 0, 1, 1], [], []>} : vector<35x16xf32>, vector<16x768xf32>, vector<35x768xf32> -> vector<35x768xf32>
    %100 = arith.addf %94, %99 : vector<35x768xf32>
    %c0_45 = arith.constant 0 : index
    %c2304 = arith.constant 2304 : index
    %101 = vector.load %arg5[%c0_45, %c2304] : memref<96x3072xf32, #tpu.memory_space<vmem>>, vector<96x768xf32>
    %cst_46 = arith.constant dense<0.000000e+00> : vector<16x768xf32>
    %102 = tpu.matmul %83, %101, %cst_46 {dimension_numbers = #tpu.dot_dimension_numbers<[1], [0], [0], [1], [0, 0, 1, 1], [], []>} : vector<16x96xf32>, vector<96x768xf32>, vector<16x768xf32> -> vector<16x768xf32>
    %c3_47 = arith.constant 3 : index
    %c0_48 = arith.constant 0 : index
    %c0_49 = arith.constant 0 : index
    %103 = vector.load %arg6[%c3_47, %c0_48, %c0_49] : memref<4x35x16xf32, #tpu.memory_space<vmem>>, vector<1x35x16xf32>
    %104 = vector.shape_cast %103 : vector<1x35x16xf32> to vector<35x16xf32>
    %cst_50 = arith.constant dense<0.000000e+00> : vector<35x768xf32>
    %105 = tpu.matmul %104, %102, %cst_50 {dimension_numbers = #tpu.dot_dimension_numbers<[1], [0], [0], [1], [0, 0, 1, 1], [], []>} : vector<35x16xf32>, vector<16x768xf32>, vector<35x768xf32> -> vector<35x768xf32>
    %106 = arith.addf %100, %105 : vector<35x768xf32>
    %c0_51 = arith.constant 0 : index
    %c0_52 = arith.constant 0 : index
    %107 = vector.load %arg7[%c0_51, %c0_52] : memref<6x768xf32, #tpu.memory_space<vmem>>, vector<1x768xf32>
    %108 = vector.broadcast %107 : vector<1x768xf32> to vector<35x768xf32>
    %109 = arith.addf %106, %108 : vector<35x768xf32>
    %cst_53 = arith.constant 3.000000e+00 : f32
    %110 = vector.broadcast %cst_53 : f32 to vector<35x768xf32>
    %111 = arith.addf %109, %110 : vector<35x768xf32>
    %cst_54 = arith.constant 0.000000e+00 : f32
    %cst_55 = arith.constant 6.000000e+00 : f32
    %112 = vector.broadcast %cst_54 : f32 to vector<35x768xf32>
    %113 = arith.maximumf %112, %111 : vector<35x768xf32>
    %114 = vector.broadcast %cst_55 : f32 to vector<35x768xf32>
    %115 = arith.minimumf %114, %113 : vector<35x768xf32>
    %116 = arith.mulf %109, %115 : vector<35x768xf32>
    %cst_56 = arith.constant 0.166666672 : f32
    %117 = vector.broadcast %cst_56 : f32 to vector<35x768xf32>
    %118 = arith.mulf %116, %117 : vector<35x768xf32>
    %cst_57 = arith.constant 0.000000e+00 : f32
    %cst_58 = arith.constant 6.000000e+00 : f32
    %119 = vector.broadcast %cst_57 : f32 to vector<35x768xf32>
    %120 = arith.maximumf %119, %109 : vector<35x768xf32>
    %121 = vector.broadcast %cst_58 : f32 to vector<35x768xf32>
    %122 = arith.minimumf %121, %120 : vector<35x768xf32>
    %cst_59 = arith.constant 0.000000e+00 : f32
    %123 = vector.broadcast %cst_59 : f32 to vector<35x768xf32>
    %124 = arith.minimumf %109, %123 : vector<35x768xf32>
    %cst_60 = arith.constant 0.00999999977 : f32
    %125 = vector.broadcast %cst_60 : f32 to vector<35x768xf32>
    %126 = arith.mulf %125, %124 : vector<35x768xf32>
    %127 = arith.addf %122, %126 : vector<35x768xf32>
    %128 = math.absf %109 : vector<35x768xf32>
    %cst_61 = arith.constant 3.000000e+00 : f32
    %129 = vector.broadcast %cst_61 : f32 to vector<35x768xf32>
    %130 = arith.cmpf ole, %128, %129 : vector<35x768xf32>
    %131 = arith.select %130, %118, %127 : vector<35x768xi1>, vector<35x768xf32>
    %c3_62 = arith.constant 3 : index
    %c0_63 = arith.constant 0 : index
    %132 = vector.load %arg7[%c3_62, %c0_63] : memref<6x768xf32, #tpu.memory_space<vmem>>, vector<1x768xf32>
    %c4_64 = arith.constant 4 : index
    %c0_65 = arith.constant 0 : index
    %133 = vector.load %arg7[%c4_64, %c0_65] : memref<6x768xf32, #tpu.memory_space<vmem>>, vector<1x768xf32>
    %c5_66 = arith.constant 5 : index
    %c0_67 = arith.constant 0 : index
    %134 = vector.load %arg7[%c5_66, %c0_67] : memref<6x768xf32, #tpu.memory_space<vmem>>, vector<1x768xf32>
    %135 = vector.extract_strided_slice %131 {offsets = [0, 0], sizes = [35, 35], strides = [1, 1]} : vector<35x768xf32> to vector<35x35xf32>
    %136 = vector.shape_cast %135 : vector<35x35xf32> to vector<1x35x35xf32>
    %cst_68 = arith.constant dense<0.000000e+00> : vector<1xf32>
    %137 = vector.multi_reduction <add>, %136, %cst_68 [1, 2] : vector<1x35x35xf32> to vector<1xf32>
    %138 = vector.shape_cast %137 : vector<1xf32> to vector<1x1x1xf32>
    %139 = vector.extract %138[0, 0, 0] : f32 from vector<1x1x1xf32>
    %140 = vector.extract_strided_slice %131 {offsets = [0, 128], sizes = [35, 35], strides = [1, 1]} : vector<35x768xf32> to vector<35x35xf32>
    %141 = vector.shape_cast %140 : vector<35x35xf32> to vector<1x35x35xf32>
    %cst_69 = arith.constant dense<0.000000e+00> : vector<1xf32>
    %142 = vector.multi_reduction <add>, %141, %cst_69 [1, 2] : vector<1x35x35xf32> to vector<1xf32>
    %143 = vector.shape_cast %142 : vector<1xf32> to vector<1x1x1xf32>
    %144 = vector.extract %143[0, 0, 0] : f32 from vector<1x1x1xf32>
    %145 = arith.addf %139, %144 : f32
    %cst_70 = arith.constant 4.08163265E-4 : f32
    %146 = arith.mulf %145, %cst_70 : f32
    %147 = vector.extract_strided_slice %131 {offsets = [0, 256], sizes = [35, 35], strides = [1, 1]} : vector<35x768xf32> to vector<35x35xf32>
    %148 = vector.shape_cast %147 : vector<35x35xf32> to vector<1x35x35xf32>
    %cst_71 = arith.constant dense<0.000000e+00> : vector<1xf32>
    %149 = vector.multi_reduction <add>, %148, %cst_71 [1, 2] : vector<1x35x35xf32> to vector<1xf32>
    %150 = vector.shape_cast %149 : vector<1xf32> to vector<1x1x1xf32>
    %151 = vector.extract %150[0, 0, 0] : f32 from vector<1x1x1xf32>
    %152 = vector.extract_strided_slice %131 {offsets = [0, 384], sizes = [35, 35], strides = [1, 1]} : vector<35x768xf32> to vector<35x35xf32>
    %153 = vector.shape_cast %152 : vector<35x35xf32> to vector<1x35x35xf32>
    %cst_72 = arith.constant dense<0.000000e+00> : vector<1xf32>
    %154 = vector.multi_reduction <add>, %153, %cst_72 [1, 2] : vector<1x35x35xf32> to vector<1xf32>
    %155 = vector.shape_cast %154 : vector<1xf32> to vector<1x1x1xf32>
    %156 = vector.extract %155[0, 0, 0] : f32 from vector<1x1x1xf32>
    %157 = arith.addf %151, %156 : f32
    %cst_73 = arith.constant 4.08163265E-4 : f32
    %158 = arith.mulf %157, %cst_73 : f32
    %159 = vector.extract_strided_slice %131 {offsets = [0, 512], sizes = [35, 35], strides = [1, 1]} : vector<35x768xf32> to vector<35x35xf32>
    %160 = vector.shape_cast %159 : vector<35x35xf32> to vector<1x35x35xf32>
    %cst_74 = arith.constant dense<0.000000e+00> : vector<1xf32>
    %161 = vector.multi_reduction <add>, %160, %cst_74 [1, 2] : vector<1x35x35xf32> to vector<1xf32>
    %162 = vector.shape_cast %161 : vector<1xf32> to vector<1x1x1xf32>
    %163 = vector.extract %162[0, 0, 0] : f32 from vector<1x1x1xf32>
    %164 = vector.extract_strided_slice %131 {offsets = [0, 640], sizes = [35, 35], strides = [1, 1]} : vector<35x768xf32> to vector<35x35xf32>
    %165 = vector.shape_cast %164 : vector<35x35xf32> to vector<1x35x35xf32>
    %cst_75 = arith.constant dense<0.000000e+00> : vector<1xf32>
    %166 = vector.multi_reduction <add>, %165, %cst_75 [1, 2] : vector<1x35x35xf32> to vector<1xf32>
    %167 = vector.shape_cast %166 : vector<1xf32> to vector<1x1x1xf32>
    %168 = vector.extract %167[0, 0, 0] : f32 from vector<1x1x1xf32>
    %169 = arith.addf %163, %168 : f32
    %cst_76 = arith.constant 4.08163265E-4 : f32
    %170 = arith.mulf %169, %cst_76 : f32
    %171 = vector.broadcast %146 : f32 to vector<1x768xf32>
    %172 = arith.mulf %171, %132 : vector<1x768xf32>
    %173 = vector.broadcast %158 : f32 to vector<1x768xf32>
    %174 = arith.mulf %173, %133 : vector<1x768xf32>
    %175 = arith.addf %172, %174 : vector<1x768xf32>
    %176 = vector.broadcast %170 : f32 to vector<1x768xf32>
    %177 = arith.mulf %176, %134 : vector<1x768xf32>
    %178 = arith.addf %175, %177 : vector<1x768xf32>
    %179 = vector.broadcast %178 : vector<1x768xf32> to vector<35x768xf32>
    %180 = arith.subf %131, %179 : vector<35x768xf32>
    %181 = arith.mulf %180, %180 : vector<35x768xf32>
    %182 = vector.extract_strided_slice %181 {offsets = [0, 0], sizes = [35, 35], strides = [1, 1]} : vector<35x768xf32> to vector<35x35xf32>
    %183 = vector.shape_cast %182 : vector<35x35xf32> to vector<1x35x35xf32>
    %cst_77 = arith.constant dense<0.000000e+00> : vector<1xf32>
    %184 = vector.multi_reduction <add>, %183, %cst_77 [1, 2] : vector<1x35x35xf32> to vector<1xf32>
    %185 = vector.shape_cast %184 : vector<1xf32> to vector<1x1x1xf32>
    %186 = vector.extract %185[0, 0, 0] : f32 from vector<1x1x1xf32>
    %187 = vector.extract_strided_slice %181 {offsets = [0, 128], sizes = [35, 35], strides = [1, 1]} : vector<35x768xf32> to vector<35x35xf32>
    %188 = vector.shape_cast %187 : vector<35x35xf32> to vector<1x35x35xf32>
    %cst_78 = arith.constant dense<0.000000e+00> : vector<1xf32>
    %189 = vector.multi_reduction <add>, %188, %cst_78 [1, 2] : vector<1x35x35xf32> to vector<1xf32>
    %190 = vector.shape_cast %189 : vector<1xf32> to vector<1x1x1xf32>
    %191 = vector.extract %190[0, 0, 0] : f32 from vector<1x1x1xf32>
    %192 = arith.addf %186, %191 : f32
    %cst_79 = arith.constant 4.08163265E-4 : f32
    %193 = arith.mulf %192, %cst_79 : f32
    %cst_80 = arith.constant 9.99999974E-6 : f32
    %194 = arith.addf %193, %cst_80 : f32
    %195 = math.rsqrt %194 : f32
    %196 = vector.extract_strided_slice %181 {offsets = [0, 256], sizes = [35, 35], strides = [1, 1]} : vector<35x768xf32> to vector<35x35xf32>
    %197 = vector.shape_cast %196 : vector<35x35xf32> to vector<1x35x35xf32>
    %cst_81 = arith.constant dense<0.000000e+00> : vector<1xf32>
    %198 = vector.multi_reduction <add>, %197, %cst_81 [1, 2] : vector<1x35x35xf32> to vector<1xf32>
    %199 = vector.shape_cast %198 : vector<1xf32> to vector<1x1x1xf32>
    %200 = vector.extract %199[0, 0, 0] : f32 from vector<1x1x1xf32>
    %201 = vector.extract_strided_slice %181 {offsets = [0, 384], sizes = [35, 35], strides = [1, 1]} : vector<35x768xf32> to vector<35x35xf32>
    %202 = vector.shape_cast %201 : vector<35x35xf32> to vector<1x35x35xf32>
    %cst_82 = arith.constant dense<0.000000e+00> : vector<1xf32>
    %203 = vector.multi_reduction <add>, %202, %cst_82 [1, 2] : vector<1x35x35xf32> to vector<1xf32>
    %204 = vector.shape_cast %203 : vector<1xf32> to vector<1x1x1xf32>
    %205 = vector.extract %204[0, 0, 0] : f32 from vector<1x1x1xf32>
    %206 = arith.addf %200, %205 : f32
    %cst_83 = arith.constant 4.08163265E-4 : f32
    %207 = arith.mulf %206, %cst_83 : f32
    %cst_84 = arith.constant 9.99999974E-6 : f32
    %208 = arith.addf %207, %cst_84 : f32
    %209 = math.rsqrt %208 : f32
    %210 = vector.extract_strided_slice %181 {offsets = [0, 512], sizes = [35, 35], strides = [1, 1]} : vector<35x768xf32> to vector<35x35xf32>
    %211 = vector.shape_cast %210 : vector<35x35xf32> to vector<1x35x35xf32>
    %cst_85 = arith.constant dense<0.000000e+00> : vector<1xf32>
    %212 = vector.multi_reduction <add>, %211, %cst_85 [1, 2] : vector<1x35x35xf32> to vector<1xf32>
    %213 = vector.shape_cast %212 : vector<1xf32> to vector<1x1x1xf32>
    %214 = vector.extract %213[0, 0, 0] : f32 from vector<1x1x1xf32>
    %215 = vector.extract_strided_slice %181 {offsets = [0, 640], sizes = [35, 35], strides = [1, 1]} : vector<35x768xf32> to vector<35x35xf32>
    %216 = vector.shape_cast %215 : vector<35x35xf32> to vector<1x35x35xf32>
    %cst_86 = arith.constant dense<0.000000e+00> : vector<1xf32>
    %217 = vector.multi_reduction <add>, %216, %cst_86 [1, 2] : vector<1x35x35xf32> to vector<1xf32>
    %218 = vector.shape_cast %217 : vector<1xf32> to vector<1x1x1xf32>
    %219 = vector.extract %218[0, 0, 0] : f32 from vector<1x1x1xf32>
    %220 = arith.addf %214, %219 : f32
    %cst_87 = arith.constant 4.08163265E-4 : f32
    %221 = arith.mulf %220, %cst_87 : f32
    %cst_88 = arith.constant 9.99999974E-6 : f32
    %222 = arith.addf %221, %cst_88 : f32
    %223 = math.rsqrt %222 : f32
    %224 = vector.broadcast %195 : f32 to vector<1x768xf32>
    %225 = arith.mulf %224, %132 : vector<1x768xf32>
    %226 = vector.broadcast %209 : f32 to vector<1x768xf32>
    %227 = arith.mulf %226, %133 : vector<1x768xf32>
    %228 = arith.addf %225, %227 : vector<1x768xf32>
    %229 = vector.broadcast %223 : f32 to vector<1x768xf32>
    %230 = arith.mulf %229, %134 : vector<1x768xf32>
    %231 = arith.addf %228, %230 : vector<1x768xf32>
    %c1_89 = arith.constant 1 : index
    %c0_90 = arith.constant 0 : index
    %232 = vector.load %arg7[%c1_89, %c0_90] : memref<6x768xf32, #tpu.memory_space<vmem>>, vector<1x768xf32>
    %233 = arith.mulf %231, %232 : vector<1x768xf32>
    %234 = vector.broadcast %233 : vector<1x768xf32> to vector<35x768xf32>
    %235 = arith.mulf %180, %234 : vector<35x768xf32>
    %c2_91 = arith.constant 2 : index
    %c0_92 = arith.constant 0 : index
    %236 = vector.load %arg7[%c2_91, %c0_92] : memref<6x768xf32, #tpu.memory_space<vmem>>, vector<1x768xf32>
    %237 = vector.broadcast %236 : vector<1x768xf32> to vector<35x768xf32>
    %238 = arith.addf %235, %237 : vector<35x768xf32>
    %cst_93 = arith.constant 3.000000e+00 : f32
    %239 = vector.broadcast %cst_93 : f32 to vector<35x768xf32>
    %240 = arith.addf %238, %239 : vector<35x768xf32>
    %cst_94 = arith.constant 0.000000e+00 : f32
    %cst_95 = arith.constant 6.000000e+00 : f32
    %241 = vector.broadcast %cst_94 : f32 to vector<35x768xf32>
    %242 = arith.maximumf %241, %240 : vector<35x768xf32>
    %243 = vector.broadcast %cst_95 : f32 to vector<35x768xf32>
    %244 = arith.minimumf %243, %242 : vector<35x768xf32>
    %245 = arith.mulf %238, %244 : vector<35x768xf32>
    %cst_96 = arith.constant 0.166666672 : f32
    %246 = vector.broadcast %cst_96 : f32 to vector<35x768xf32>
    %247 = arith.mulf %245, %246 : vector<35x768xf32>
    %cst_97 = arith.constant 0.000000e+00 : f32
    %cst_98 = arith.constant 6.000000e+00 : f32
    %248 = vector.broadcast %cst_97 : f32 to vector<35x768xf32>
    %249 = arith.maximumf %248, %238 : vector<35x768xf32>
    %250 = vector.broadcast %cst_98 : f32 to vector<35x768xf32>
    %251 = arith.minimumf %250, %249 : vector<35x768xf32>
    %cst_99 = arith.constant 0.000000e+00 : f32
    %252 = vector.broadcast %cst_99 : f32 to vector<35x768xf32>
    %253 = arith.minimumf %238, %252 : vector<35x768xf32>
    %cst_100 = arith.constant 0.00999999977 : f32
    %254 = vector.broadcast %cst_100 : f32 to vector<35x768xf32>
    %255 = arith.mulf %254, %253 : vector<35x768xf32>
    %256 = arith.addf %251, %255 : vector<35x768xf32>
    %257 = math.absf %238 : vector<35x768xf32>
    %cst_101 = arith.constant 3.000000e+00 : f32
    %258 = vector.broadcast %cst_101 : f32 to vector<35x768xf32>
    %259 = arith.cmpf ole, %257, %258 : vector<35x768xf32>
    %260 = arith.select %259, %247, %256 : vector<35x768xi1>, vector<35x768xf32>
    %261 = vector.extract_strided_slice %260 {offsets = [0, 0], sizes = [35, 128], strides = [1, 1]} : vector<35x768xf32> to vector<35x128xf32>
    %c0_102 = arith.constant 0 : index
    %262 = memref.load %arg1[%c0_102] : memref<30xf32, #tpu.memory_space<smem>>
    %263 = vector.broadcast %262 : f32 to vector<35x128xf32>
    %264 = arith.mulf %261, %263 : vector<35x128xf32>
    %265 = vector.extract_strided_slice %260 {offsets = [0, 256], sizes = [35, 128], strides = [1, 1]} : vector<35x768xf32> to vector<35x128xf32>
    %c1_103 = arith.constant 1 : index
    %266 = memref.load %arg1[%c1_103] : memref<30xf32, #tpu.memory_space<smem>>
    %267 = vector.broadcast %266 : f32 to vector<35x128xf32>
    %268 = arith.mulf %265, %267 : vector<35x128xf32>
    %269 = arith.addf %264, %268 : vector<35x128xf32>
    %270 = vector.extract_strided_slice %260 {offsets = [0, 512], sizes = [35, 128], strides = [1, 1]} : vector<35x768xf32> to vector<35x128xf32>
    %c2_104 = arith.constant 2 : index
    %271 = memref.load %arg1[%c2_104] : memref<30xf32, #tpu.memory_space<smem>>
    %272 = vector.broadcast %271 : f32 to vector<35x128xf32>
    %273 = arith.mulf %270, %272 : vector<35x128xf32>
    %274 = arith.addf %269, %273 : vector<35x128xf32>
    %275 = vector.extract_strided_slice %260 {offsets = [0, 128], sizes = [35, 128], strides = [1, 1]} : vector<35x768xf32> to vector<35x128xf32>
    %c3_105 = arith.constant 3 : index
    %276 = memref.load %arg1[%c3_105] : memref<30xf32, #tpu.memory_space<smem>>
    %277 = vector.broadcast %276 : f32 to vector<35x128xf32>
    %278 = arith.mulf %275, %277 : vector<35x128xf32>
    %279 = arith.addf %274, %278 : vector<35x128xf32>
    %280 = vector.extract_strided_slice %260 {offsets = [0, 384], sizes = [35, 128], strides = [1, 1]} : vector<35x768xf32> to vector<35x128xf32>
    %c4_106 = arith.constant 4 : index
    %281 = memref.load %arg1[%c4_106] : memref<30xf32, #tpu.memory_space<smem>>
    %282 = vector.broadcast %281 : f32 to vector<35x128xf32>
    %283 = arith.mulf %280, %282 : vector<35x128xf32>
    %284 = arith.addf %279, %283 : vector<35x128xf32>
    %285 = vector.extract_strided_slice %260 {offsets = [0, 640], sizes = [35, 128], strides = [1, 1]} : vector<35x768xf32> to vector<35x128xf32>
    %c5_107 = arith.constant 5 : index
    %286 = memref.load %arg1[%c5_107] : memref<30xf32, #tpu.memory_space<smem>>
    %287 = vector.broadcast %286 : f32 to vector<35x128xf32>
    %288 = arith.mulf %285, %287 : vector<35x128xf32>
    %289 = arith.addf %284, %288 : vector<35x128xf32>
    %cst_108 = arith.constant 0.000000e+00 : f32
    %290 = vector.broadcast %cst_108 : f32 to vector<35x128xf32>
    %291 = arith.subf %290, %289 : vector<35x128xf32>
    %292 = math.exp %291 : vector<35x128xf32>
    %cst_109 = arith.constant 1.000000e+00 : f32
    %293 = vector.broadcast %cst_109 : f32 to vector<35x128xf32>
    %294 = arith.addf %293, %292 : vector<35x128xf32>
    %295 = tpu.reciprocal %294 {approx = true} : vector<35x128xf32> -> vector<35x128xf32>
    %296 = vector.extract_strided_slice %295 {offsets = [0, 0], sizes = [35, 35], strides = [1, 1]} : vector<35x128xf32> to vector<35x35xf32>
    %297 = vector.extract_strided_slice %260 {offsets = [0, 0], sizes = [35, 35], strides = [1, 1]} : vector<35x768xf32> to vector<35x35xf32>
    %298 = vector.shape_cast %297 : vector<35x35xf32> to vector<1x35x35xf32>
    %cst_110 = arith.constant dense<0.000000e+00> : vector<1xf32>
    %299 = vector.multi_reduction <add>, %298, %cst_110 [1, 2] : vector<1x35x35xf32> to vector<1xf32>
    %300 = vector.shape_cast %299 : vector<1xf32> to vector<1x1x1xf32>
    %301 = vector.extract %300[0, 0, 0] : f32 from vector<1x1x1xf32>
    %cst_111 = arith.constant 8.1632653E-4 : f32
    %302 = arith.mulf %301, %cst_111 : f32
    %303 = vector.extract_strided_slice %260 {offsets = [0, 128], sizes = [35, 35], strides = [1, 1]} : vector<35x768xf32> to vector<35x35xf32>
    %304 = vector.shape_cast %303 : vector<35x35xf32> to vector<1x35x35xf32>
    %cst_112 = arith.constant dense<0.000000e+00> : vector<1xf32>
    %305 = vector.multi_reduction <add>, %304, %cst_112 [1, 2] : vector<1x35x35xf32> to vector<1xf32>
    %306 = vector.shape_cast %305 : vector<1xf32> to vector<1x1x1xf32>
    %307 = vector.extract %306[0, 0, 0] : f32 from vector<1x1x1xf32>
    %cst_113 = arith.constant 8.1632653E-4 : f32
    %308 = arith.mulf %307, %cst_113 : f32
    %309 = vector.extract_strided_slice %260 {offsets = [0, 256], sizes = [35, 35], strides = [1, 1]} : vector<35x768xf32> to vector<35x35xf32>
    %310 = vector.shape_cast %309 : vector<35x35xf32> to vector<1x35x35xf32>
    %cst_114 = arith.constant dense<0.000000e+00> : vector<1xf32>
    %311 = vector.multi_reduction <add>, %310, %cst_114 [1, 2] : vector<1x35x35xf32> to vector<1xf32>
    %312 = vector.shape_cast %311 : vector<1xf32> to vector<1x1x1xf32>
    %313 = vector.extract %312[0, 0, 0] : f32 from vector<1x1x1xf32>
    %cst_115 = arith.constant 8.1632653E-4 : f32
    %314 = arith.mulf %313, %cst_115 : f32
    %315 = vector.extract_strided_slice %260 {offsets = [0, 384], sizes = [35, 35], strides = [1, 1]} : vector<35x768xf32> to vector<35x35xf32>
    %316 = vector.shape_cast %315 : vector<35x35xf32> to vector<1x35x35xf32>
    %cst_116 = arith.constant dense<0.000000e+00> : vector<1xf32>
    %317 = vector.multi_reduction <add>, %316, %cst_116 [1, 2] : vector<1x35x35xf32> to vector<1xf32>
    %318 = vector.shape_cast %317 : vector<1xf32> to vector<1x1x1xf32>
    %319 = vector.extract %318[0, 0, 0] : f32 from vector<1x1x1xf32>
    %cst_117 = arith.constant 8.1632653E-4 : f32
    %320 = arith.mulf %319, %cst_117 : f32
    %321 = vector.extract_strided_slice %260 {offsets = [0, 512], sizes = [35, 35], strides = [1, 1]} : vector<35x768xf32> to vector<35x35xf32>
    %322 = vector.shape_cast %321 : vector<35x35xf32> to vector<1x35x35xf32>
    %cst_118 = arith.constant dense<0.000000e+00> : vector<1xf32>
    %323 = vector.multi_reduction <add>, %322, %cst_118 [1, 2] : vector<1x35x35xf32> to vector<1xf32>
    %324 = vector.shape_cast %323 : vector<1xf32> to vector<1x1x1xf32>
    %325 = vector.extract %324[0, 0, 0] : f32 from vector<1x1x1xf32>
    %cst_119 = arith.constant 8.1632653E-4 : f32
    %326 = arith.mulf %325, %cst_119 : f32
    %327 = vector.extract_strided_slice %260 {offsets = [0, 640], sizes = [35, 35], strides = [1, 1]} : vector<35x768xf32> to vector<35x35xf32>
    %328 = vector.shape_cast %327 : vector<35x35xf32> to vector<1x35x35xf32>
    %cst_120 = arith.constant dense<0.000000e+00> : vector<1xf32>
    %329 = vector.multi_reduction <add>, %328, %cst_120 [1, 2] : vector<1x35x35xf32> to vector<1xf32>
    %330 = vector.shape_cast %329 : vector<1xf32> to vector<1x1x1xf32>
    %331 = vector.extract %330[0, 0, 0] : f32 from vector<1x1x1xf32>
    %cst_121 = arith.constant 8.1632653E-4 : f32
    %332 = arith.mulf %331, %cst_121 : f32
    %c6 = arith.constant 6 : index
    %333 = memref.load %arg1[%c6] : memref<30xf32, #tpu.memory_space<smem>>
    %334 = arith.mulf %302, %333 : f32
    %c7 = arith.constant 7 : index
    %335 = memref.load %arg1[%c7] : memref<30xf32, #tpu.memory_space<smem>>
    %336 = arith.mulf %314, %335 : f32
    %337 = arith.addf %334, %336 : f32
    %c8 = arith.constant 8 : index
    %338 = memref.load %arg1[%c8] : memref<30xf32, #tpu.memory_space<smem>>
    %339 = arith.mulf %326, %338 : f32
    %340 = arith.addf %337, %339 : f32
    %c9 = arith.constant 9 : index
    %341 = memref.load %arg1[%c9] : memref<30xf32, #tpu.memory_space<smem>>
    %342 = arith.mulf %308, %341 : f32
    %343 = arith.addf %340, %342 : f32
    %c10 = arith.constant 10 : index
    %344 = memref.load %arg1[%c10] : memref<30xf32, #tpu.memory_space<smem>>
    %345 = arith.mulf %320, %344 : f32
    %346 = arith.addf %343, %345 : f32
    %c11 = arith.constant 11 : index
    %347 = memref.load %arg1[%c11] : memref<30xf32, #tpu.memory_space<smem>>
    %348 = arith.mulf %332, %347 : f32
    %349 = arith.addf %346, %348 : f32
    %cst_122 = arith.constant 0.000000e+00 : f32
    %350 = arith.maximumf %349, %cst_122 : f32
    %c12 = arith.constant 12 : index
    %351 = memref.load %arg1[%c12] : memref<30xf32, #tpu.memory_space<smem>>
    %352 = arith.mulf %302, %351 : f32
    %c13 = arith.constant 13 : index
    %353 = memref.load %arg1[%c13] : memref<30xf32, #tpu.memory_space<smem>>
    %354 = arith.mulf %314, %353 : f32
    %355 = arith.addf %352, %354 : f32
    %c14 = arith.constant 14 : index
    %356 = memref.load %arg1[%c14] : memref<30xf32, #tpu.memory_space<smem>>
    %357 = arith.mulf %326, %356 : f32
    %358 = arith.addf %355, %357 : f32
    %c15 = arith.constant 15 : index
    %359 = memref.load %arg1[%c15] : memref<30xf32, #tpu.memory_space<smem>>
    %360 = arith.mulf %308, %359 : f32
    %361 = arith.addf %358, %360 : f32
    %c16 = arith.constant 16 : index
    %362 = memref.load %arg1[%c16] : memref<30xf32, #tpu.memory_space<smem>>
    %363 = arith.mulf %320, %362 : f32
    %364 = arith.addf %361, %363 : f32
    %c17 = arith.constant 17 : index
    %365 = memref.load %arg1[%c17] : memref<30xf32, #tpu.memory_space<smem>>
    %366 = arith.mulf %332, %365 : f32
    %367 = arith.addf %364, %366 : f32
    %cst_123 = arith.constant 0.000000e+00 : f32
    %368 = arith.maximumf %367, %cst_123 : f32
    %c18 = arith.constant 18 : index
    %369 = memref.load %arg1[%c18] : memref<30xf32, #tpu.memory_space<smem>>
    %370 = arith.mulf %350, %369 : f32
    %c19 = arith.constant 19 : index
    %371 = memref.load %arg1[%c19] : memref<30xf32, #tpu.memory_space<smem>>
    %372 = arith.mulf %368, %371 : f32
    %373 = arith.addf %370, %372 : f32
    %cst_124 = arith.constant 0.166666672 : f32
    %374 = arith.mulf %373, %cst_124 : f32
    %cst_125 = arith.constant 5.000000e-01 : f32
    %375 = arith.addf %374, %cst_125 : f32
    %cst_126 = arith.constant 0.000000e+00 : f32
    %cst_127 = arith.constant 1.000000e+00 : f32
    %376 = arith.maximumf %cst_126, %375 : f32
    %377 = arith.minimumf %cst_127, %376 : f32
    %378 = vector.extract_strided_slice %260 {offsets = [0, 0], sizes = [35, 128], strides = [1, 1]} : vector<35x768xf32> to vector<35x128xf32>
    %379 = vector.extract_strided_slice %378 {offsets = [0, 0], sizes = [35, 35], strides = [1, 1]} : vector<35x128xf32> to vector<35x35xf32>
    %380 = vector.broadcast %377 : f32 to vector<35x35xf32>
    %381 = arith.addf %296, %380 : vector<35x35xf32>
    %382 = arith.mulf %379, %381 : vector<35x35xf32>
    %c0_128 = arith.constant 0 : index
    %c0_129 = arith.constant 0 : index
    %c0_130 = arith.constant 0 : index
    %c0_131 = arith.constant 0 : index
    %383 = vector.load %arg8[%c0_128, %c0_129, %c0_130, %c0_131] : memref<1x6x35x35xf32, #tpu.memory_space<vmem>>, vector<1x1x35x35xf32>
    %384 = vector.shape_cast %383 : vector<1x1x35x35xf32> to vector<35x35xf32>
    %385 = vector.shape_cast %382 : vector<35x35xf32> to vector<1x1x35x35xf32>
    tpu.vector_store %arg8[%c0_128, %c0_129, %c0_130, %c0_131], %385 {strides = array<i32>} : memref<1x6x35x35xf32, #tpu.memory_space<vmem>>, vector<1x1x35x35xf32>,
    %c20 = arith.constant 20 : index
    %386 = memref.load %arg1[%c20] : memref<30xf32, #tpu.memory_space<smem>>
    %387 = arith.mulf %350, %386 : f32
    %c21 = arith.constant 21 : index
    %388 = memref.load %arg1[%c21] : memref<30xf32, #tpu.memory_space<smem>>
    %389 = arith.mulf %368, %388 : f32
    %390 = arith.addf %387, %389 : f32
    %cst_132 = arith.constant 0.166666672 : f32
    %391 = arith.mulf %390, %cst_132 : f32
    %cst_133 = arith.constant 5.000000e-01 : f32
    %392 = arith.addf %391, %cst_133 : f32
    %cst_134 = arith.constant 0.000000e+00 : f32
    %cst_135 = arith.constant 1.000000e+00 : f32
    %393 = arith.maximumf %cst_134, %392 : f32
    %394 = arith.minimumf %cst_135, %393 : f32
    %395 = vector.extract_strided_slice %260 {offsets = [0, 256], sizes = [35, 128], strides = [1, 1]} : vector<35x768xf32> to vector<35x128xf32>
    %396 = vector.extract_strided_slice %395 {offsets = [0, 0], sizes = [35, 35], strides = [1, 1]} : vector<35x128xf32> to vector<35x35xf32>
    %397 = vector.broadcast %394 : f32 to vector<35x35xf32>
    %398 = arith.addf %296, %397 : vector<35x35xf32>
    %399 = arith.mulf %396, %398 : vector<35x35xf32>
    %c0_136 = arith.constant 0 : index
    %c1_137 = arith.constant 1 : index
    %c0_138 = arith.constant 0 : index
    %c0_139 = arith.constant 0 : index
    %400 = vector.load %arg8[%c0_136, %c1_137, %c0_138, %c0_139] : memref<1x6x35x35xf32, #tpu.memory_space<vmem>>, vector<1x1x35x35xf32>
    %401 = vector.shape_cast %400 : vector<1x1x35x35xf32> to vector<35x35xf32>
    %402 = vector.shape_cast %399 : vector<35x35xf32> to vector<1x1x35x35xf32>
    tpu.vector_store %arg8[%c0_136, %c1_137, %c0_138, %c0_139], %402 {strides = array<i32>} : memref<1x6x35x35xf32, #tpu.memory_space<vmem>>, vector<1x1x35x35xf32>,
    %c22 = arith.constant 22 : index
    %403 = memref.load %arg1[%c22] : memref<30xf32, #tpu.memory_space<smem>>
    %404 = arith.mulf %350, %403 : f32
    %c23 = arith.constant 23 : index
    %405 = memref.load %arg1[%c23] : memref<30xf32, #tpu.memory_space<smem>>
    %406 = arith.mulf %368, %405 : f32
    %407 = arith.addf %404, %406 : f32
    %cst_140 = arith.constant 0.166666672 : f32
    %408 = arith.mulf %407, %cst_140 : f32
    %cst_141 = arith.constant 5.000000e-01 : f32
    %409 = arith.addf %408, %cst_141 : f32
    %cst_142 = arith.constant 0.000000e+00 : f32
    %cst_143 = arith.constant 1.000000e+00 : f32
    %410 = arith.maximumf %cst_142, %409 : f32
    %411 = arith.minimumf %cst_143, %410 : f32
    %412 = vector.extract_strided_slice %260 {offsets = [0, 512], sizes = [35, 128], strides = [1, 1]} : vector<35x768xf32> to vector<35x128xf32>
    %413 = vector.extract_strided_slice %412 {offsets = [0, 0], sizes = [35, 35], strides = [1, 1]} : vector<35x128xf32> to vector<35x35xf32>
    %414 = vector.broadcast %411 : f32 to vector<35x35xf32>
    %415 = arith.addf %296, %414 : vector<35x35xf32>
    %416 = arith.mulf %413, %415 : vector<35x35xf32>
    %c0_144 = arith.constant 0 : index
    %c2_145 = arith.constant 2 : index
    %c0_146 = arith.constant 0 : index
    %c0_147 = arith.constant 0 : index
    %417 = vector.load %arg8[%c0_144, %c2_145, %c0_146, %c0_147] : memref<1x6x35x35xf32, #tpu.memory_space<vmem>>, vector<1x1x35x35xf32>
    %418 = vector.shape_cast %417 : vector<1x1x35x35xf32> to vector<35x35xf32>
    %419 = vector.shape_cast %416 : vector<35x35xf32> to vector<1x1x35x35xf32>
    tpu.vector_store %arg8[%c0_144, %c2_145, %c0_146, %c0_147], %419 {strides = array<i32>} : memref<1x6x35x35xf32, #tpu.memory_space<vmem>>, vector<1x1x35x35xf32>,
    %c24 = arith.constant 24 : index
    %420 = memref.load %arg1[%c24] : memref<30xf32, #tpu.memory_space<smem>>
    %421 = arith.mulf %350, %420 : f32
    %c25 = arith.constant 25 : index
    %422 = memref.load %arg1[%c25] : memref<30xf32, #tpu.memory_space<smem>>
    %423 = arith.mulf %368, %422 : f32
    %424 = arith.addf %421, %423 : f32
    %cst_148 = arith.constant 0.166666672 : f32
    %425 = arith.mulf %424, %cst_148 : f32
    %cst_149 = arith.constant 5.000000e-01 : f32
    %426 = arith.addf %425, %cst_149 : f32
    %cst_150 = arith.constant 0.000000e+00 : f32
    %cst_151 = arith.constant 1.000000e+00 : f32
    %427 = arith.maximumf %cst_150, %426 : f32
    %428 = arith.minimumf %cst_151, %427 : f32
    %429 = vector.extract_strided_slice %260 {offsets = [0, 128], sizes = [35, 128], strides = [1, 1]} : vector<35x768xf32> to vector<35x128xf32>
    %430 = vector.extract_strided_slice %429 {offsets = [0, 0], sizes = [35, 35], strides = [1, 1]} : vector<35x128xf32> to vector<35x35xf32>
    %431 = vector.broadcast %428 : f32 to vector<35x35xf32>
    %432 = arith.addf %296, %431 : vector<35x35xf32>
    %433 = arith.mulf %430, %432 : vector<35x35xf32>
    %c0_152 = arith.constant 0 : index
    %c3_153 = arith.constant 3 : index
    %c0_154 = arith.constant 0 : index
    %c0_155 = arith.constant 0 : index
    %434 = vector.load %arg8[%c0_152, %c3_153, %c0_154, %c0_155] : memref<1x6x35x35xf32, #tpu.memory_space<vmem>>, vector<1x1x35x35xf32>
    %435 = vector.shape_cast %434 : vector<1x1x35x35xf32> to vector<35x35xf32>
    %436 = vector.shape_cast %433 : vector<35x35xf32> to vector<1x1x35x35xf32>
    tpu.vector_store %arg8[%c0_152, %c3_153, %c0_154, %c0_155], %436 {strides = array<i32>} : memref<1x6x35x35xf32, #tpu.memory_space<vmem>>, vector<1x1x35x35xf32>,
    %c26 = arith.constant 26 : index
    %437 = memref.load %arg1[%c26] : memref<30xf32, #tpu.memory_space<smem>>
    %438 = arith.mulf %350, %437 : f32
    %c27 = arith.constant 27 : index
    %439 = memref.load %arg1[%c27] : memref<30xf32, #tpu.memory_space<smem>>
    %440 = arith.mulf %368, %439 : f32
    %441 = arith.addf %438, %440 : f32
    %cst_156 = arith.constant 0.166666672 : f32
    %442 = arith.mulf %441, %cst_156 : f32
    %cst_157 = arith.constant 5.000000e-01 : f32
    %443 = arith.addf %442, %cst_157 : f32
    %cst_158 = arith.constant 0.000000e+00 : f32
    %cst_159 = arith.constant 1.000000e+00 : f32
    %444 = arith.maximumf %cst_158, %443 : f32
    %445 = arith.minimumf %cst_159, %444 : f32
    %446 = vector.extract_strided_slice %260 {offsets = [0, 384], sizes = [35, 128], strides = [1, 1]} : vector<35x768xf32> to vector<35x128xf32>
    %447 = vector.extract_strided_slice %446 {offsets = [0, 0], sizes = [35, 35], strides = [1, 1]} : vector<35x128xf32> to vector<35x35xf32>
    %448 = vector.broadcast %445 : f32 to vector<35x35xf32>
    %449 = arith.addf %296, %448 : vector<35x35xf32>
    %450 = arith.mulf %447, %449 : vector<35x35xf32>
    %c0_160 = arith.constant 0 : index
    %c4_161 = arith.constant 4 : index
    %c0_162 = arith.constant 0 : index
    %c0_163 = arith.constant 0 : index
    %451 = vector.load %arg8[%c0_160, %c4_161, %c0_162, %c0_163] : memref<1x6x35x35xf32, #tpu.memory_space<vmem>>, vector<1x1x35x35xf32>
    %452 = vector.shape_cast %451 : vector<1x1x35x35xf32> to vector<35x35xf32>
    %453 = vector.shape_cast %450 : vector<35x35xf32> to vector<1x1x35x35xf32>
    tpu.vector_store %arg8[%c0_160, %c4_161, %c0_162, %c0_163], %453 {strides = array<i32>} : memref<1x6x35x35xf32, #tpu.memory_space<vmem>>, vector<1x1x35x35xf32>,
    %c28 = arith.constant 28 : index
    %454 = memref.load %arg1[%c28] : memref<30xf32, #tpu.memory_space<smem>>
    %455 = arith.mulf %350, %454 : f32
    %c29 = arith.constant 29 : index
    %456 = memref.load %arg1[%c29] : memref<30xf32, #tpu.memory_space<smem>>
    %457 = arith.mulf %368, %456 : f32
    %458 = arith.addf %455, %457 : f32
    %cst_164 = arith.constant 0.166666672 : f32
    %459 = arith.mulf %458, %cst_164 : f32
    %cst_165 = arith.constant 5.000000e-01 : f32
    %460 = arith.addf %459, %cst_165 : f32
    %cst_166 = arith.constant 0.000000e+00 : f32
    %cst_167 = arith.constant 1.000000e+00 : f32
    %461 = arith.maximumf %cst_166, %460 : f32
    %462 = arith.minimumf %cst_167, %461 : f32
    %463 = vector.extract_strided_slice %260 {offsets = [0, 640], sizes = [35, 128], strides = [1, 1]} : vector<35x768xf32> to vector<35x128xf32>
    %464 = vector.extract_strided_slice %463 {offsets = [0, 0], sizes = [35, 35], strides = [1, 1]} : vector<35x128xf32> to vector<35x35xf32>
    %465 = vector.broadcast %462 : f32 to vector<35x35xf32>
    %466 = arith.addf %296, %465 : vector<35x35xf32>
    %467 = arith.mulf %464, %466 : vector<35x35xf32>
    %c0_168 = arith.constant 0 : index
    %c5_169 = arith.constant 5 : index
    %c0_170 = arith.constant 0 : index
    %c0_171 = arith.constant 0 : index
    %468 = vector.load %arg8[%c0_168, %c5_169, %c0_170, %c0_171] : memref<1x6x35x35xf32, #tpu.memory_space<vmem>>, vector<1x1x35x35xf32>
    %469 = vector.shape_cast %468 : vector<1x1x35x35xf32> to vector<35x35xf32>
    %470 = vector.shape_cast %467 : vector<35x35xf32> to vector<1x1x35x35xf32>
    tpu.vector_store %arg8[%c0_168, %c5_169, %c0_170, %c0_171], %470 {strides = array<i32>} : memref<1x6x35x35xf32, #tpu.memory_space<vmem>>, vector<1x1x35x35xf32>,
    return
  }
  func.func @transform_0(%arg0: i32, %arg1: memref<30xf32, #tpu.memory_space<smem>>) -> (i32, i32, i32) {
    %c0_i32 = arith.constant 0 : i32
    %c0_i32_0 = arith.constant 0 : i32
    %c0_i32_1 = arith.constant 0 : i32
    return %arg0, %c0_i32, %c0_i32_0 : i32, i32, i32
  }
  func.func @transform_1(%arg0: i32, %arg1: memref<30xf32, #tpu.memory_space<smem>>) -> (i32, i32) {
    %c0_i32 = arith.constant 0 : i32
    %c0_i32_0 = arith.constant 0 : i32
    %c0_i32_1 = arith.constant 0 : i32
    return %c0_i32, %c0_i32_0 : i32, i32
  }
  func.func @transform_2(%arg0: i32, %arg1: memref<30xf32, #tpu.memory_space<smem>>) -> (i32, i32) {
    %c0_i32 = arith.constant 0 : i32
    %c0_i32_0 = arith.constant 0 : i32
    %c0_i32_1 = arith.constant 0 : i32
    return %c0_i32, %c0_i32_0 : i32, i32
  }
  func.func @transform_3(%arg0: i32, %arg1: memref<30xf32, #tpu.memory_space<smem>>) -> (i32, i32) {
    %c0_i32 = arith.constant 0 : i32
    %c0_i32_0 = arith.constant 0 : i32
    %c0_i32_1 = arith.constant 0 : i32
    return %c0_i32, %c0_i32_0 : i32, i32
  }
  func.func @transform_4(%arg0: i32, %arg1: memref<30xf32, #tpu.memory_space<smem>>) -> (i32, i32, i32) {
    %c0_i32 = arith.constant 0 : i32
    %c0_i32_0 = arith.constant 0 : i32
    %c0_i32_1 = arith.constant 0 : i32
    %c0_i32_2 = arith.constant 0 : i32
    return %c0_i32, %c0_i32_0, %c0_i32_1 : i32, i32, i32
  }
  func.func @transform_5(%arg0: i32, %arg1: memref<30xf32, #tpu.memory_space<smem>>) -> (i32, i32) {
    %c0_i32 = arith.constant 0 : i32
    %c0_i32_0 = arith.constant 0 : i32
    %c0_i32_1 = arith.constant 0 : i32
    return %c0_i32, %c0_i32_0 : i32, i32
  }
  func.func @transform_6(%arg0: i32, %arg1: memref<30xf32, #tpu.memory_space<smem>>) -> (i32, i32, i32, i32) {
    %c0_i32 = arith.constant 0 : i32
    %c0_i32_0 = arith.constant 0 : i32
    %c0_i32_1 = arith.constant 0 : i32
    %c0_i32_2 = arith.constant 0 : i32
    return %arg0, %c0_i32, %c0_i32_0, %c0_i32_1 : i32, i32, i32, i32
  }
}

</mosaic_0001>

<llo_original>
// kernel: dilated_upsample_down_forward.1
$region0: #{dilated_upsample_down_forward.1}
  #allocation0 [shape = 'u32[]', space=smem, size = 0x4, offset = 0x4, fixed_abs, tag = 'smem constant byte address 0x4 - core index']
  #allocation1 [shape = 'u32[144,128]{1,0:T(1,128)}', space=vmem, size = 0x12000, scoped, tag = 'internal scratch']
  #allocation2 [shape = 's32[1]{0}', space=sflag, size = 0x4, scoped, tag = 'scoped memory for dilated_upsample_down_forward.1']
  #allocation3 [shape = 'u8[512]{0}', space=smem, size = 0x200, scoped, tag = 'prefetched SMEM operand 0']
  %s0 = inlined_call_operand.vmem [shape: f32[30], index: 0, kind: input, shape index: {}]
  %s1 = inlined_call_operand.vmem [shape: f32[2,16,64], index: 1, kind: input, shape index: {}]
  %s2 = inlined_call_operand.vmem [shape: f32[64,96], index: 2, kind: input, shape index: {}]
  %s3 = inlined_call_operand.vmem [shape: f32[6,96], index: 3, kind: input, shape index: {}]
  %s4 = inlined_call_operand.vmem [shape: f32[96,3072], index: 4, kind: input, shape index: {}]
  %s5 = inlined_call_operand.vmem [shape: f32[4,35,16], index: 5, kind: input, shape index: {}]
  %s6 = inlined_call_operand.vmem [shape: f32[6,768], index: 6, kind: input, shape index: {}]
  %s7 = inlined_call_operand.vmem [shape: f32[2,6,35,35], index: 7, kind: output, shape index: {}]
  %s8 = sld [smem:[#allocation0]]
  $region57: #{dilated_upsample_down_forward.1} parent=0
    _
  %s10 = ssub.s32 1, %s8
  %s11 = scalar_select 0, %s10, %s8
  %s12 = sshll.u32 %s0, 4
  %s13 = int_to_ptr.vmem [resolvable:$true] %s12
  %15 = dma.vmem_to_smem %s13, 16, [#allocation3], [#allocation2]
  %16 = dma.done [#allocation2], 16
  %17 = sfence
  loop: start=0, step=1, limit=4
  $region2: #{dilated_upsample_down_forward.1} parent=0 // loop_pre_header
    _
  $region3: #{dilated_upsample_down_forward.1} parent=0 // loop_header
    %s19 = sphi 0, %s23
    %p20 = scmp.ge.s32.totalorder %s19, 4
    %s29 = sphi 0, %s31
    %s32 = sphi 0, %s29
    %s33 = sphi 0, %s32
    %s49 = sphi 0, %s33
    %s53 = sphi 0, %s53
    %s55 = sphi 0, %s53
    %s56 = sphi 0, %s55
    %s70 = sphi 0, %s56
    %s74 = sphi 0, %s74
    %s76 = sphi 0, %s74
    %s77 = sphi 0, %s76
    %s91 = sphi 0, %s77
    %s95 = sphi 0, %s95
    %s97 = sphi 0, %s95
    %s98 = sphi 0, %s97
    %s112 = sphi 0, %s98
    %s116 = sphi 0, %s116
    %s118 = sphi 0, %s116
    %s119 = sphi 0, %s118
    %s133 = sphi 0, %s119
    %s137 = sphi 0, %s137
    %s139 = sphi 0, %s137
    %s140 = sphi 0, %s139
    %s154 = sphi 0, %s140
    %s160 = sphi 0, %s162
    %s163 = sphi 0, %s160
    %s164 = sphi 0, %s163
    %s180 = sphi 0, %s164
  $region4: #{dilated_upsample_down_forward.1} parent=0 // loop_header_branch
    %22 = sbr.rel (%p20) target = $region8
  $region5: #{dilated_upsample_down_forward.1} parent=0 // loop_body
    %s24 = ssub.s32 %s19, 1
    %s25 = ssub.s32 %s19, 2
    %s26 = sadd.s32 %s19, 1
    %s27 = ssub.s32 %s19, %s26
    %p28 = scmp.eq.s32.totalorder %s27, 0
    %s30 = sadd.s32 %s29, 1
    %s31 = scalar_select %p28, %s29, %s30
    %p34 = pneg %p28
    %p35 = scmp.eq.s32.totalorder %s19, 1
    %p36 = por %p34, %p35
    %p37 = scmp.ne.s32.totalorder %s29, %s32
    %p38 = scmp.eq.s32.totalorder %s19, 0
    %p39 = por %p37, %p38
    %p40 = scmp.ne.s32.totalorder %s29, %s32
    %p41 = scmp.eq.s32.totalorder %s24, 1
    %p42 = por %p40, %p41
    %p43 = scmp.ne.s32.totalorder %s32, %s33
    %p44 = scmp.eq.s32.totalorder %s24, 0
    %p45 = por %p43, %p44
    %p46 = scmp.ne.s32.totalorder %s32, %s33
    %p47 = scmp.eq.s32.totalorder %s25, 1
    %p48 = por %p46, %p47
    %p50 = scmp.ne.s32.totalorder %s33, %s49
    %p51 = scmp.eq.s32.totalorder %s25, 0
    %p52 = por %p50, %p51
    %s54 = sadd.s32 %s53, 1
    %p57 = scmp.eq.s32.totalorder %s19, 1
    %p58 = scmp.ne.s32.totalorder %s53, %s55
    %p59 = scmp.eq.s32.totalorder %s19, 0
    %p60 = por %p58, %p59
    %p61 = scmp.ne.s32.totalorder %s53, %s55
    %p62 = scmp.eq.s32.totalorder %s24, 1
    %p63 = por %p61, %p62
    %p64 = scmp.ne.s32.totalorder %s55, %s56
    %p65 = scmp.eq.s32.totalorder %s24, 0
    %p66 = por %p64, %p65
    %p67 = scmp.ne.s32.totalorder %s55, %s56
    %p68 = scmp.eq.s32.totalorder %s25, 1
    %p69 = por %p67, %p68
    %p71 = scmp.ne.s32.totalorder %s56, %s70
    %p72 = scmp.eq.s32.totalorder %s25, 0
    %p73 = por %p71, %p72
    %s75 = sadd.s32 %s74, 1
    %p78 = scmp.eq.s32.totalorder %s19, 1
    %p79 = scmp.ne.s32.totalorder %s74, %s76
    %p80 = scmp.eq.s32.totalorder %s19, 0
    %p81 = por %p79, %p80
    %p82 = scmp.ne.s32.totalorder %s74, %s76
    %p83 = scmp.eq.s32.totalorder %s24, 1
    %p84 = por %p82, %p83
    %p85 = scmp.ne.s32.totalorder %s76, %s77
    %p86 = scmp.eq.s32.totalorder %s24, 0
    %p87 = por %p85, %p86
    %p88 = scmp.ne.s32.totalorder %s76, %s77
    %p89 = scmp.eq.s32.totalorder %s25, 1
    %p90 = por %p88, %p89
    %p92 = scmp.ne.s32.totalorder %s77, %s91
    %p93 = scmp.eq.s32.totalorder %s25, 0
    %p94 = por %p92, %p93
    %s96 = sadd.s32 %s95, 1
    %p99 = scmp.eq.s32.totalorder %s19, 1
    %p100 = scmp.ne.s32.totalorder %s95, %s97
    %p101 = scmp.eq.s32.totalorder %s19, 0
    %p102 = por %p100, %p101
    %p103 = scmp.ne.s32.totalorder %s95, %s97
    %p104 = scmp.eq.s32.totalorder %s24, 1
    %p105 = por %p103, %p104
    %p106 = scmp.ne.s32.totalorder %s97, %s98
    %p107 = scmp.eq.s32.totalorder %s24, 0
    %p108 = por %p106, %p107
    %p109 = scmp.ne.s32.totalorder %s97, %s98
    %p110 = scmp.eq.s32.totalorder %s25, 1
    %p111 = por %p109, %p110
    %p113 = scmp.ne.s32.totalorder %s98, %s112
    %p114 = scmp.eq.s32.totalorder %s25, 0
    %p115 = por %p113, %p114
    %s117 = sadd.s32 %s116, 1
    %p120 = scmp.eq.s32.totalorder %s19, 1
    %p121 = scmp.ne.s32.totalorder %s116, %s118
    %p122 = scmp.eq.s32.totalorder %s19, 0
    %p123 = por %p121, %p122
    %p124 = scmp.ne.s32.totalorder %s116, %s118
    %p125 = scmp.eq.s32.totalorder %s24, 1
    %p126 = por %p124, %p125
    %p127 = scmp.ne.s32.totalorder %s118, %s119
    %p128 = scmp.eq.s32.totalorder %s24, 0
    %p129 = por %p127, %p128
    %p130 = scmp.ne.s32.totalorder %s118, %s119
    %p131 = scmp.eq.s32.totalorder %s25, 1
    %p132 = por %p130, %p131
    %p134 = scmp.ne.s32.totalorder %s119, %s133
    %p135 = scmp.eq.s32.totalorder %s25, 0
    %p136 = por %p134, %p135
    %s138 = sadd.s32 %s137, 1
    %p141 = scmp.eq.s32.totalorder %s19, 1
    %p142 = scmp.ne.s32.totalorder %s137, %s139
    %p143 = scmp.eq.s32.totalorder %s19, 0
    %p144 = por %p142, %p143
    %p145 = scmp.ne.s32.totalorder %s137, %s139
    %p146 = scmp.eq.s32.totalorder %s24, 1
    %p147 = por %p145, %p146
    %p148 = scmp.ne.s32.totalorder %s139, %s140
    %p149 = scmp.eq.s32.totalorder %s24, 0
    %p150 = por %p148, %p149
    %p151 = scmp.ne.s32.totalorder %s139, %s140
    %p152 = scmp.eq.s32.totalorder %s25, 1
    %p153 = por %p151, %p152
    %p155 = scmp.ne.s32.totalorder %s140, %s154
    %p156 = scmp.eq.s32.totalorder %s25, 0
    %p157 = por %p155, %p156
    %s158 = ssub.s32 %s19, %s26
    %p159 = scmp.eq.s32.totalorder %s158, 0
    %s161 = sadd.s32 %s160, 1
    %s162 = scalar_select %p159, %s160, %s161
    %p165 = pneg %p159
    %p166 = scmp.eq.s32.totalorder %s19, 1
    %p167 = por %p165, %p166
    %p168 = scmp.ne.s32.totalorder %s160, %s163
    %p169 = scmp.eq.s32.totalorder %s19, 0
    %p170 = por %p168, %p169
    %p171 = scmp.ne.s32.totalorder %s160, %s163
    %p172 = scmp.eq.s32.totalorder %s24, 1
    %p173 = por %p171, %p172
    %p174 = scmp.ne.s32.totalorder %s163, %s164
    %p175 = scmp.eq.s32.totalorder %s24, 0
    %p176 = por %p174, %p175
    %p177 = scmp.ne.s32.totalorder %s163, %s164
    %p178 = scmp.eq.s32.totalorder %s25, 1
    %p179 = por %p177, %p178
    %p181 = scmp.ne.s32.totalorder %s164, %s180
    %p182 = scmp.eq.s32.totalorder %s25, 0
    %p183 = por %p181, %p182
    %p184 = scmp.le.s32.totalorder 1, %s19
    %p185 = scmp.lt.s32.totalorder %s19, 3
    %p186 = pnand %p184, %p185
    %p187 = pneg %p186
    // Predicated region
    $region9: #{dilated_upsample_down_forward.1} parent=5 // pred_check
      _
    $region10: #{dilated_upsample_down_forward.1} parent=5 // pred_check_branch
      %189 = sbr.rel (%p186) target = $region12
    $region11: #{dilated_upsample_down_forward.1} parent=5 // pred_region
      %s190 = ssub.s32 %s19, 1
      // Predicated region
      $region13: #{dilated_upsample_down_forward.1} parent=11 // pred_check
        %p191 = pneg %p66
      $region14: #{dilated_upsample_down_forward.1} parent=11 // pred_check_branch
        %193 = sbr.rel (%p191) target = $region16
      $region15: #{dilated_upsample_down_forward.1} parent=11 // pred_region
        _
      $region16: #{dilated_upsample_down_forward.1} parent=11 // pred_fallthru
        _
      // Predicated region
      $region17: #{dilated_upsample_down_forward.1} parent=11 // pred_check
        %p194 = pneg %p87
      $region18: #{dilated_upsample_down_forward.1} parent=11 // pred_check_branch
        %196 = sbr.rel (%p194) target = $region20
      $region19: #{dilated_upsample_down_forward.1} parent=11 // pred_region
        _
      $region20: #{dilated_upsample_down_forward.1} parent=11 // pred_fallthru
        _
      // Predicated region
      $region21: #{dilated_upsample_down_forward.1} parent=11 // pred_check
        %p197 = pneg %p108
      $region22: #{dilated_upsample_down_forward.1} parent=11 // pred_check_branch
        %199 = sbr.rel (%p197) target = $region24
      $region23: #{dilated_upsample_down_forward.1} parent=11 // pred_region
        _
      $region24: #{dilated_upsample_down_forward.1} parent=11 // pred_fallthru
        _
      // Predicated region
      $region25: #{dilated_upsample_down_forward.1} parent=11 // pred_check
        %p200 = pneg %p129
      $region26: #{dilated_upsample_down_forward.1} parent=11 // pred_check_branch
        %202 = sbr.rel (%p200) target = $region28
      $region27: #{dilated_upsample_down_forward.1} parent=11 // pred_region
        _
      $region28: #{dilated_upsample_down_forward.1} parent=11 // pred_fallthru
        _
      // Predicated region
      $region29: #{dilated_upsample_down_forward.1} parent=11 // pred_check
        %p203 = pneg %p150
      $region30: #{dilated_upsample_down_forward.1} parent=11 // pred_check_branch
        %205 = sbr.rel (%p203) target = $region32
      $region31: #{dilated_upsample_down_forward.1} parent=11 // pred_region
        _
      $region32: #{dilated_upsample_down_forward.1} parent=11 // pred_fallthru
        _
    $region12: #{dilated_upsample_down_forward.1} parent=5 // pred_fallthru
      _
    %p206 = scmp.lt.s32.totalorder %s19, 2
    // Predicated region
    $region33: #{dilated_upsample_down_forward.1} parent=5 // pred_check
      %p207 = pneg %p206
    $region34: #{dilated_upsample_down_forward.1} parent=5 // pred_check_branch
      %209 = sbr.rel (%p207) target = $region36
    $region35: #{dilated_upsample_down_forward.1} parent=5 // pred_region
      // Predicated region
      $region37: #{dilated_upsample_down_forward.1} parent=35 // pred_check
        %p210 = pneg %p39
      $region38: #{dilated_upsample_down_forward.1} parent=35 // pred_check_branch
        %212 = sbr.rel (%p210) target = $region40
      $region39: #{dilated_upsample_down_forward.1} parent=35 // pred_region
        %p213 = scmp.lt.s32.totalorder %s19, 1
        %s214 = scalar_select %p213, %s19, 1
        %s215 = smul.addr %s214, 2
        %s216 = smul.addr %s215, 8
        %s217 = scalar_lea.vmem %s1, %s216
      $region40: #{dilated_upsample_down_forward.1} parent=35 // pred_fallthru
        _
    $region36: #{dilated_upsample_down_forward.1} parent=5 // pred_fallthru
      _
    %p218 = scmp.le.s32.totalorder 1, %s19
    %p219 = scmp.lt.s32.totalorder %s19, 3
    %p220 = pnand %p218, %p219
    %p221 = pneg %p220
    // Predicated region
    $region41: #{dilated_upsample_down_forward.1} parent=5 // pred_check
      _
    $region42: #{dilated_upsample_down_forward.1} parent=5 // pred_check_branch
      %223 = sbr.rel (%p220) target = $region44
    $region43: #{dilated_upsample_down_forward.1} parent=5 // pred_region
      %s224 = ssub.s32 %s19, 1
      %p225 = scmp.lt.s32.totalorder %s24, 1
      %s226 = scalar_select %p225, %s24, 1
      %s227 = smul.addr %s226, 2
      %s228 = smul.addr %s227, 8
      %s229 = scalar_lea.vmem %s1, %s228
      %p230 = pneg %p45
      %p231 = pneg %p42
      %p232 = pneg %p66
      %p233 = pneg %p63
      %p234 = pneg %p87
      %p235 = pneg %p84
      %p236 = pneg %p108
      %p237 = pneg %p105
      %p238 = pneg %p129
      %p239 = pneg %p126
      %p240 = pneg %p150
      %p241 = pneg %p147
      %p242 = pneg %p176
      %p243 = pneg %p173
      %p244 = scmp.lt.s32.totalorder %s24, 1
      %s245 = scalar_select %p244, %s24, 1
      %s246 = smul.addr %s245, 30
      %s247 = smul.addr %s246, 8
      %s248 = scalar_lea.vmem %s7, %s247
      %p249 = scmp.lt.s32.totalorder %s24, 1
      %s250 = scalar_select %p249, %s24, 1
      %s251 = smul.addr %s250, 2
      %s252 = smul.addr %s251, 8
      %s253 = scalar_lea.vmem %s1, %s252
      %p254 = scmp.lt.s32.totalorder %s24, 1
      %s255 = scalar_select %p254, %s24, 1
      %s256 = smul.addr %s255, 30
      %s257 = smul.addr %s256, 8
      %s258 = scalar_lea.vmem %s7, %s257
      %v259 = vld [vmem:[%s253] sm:$0xff]
      %v260 = vld [vmem:[%s253 + $0x8] sm:$0xff]
      %v261 = vld [vmem:[%s2] sm:$0xff]
      %v262 = vld [vmem:[%s2 + $0x8] sm:$0xff]
      %v263 = vld [vmem:[%s2 + $0x10] sm:$0xff]
      %v264 = vld [vmem:[%s2 + $0x18] sm:$0xff]
      %v265 = vld [vmem:[%s2 + $0x20] sm:$0xff]
      %v266 = vld [vmem:[%s2 + $0x28] sm:$0xff]
      %v267 = vld [vmem:[%s2 + $0x30] sm:$0xff]
      %v268 = vld [vmem:[%s2 + $0x38] sm:$0xff]
      %v269 = vld [vmem:[%s3] sm:$0x1]
      %v270 = vlaneseq
      %v271 = vshrl.u32 %v270, 7
      %v272 = vsub.s32 0, %v271
      %v273 = vrot.slane %v269, %v272
      %vm274 = vcmask 523264
      %v276 = vsel %vm274, %v259, 0
      %v279 = vsel %vm274, %v260, 0
      %281 = vmatprep.subr.mxu0 0.0
      %282 = vmatpush1.msra.mxu0 %v261
      %283 = vmatprep.subr.mxu0 0.0
      %284 = vmatpush1.msra.mxu0 %v262
      %285 = vmatprep.subr.mxu0 0.0
      %286 = vmatpush1.msra.mxu0 %v263
      %287 = vmatprep.subr.mxu0 0.0
      %288 = vmatpush1.msra.mxu0 %v264
      %289 = vmatprep.subr.mxu0 0.0
      %290 = vmatpush1.msra.mxu0 %v265
      %291 = vmatprep.subr.mxu0 0.0
      %292 = vmatpush1.msra.mxu0 %v266
      %293 = vmatprep.subr.mxu0 0.0
      %294 = vmatpush1.msra.mxu0 %v267
      %295 = vmatprep.subr.mxu0 0.0
      %296 = vmatpush1.msra.mxu0 %v268
      %297 = vmatprep.subr.mxu0 0.0
      %298 = vmatpush1.msra.mxu0 0.0
      %299 = vmatprep.subr.mxu0 0.0
      %300 = vmatpush1.msra.mxu0 0.0
      %301 = vmatprep.subr.mxu0 0.0
      %302 = vmatpush1.msra.mxu0 0.0
      %303 = vmatprep.subr.mxu0 0.0
      %304 = vmatpush1.msra.mxu0 0.0
      %305 = vmatprep.subr.mxu0 0.0
      %306 = vmatpush1.msra.mxu0 0.0
      %307 = vmatprep.subr.mxu0 0.0
      %308 = vmatpush1.msra.mxu0 0.0
      %309 = vmatprep.subr.mxu0 0.0
      %310 = vmatpush1.msra.mxu0 0.0
      %311 = vmatprep.subr.mxu0 0.0
      %312 = vmatpush1.msra.mxu0 0.0
      %313 = vmatprep.subr.mxu0 0.0
      %314 = vmatpush1.msra.mxu0 0.0
      %315 = vmatprep.subr.mxu0 0.0
      %316 = vmatpush1.msra.mxu0 0.0
      %317 = vmatprep.subr.mxu0 0.0
      %318 = vmatpush1.msra.mxu0 0.0
      %319 = vmatprep.subr.mxu0 0.0
      %320 = vmatpush1.msra.mxu0 0.0
      %321 = vmatprep.subr.mxu0 0.0
      %322 = vmatpush1.msra.mxu0 0.0
      %323 = vmatprep.subr.mxu0 0.0
      %324 = vmatpush1.msra.mxu0 0.0
      %325 = vmatprep.subr.mxu0 0.0
      %326 = vmatpush1.msra.mxu0 0.0
      %327 = vmatprep.subr.mxu0 0.0
      %328 = vmatpush1.msra.mxu0 0.0
      %329 = vmatprep.subr.mxu0 0.0
      %330 = vmatpush1.msra.mxu0 0.0
      %331 = vmatprep.subr.mxu0 0.0
      %332 = vmatpush1.msra.mxu0 0.0
      %333 = vmatprep.subr.mxu0 0.0
      %334 = vmatpush1.msra.mxu0 0.0
      %335 = vmatprep.subr.mxu0 0.0
      %336 = vmatpush1.msra.mxu0 0.0
      %337 = vmatprep.subr.mxu0 0.0
      %338 = vmatpush1.msra.mxu0 0.0
      %339 = vmatprep.subr.mxu0 0.0
      %340 = vmatpush1.msra.mxu0 0.0
      %341 = vmatprep.subr.mxu0 0.0
      %342 = vmatpush1.msra.mxu0 0.0
      %343 = vmatprep.subr.mxu0 0.0
      %344 = vmatpush1.msra.mxu0 0.0
      %345 = vmatprep.mubr.f32.mxu0 0.0
      %346 = vmatmul.mubr.f32.gmra.mrb[0].mxu0 %v276
      %v347 = vpop.f32.mrb[0].mxu0
      %v348 = vadd.f32 %v273, %v347
      %v349 = vpop.f32.mrb[0].mxu0
      %350 = vmatprep.mubr.f32.mxu0 0.0
      %351 = vmatmul.mubr.f32.gmra.mrb[0].mxu0 %v279
      %v352 = vpop.f32.mrb[0].mxu0
      %v353 = vadd.f32 %v273, %v352
      %v354 = vpop.f32.mrb[0].mxu0
      %355 = vdwg.mxu0
      %v356 = vld [vmem:[%s3 + $0x3] sm:$0x1]
      %v357 = vld [vmem:[%s3 + $0x4] sm:$0x1]
      %v358 = vld [vmem:[%s3 + $0x5] sm:$0x1]
      %v359 = vlaneseq
      %v360 = vshrl.u32 %v359, 7
      %v361 = vsub.s32 0, %v360
      %v362 = vrot.slane %v356, %v361
      %v363 = vmul.f32 %v348, %v362
      %v364 = vmul.f32 %v353, %v362
      %vm365 = vcmask 785408
      %v366 = vsel %vm365, %v363, 0.0
      %v367 = vsel %vm365, %v364, 0.0
      %v368 = vadd.f32 %v366, %v367
      %369 = vadd.xlane.f32.xlu0 %v368
      %v370 = vpop.xlane.xlu0 %369
      %v371 = vrot.slane %v370, 4
      %v372 = vadd.f32 %v370, %v371
      %v373 = vrot.slane %v372, 2
      %v374 = vadd.f32 %v372, %v373
      %v375 = vrot.slane %v374, 1
      %v376 = vadd.f32 %v374, %v375
      %s377 = vtos %v376
      %s378 = smul.f32 %s377, 0.001953125
      %v379 = vlaneseq
      %v380 = vshrl.u32 %v379, 7
      %v381 = vsub.s32 0, %v380
      %v382 = vrot.slane %v357, %v381
      %v383 = vmul.f32 %v348, %v382
      %v384 = vmul.f32 %v353, %v382
      %v385 = vsel %vm365, %v383, 0.0
      %v386 = vsel %vm365, %v384, 0.0
      %v387 = vadd.f32 %v385, %v386
      %388 = vadd.xlane.f32.xlu0 %v387
      %v389 = vpop.xlane.xlu0 %388
      %v390 = vrot.slane %v389, 4
      %v391 = vadd.f32 %v389, %v390
      %v392 = vrot.slane %v391, 2
      %v393 = vadd.f32 %v391, %v392
      %v394 = vrot.slane %v393, 1
      %v395 = vadd.f32 %v393, %v394
      %s396 = vtos %v395
      %s397 = smul.f32 %s396, 0.001953125
      %v398 = vlaneseq
      %v399 = vshrl.u32 %v398, 7
      %v400 = vsub.s32 0, %v399
      %v401 = vrot.slane %v358, %v400
      %v402 = vmul.f32 %v348, %v401
      %v403 = vmul.f32 %v353, %v401
      %v404 = vsel %vm365, %v402, 0.0
      %v405 = vsel %vm365, %v403, 0.0
      %v406 = vadd.f32 %v404, %v405
      %407 = vadd.xlane.f32.xlu0 %v406
      %v408 = vpop.xlane.xlu0 %407
      %v409 = vrot.slane %v408, 4
      %v410 = vadd.f32 %v408, %v409
      %v411 = vrot.slane %v410, 2
      %v412 = vadd.f32 %v410, %v411
      %v413 = vrot.slane %v412, 1
      %v414 = vadd.f32 %v412, %v413
      %s415 = vtos %v414
      %s416 = smul.f32 %s415, 0.001953125
      %v417 = vstv %s378
      %v418 = vmul.f32 %v417, %v356
      %v419 = vstv %s397
      %v420 = vmul.f32 %v419, %v357
      %v421 = vadd.f32 %v418, %v420
      %v422 = vstv %s416
      %v423 = vmul.f32 %v422, %v358
      %v424 = vadd.f32 %v421, %v423
      %v425 = vlaneseq
      %v426 = vshrl.u32 %v425, 7
      %v427 = vsub.s32 0, %v426
      %v428 = vrot.slane %v424, %v427
      %v429 = vsub.f32 %v348, %v428
      %v430 = vsub.f32 %v353, %v428
      %v431 = vmul.f32 %v429, %v429
      %v432 = vmul.f32 %v430, %v430
      %v433 = vmul.f32 %v431, %v362
      %v434 = vmul.f32 %v432, %v362
      %v435 = vsel %vm365, %v433, 0.0
      %v436 = vsel %vm365, %v434, 0.0
      %v437 = vadd.f32 %v435, %v436
      %438 = vadd.xlane.f32.xlu0 %v437
      %v439 = vpop.xlane.xlu0 %438
      %v440 = vrot.slane %v439, 4
      %v441 = vadd.f32 %v439, %v440
      %v442 = vrot.slane %v441, 2
      %v443 = vadd.f32 %v441, %v442
      %v444 = vrot.slane %v443, 1
      %v445 = vadd.f32 %v443, %v444
      %s446 = vtos %v445
      %s447 = smul.f32 %s446, 0.001953125
      %s448 = sadd.f32 %s447, 1e-05
      %v449 = vstv %s448
      %v450 = vrsqrt.pop %v449
      %s451 = vtos %v450
      %v452 = vmul.f32 %v431, %v382
      %v453 = vmul.f32 %v432, %v382
      %v454 = vsel %vm365, %v452, 0.0
      %v455 = vsel %vm365, %v453, 0.0
      %v456 = vadd.f32 %v454, %v455
      %457 = vadd.xlane.f32.xlu0 %v456
      %v458 = vpop.xlane.xlu0 %457
      %v459 = vrot.slane %v458, 4
      %v460 = vadd.f32 %v458, %v459
      %v461 = vrot.slane %v460, 2
      %v462 = vadd.f32 %v460, %v461
      %v463 = vrot.slane %v462, 1
      %v464 = vadd.f32 %v462, %v463
      %s465 = vtos %v464
      %s466 = smul.f32 %s465, 0.001953125
      %s467 = sadd.f32 %s466, 1e-05
      %v468 = vstv %s467
      %v469 = vrsqrt.pop %v468
      %s470 = vtos %v469
      %v471 = vmul.f32 %v431, %v401
      %v472 = vmul.f32 %v432, %v401
      %v473 = vsel %vm365, %v471, 0.0
      %v474 = vsel %vm365, %v472, 0.0
      %v475 = vadd.f32 %v473, %v474
      %476 = vadd.xlane.f32.xlu0 %v475
      %v477 = vpop.xlane.xlu0 %476
      %v478 = vrot.slane %v477, 4
      %v479 = vadd.f32 %v477, %v478
      %v480 = vrot.slane %v479, 2
      %v481 = vadd.f32 %v479, %v480
      %v482 = vrot.slane %v481, 1
      %v483 = vadd.f32 %v481, %v482
      %s484 = vtos %v483
      %s485 = smul.f32 %s484, 0.001953125
      %s486 = sadd.f32 %s485, 1e-05
      %v487 = vstv %s486
      %v488 = vrsqrt.pop %v487
      %s489 = vtos %v488
      %v490 = vstv %s451
      %v491 = vmul.f32 %v490, %v356
      %v492 = vstv %s470
      %v493 = vmul.f32 %v492, %v357
      %v494 = vadd.f32 %v491, %v493
      %v495 = vstv %s489
      %v496 = vmul.f32 %v495, %v358
      %v497 = vadd.f32 %v494, %v496
      %v498 = vld [vmem:[%s3 + $0x1] sm:$0x1]
      %v499 = vmul.f32 %v497, %v498
      %v500 = vlaneseq
      %v501 = vshrl.u32 %v500, 7
      %v502 = vsub.s32 0, %v501
      %v503 = vrot.slane %v499, %v502
      %v504 = vmul.f32 %v429, %v503
      %v505 = vmul.f32 %v430, %v503
      %v506 = vld [vmem:[%s3 + $0x2] sm:$0x1]
      %v507 = vlaneseq
      %v508 = vshrl.u32 %v507, 7
      %v509 = vsub.s32 0, %v508
      %v510 = vrot.slane %v506, %v509
      %v511 = vadd.f32 %v504, %v510
      %v512 = vadd.f32 %v505, %v510
      %v513 = vld [vmem:[%s4] sm:$0xff]
      %v514 = vld [vmem:[%s4 + $0x8] sm:$0xff]
      %v515 = vld [vmem:[%s4 + $0x10] sm:$0xff]
      %v516 = vld [vmem:[%s4 + $0x18] sm:$0xff]
      %v517 = vld [vmem:[%s4 + $0x20] sm:$0xff]
      %v518 = vld [vmem:[%s4 + $0x28] sm:$0xff]
      %v519 = vld [vmem:[%s4 + $0xc0] sm:$0xff]
      %v520 = vld [vmem:[%s4 + $0xc8] sm:$0xff]
      %v521 = vld [vmem:[%s4 + $0xd0] sm:$0xff]
      %v522 = vld [vmem:[%s4 + $0xd8] sm:$0xff]
      %v523 = vld [vmem:[%s4 + $0xe0] sm:$0xff]
      %v524 = vld [vmem:[%s4 + $0xe8] sm:$0xff]
      %v525 = vld [vmem:[%s4 + $0x180] sm:$0xff]
      %v526 = vld [vmem:[%s4 + $0x188] sm:$0xff]
      %v527 = vld [vmem:[%s4 + $0x190] sm:$0xff]
      %v528 = vld [vmem:[%s4 + $0x198] sm:$0xff]
      %v529 = vld [vmem:[%s4 + $0x1a0] sm:$0xff]
      %v530 = vld [vmem:[%s4 + $0x1a8] sm:$0xff]
      %v531 = vld [vmem:[%s4 + $0x240] sm:$0xff]
      %v532 = vld [vmem:[%s4 + $0x248] sm:$0xff]
      %v533 = vld [vmem:[%s4 + $0x250] sm:$0xff]
      %v534 = vld [vmem:[%s4 + $0x258] sm:$0xff]
      %v535 = vld [vmem:[%s4 + $0x260] sm:$0xff]
      %v536 = vld [vmem:[%s4 + $0x268] sm:$0xff]
      %v537 = vld [vmem:[%s4 + $0x300] sm:$0xff]
      %v538 = vld [vmem:[%s4 + $0x308] sm:$0xff]
      %v539 = vld [vmem:[%s4 + $0x310] sm:$0xff]
      %v540 = vld [vmem:[%s4 + $0x318] sm:$0xff]
      %v541 = vld [vmem:[%s4 + $0x320] sm:$0xff]
      %v542 = vld [vmem:[%s4 + $0x328] sm:$0xff]
      %v543 = vld [vmem:[%s4 + $0x3c0] sm:$0xff]
      %v544 = vld [vmem:[%s4 + $0x3c8] sm:$0xff]
      %v545 = vld [vmem:[%s4 + $0x3d0] sm:$0xff]
      %v546 = vld [vmem:[%s4 + $0x3d8] sm:$0xff]
      %v547 = vld [vmem:[%s4 + $0x3e0] sm:$0xff]
      %v548 = vld [vmem:[%s4 + $0x3e8] sm:$0xff]
      %v549 = vld [vmem:[%s4 + $0x480] sm:$0xff]
      %v550 = vld [vmem:[%s4 + $0x488] sm:$0xff]
      %v551 = vld [vmem:[%s4 + $0x490] sm:$0xff]
      %v552 = vld [vmem:[%s4 + $0x498] sm:$0xff]
      %v553 = vld [vmem:[%s4 + $0x4a0] sm:$0xff]
      %v554 = vld [vmem:[%s4 + $0x4a8] sm:$0xff]
      %v555 = vld [vmem:[%s4 + $0x540] sm:$0xff]
      %v556 = vld [vmem:[%s4 + $0x548] sm:$0xff]
      %v557 = vld [vmem:[%s4 + $0x550] sm:$0xff]
      %v558 = vld [vmem:[%s4 + $0x558] sm:$0xff]
      %v559 = vld [vmem:[%s4 + $0x560] sm:$0xff]
      %v560 = vld [vmem:[%s4 + $0x568] sm:$0xff]
      %v561 = vld [vmem:[%s4 + $0x600] sm:$0xff]
      %v562 = vld [vmem:[%s4 + $0x608] sm:$0xff]
      %v563 = vld [vmem:[%s4 + $0x610] sm:$0xff]
      %v564 = vld [vmem:[%s4 + $0x618] sm:$0xff]
      %v565 = vld [vmem:[%s4 + $0x620] sm:$0xff]
      %v566 = vld [vmem:[%s4 + $0x628] sm:$0xff]
      %v567 = vld [vmem:[%s4 + $0x6c0] sm:$0xff]
      %v568 = vld [vmem:[%s4 + $0x6c8] sm:$0xff]
      %v569 = vld [vmem:[%s4 + $0x6d0] sm:$0xff]
      %v570 = vld [vmem:[%s4 + $0x6d8] sm:$0xff]
      %v571 = vld [vmem:[%s4 + $0x6e0] sm:$0xff]
      %v572 = vld [vmem:[%s4 + $0x6e8] sm:$0xff]
      %v573 = vld [vmem:[%s4 + $0x780] sm:$0xff]
      %v574 = vld [vmem:[%s4 + $0x788] sm:$0xff]
      %v575 = vld [vmem:[%s4 + $0x790] sm:$0xff]
      %v576 = vld [vmem:[%s4 + $0x798] sm:$0xff]
      %v577 = vld [vmem:[%s4 + $0x7a0] sm:$0xff]
      %v578 = vld [vmem:[%s4 + $0x7a8] sm:$0xff]
      %v579 = vld [vmem:[%s4 + $0x840] sm:$0xff]
      %v580 = vld [vmem:[%s4 + $0x848] sm:$0xff]
      %v581 = vld [vmem:[%s4 + $0x850] sm:$0xff]
      %v582 = vld [vmem:[%s4 + $0x858] sm:$0xff]
      %v583 = vld [vmem:[%s4 + $0x860] sm:$0xff]
      %v584 = vld [vmem:[%s4 + $0x868] sm:$0xff]
      %v586 = vsel %vm365, %v511, 0
      %v589 = vsel %vm365, %v512, 0
      %591 = vmatprep.subr.mxu0 %v514
      %592 = vmatpush1.msra.mxu0 %v513
      %593 = vmatprep.subr.mxu0 %v520
      %594 = vmatpush1.msra.mxu0 %v519
      %595 = vmatprep.subr.mxu0 %v526
      %596 = vmatpush1.msra.mxu0 %v525
      %597 = vmatprep.subr.mxu0 %v532
      %598 = vmatpush1.msra.mxu0 %v531
      %599 = vmatprep.subr.mxu0 %v538
      %600 = vmatpush1.msra.mxu0 %v537
      %601 = vmatprep.subr.mxu0 %v544
      %602 = vmatpush1.msra.mxu0 %v543
      %603 = vmatprep.subr.mxu0 %v550
      %604 = vmatpush1.msra.mxu0 %v549
      %605 = vmatprep.subr.mxu0 %v556
      %606 = vmatpush1.msra.mxu0 %v555
      %607 = vmatprep.subr.mxu0 %v562
      %608 = vmatpush1.msra.mxu0 %v561
      %609 = vmatprep.subr.mxu0 %v568
      %610 = vmatpush1.msra.mxu0 %v567
      %611 = vmatprep.subr.mxu0 %v574
      %612 = vmatpush1.msra.mxu0 %v573
      %613 = vmatprep.subr.mxu0 %v580
      %614 = vmatpush1.msra.mxu0 %v579
      %615 = vmatprep.subr.mxu0 0.0
      %616 = vmatpush1.msra.mxu0 0.0
      %617 = vmatprep.subr.mxu0 0.0
      %618 = vmatpush1.msra.mxu0 0.0
      %619 = vmatprep.subr.mxu0 0.0
      %620 = vmatpush1.msra.mxu0 0.0
      %621 = vmatprep.subr.mxu0 0.0
      %622 = vmatpush1.msra.mxu0 0.0
      %623 = vmatprep.subr.mxu0 0.0
      %624 = vmatpush1.msra.mxu0 0.0
      %625 = vmatprep.subr.mxu0 0.0
      %626 = vmatpush1.msra.mxu0 0.0
      %627 = vmatprep.subr.mxu0 0.0
      %628 = vmatpush1.msra.mxu0 0.0
      %629 = vmatprep.subr.mxu0 0.0
      %630 = vmatpush1.msra.mxu0 0.0
      %631 = vmatprep.subr.mxu0 0.0
      %632 = vmatpush1.msra.mxu0 0.0
      %633 = vmatprep.subr.mxu0 0.0
      %634 = vmatpush1.msra.mxu0 0.0
      %635 = vmatprep.subr.mxu0 0.0
      %636 = vmatpush1.msra.mxu0 0.0
      %637 = vmatprep.subr.mxu0 0.0
      %638 = vmatpush1.msra.mxu0 0.0
      %639 = vmatprep.subr.mxu0 0.0
      %640 = vmatpush1.msra.mxu0 0.0
      %641 = vmatprep.subr.mxu0 0.0
      %642 = vmatpush1.msra.mxu0 0.0
      %643 = vmatprep.subr.mxu0 0.0
      %644 = vmatpush1.msra.mxu0 0.0
      %645 = vmatprep.subr.mxu0 0.0
      %646 = vmatpush1.msra.mxu0 0.0
      %647 = vmatprep.subr.mxu0 0.0
      %648 = vmatpush1.msra.mxu0 0.0
      %649 = vmatprep.subr.mxu0 0.0
      %650 = vmatpush1.msra.mxu0 0.0
      %651 = vmatprep.subr.mxu0 0.0
      %652 = vmatpush1.msra.mxu0 0.0
      %653 = vmatprep.subr.mxu0 0.0
      %654 = vmatpush1.msra.mxu0 0.0
      %655 = vmatprep.mubr.f32.mxu0 0.0
      %656 = vmatmul.mubr.f32.gmra.mrb[0].mxu0 %v586
      %v657 = vpop.f32.mrb[0].mxu0
      %v658 = vadd.f32 0.0, %v657
      %v659 = vpop.f32.mrb[0].mxu0
      %v660 = vadd.f32 0.0, %v659
      %661 = vmatprep.mubr.f32.mxu0 0.0
      %662 = vmatmul.mubr.f32.gmra.mrb[0].mxu0 %v589
      %v663 = vpop.f32.mrb[0].mxu0
      %v664 = vadd.f32 0.0, %v663
      %v665 = vpop.f32.mrb[0].mxu0
      %v666 = vadd.f32 0.0, %v665
      %667 = vdwg.mxu0
      %668 = vmatprep.subr.mxu0 %v516
      %669 = vmatpush1.msra.mxu0 %v515
      %670 = vmatprep.subr.mxu0 %v522
      %671 = vmatpush1.msra.mxu0 %v521
      %672 = vmatprep.subr.mxu0 %v528
      %673 = vmatpush1.msra.mxu0 %v527
      %674 = vmatprep.subr.mxu0 %v534
      %675 = vmatpush1.msra.mxu0 %v533
      %676 = vmatprep.subr.mxu0 %v540
      %677 = vmatpush1.msra.mxu0 %v539
      %678 = vmatprep.subr.mxu0 %v546
      %679 = vmatpush1.msra.mxu0 %v545
      %680 = vmatprep.subr.mxu0 %v552
      %681 = vmatpush1.msra.mxu0 %v551
      %682 = vmatprep.subr.mxu0 %v558
      %683 = vmatpush1.msra.mxu0 %v557
      %684 = vmatprep.subr.mxu0 %v564
      %685 = vmatpush1.msra.mxu0 %v563
      %686 = vmatprep.subr.mxu0 %v570
      %687 = vmatpush1.msra.mxu0 %v569
      %688 = vmatprep.subr.mxu0 %v576
      %689 = vmatpush1.msra.mxu0 %v575
      %690 = vmatprep.subr.mxu0 %v582
      %691 = vmatpush1.msra.mxu0 %v581
      %692 = vmatprep.subr.mxu0 0.0
      %693 = vmatpush1.msra.mxu0 0.0
      %694 = vmatprep.subr.mxu0 0.0
      %695 = vmatpush1.msra.mxu0 0.0
      %696 = vmatprep.subr.mxu0 0.0
      %697 = vmatpush1.msra.mxu0 0.0
      %698 = vmatprep.subr.mxu0 0.0
      %699 = vmatpush1.msra.mxu0 0.0
      %700 = vmatprep.subr.mxu0 0.0
      %701 = vmatpush1.msra.mxu0 0.0
      %702 = vmatprep.subr.mxu0 0.0
      %703 = vmatpush1.msra.mxu0 0.0
      %704 = vmatprep.subr.mxu0 0.0
      %705 = vmatpush1.msra.mxu0 0.0
      %706 = vmatprep.subr.mxu0 0.0
      %707 = vmatpush1.msra.mxu0 0.0
      %708 = vmatprep.subr.mxu0 0.0
      %709 = vmatpush1.msra.mxu0 0.0
      %710 = vmatprep.subr.mxu0 0.0
      %711 = vmatpush1.msra.mxu0 0.0
      %712 = vmatprep.subr.mxu0 0.0
      %713 = vmatpush1.msra.mxu0 0.0
      %714 = vmatprep.subr.mxu0 0.0
      %715 = vmatpush1.msra.mxu0 0.0
      %716 = vmatprep.subr.mxu0 0.0
      %717 = vmatpush1.msra.mxu0 0.0
      %718 = vmatprep.subr.mxu0 0.0
      %719 = vmatpush1.msra.mxu0 0.0
      %720 = vmatprep.subr.mxu0 0.0
      %721 = vmatpush1.msra.mxu0 0.0
      %722 = vmatprep.subr.mxu0 0.0
      %723 = vmatpush1.msra.mxu0 0.0
      %724 = vmatprep.subr.mxu0 0.0
      %725 = vmatpush1.msra.mxu0 0.0
      %726 = vmatprep.subr.mxu0 0.0
      %727 = vmatpush1.msra.mxu0 0.0
      %728 = vmatprep.subr.mxu0 0.0
      %729 = vmatpush1.msra.mxu0 0.0
      %730 = vmatprep.subr.mxu0 0.0
      %731 = vmatpush1.msra.mxu0 0.0
      %732 = vmatprep.mubr.f32.mxu0 0.0
      %733 = vmatmul.mubr.f32.gmra.mrb[0].mxu0 %v586
      %v734 = vpop.f32.mrb[0].mxu0
      %v735 = vadd.f32 0.0, %v734
      %v736 = vpop.f32.mrb[0].mxu0
      %v737 = vadd.f32 0.0, %v736
      %738 = vmatprep.mubr.f32.mxu0 0.0
      %739 = vmatmul.mubr.f32.gmra.mrb[0].mxu0 %v589
      %v740 = vpop.f32.mrb[0].mxu0
      %v741 = vadd.f32 0.0, %v740
      %v742 = vpop.f32.mrb[0].mxu0
      %v743 = vadd.f32 0.0, %v742
      %744 = vdwg.mxu0
      %745 = vmatprep.subr.mxu0 %v518
      %746 = vmatpush1.msra.mxu0 %v517
      %747 = vmatprep.subr.mxu0 %v524
      %748 = vmatpush1.msra.mxu0 %v523
      %749 = vmatprep.subr.mxu0 %v530
      %750 = vmatpush1.msra.mxu0 %v529
      %751 = vmatprep.subr.mxu0 %v536
      %752 = vmatpush1.msra.mxu0 %v535
      %753 = vmatprep.subr.mxu0 %v542
      %754 = vmatpush1.msra.mxu0 %v541
      %755 = vmatprep.subr.mxu0 %v548
      %756 = vmatpush1.msra.mxu0 %v547
      %757 = vmatprep.subr.mxu0 %v554
      %758 = vmatpush1.msra.mxu0 %v553
      %759 = vmatprep.subr.mxu0 %v560
      %760 = vmatpush1.msra.mxu0 %v559
      %761 = vmatprep.subr.mxu0 %v566
      %762 = vmatpush1.msra.mxu0 %v565
      %763 = vmatprep.subr.mxu0 %v572
      %764 = vmatpush1.msra.mxu0 %v571
      %765 = vmatprep.subr.mxu0 %v578
      %766 = vmatpush1.msra.mxu0 %v577
      %767 = vmatprep.subr.mxu0 %v584
      %768 = vmatpush1.msra.mxu0 %v583
      %769 = vmatprep.subr.mxu0 0.0
      %770 = vmatpush1.msra.mxu0 0.0
      %771 = vmatprep.subr.mxu0 0.0
      %772 = vmatpush1.msra.mxu0 0.0
      %773 = vmatprep.subr.mxu0 0.0
      %774 = vmatpush1.msra.mxu0 0.0
      %775 = vmatprep.subr.mxu0 0.0
      %776 = vmatpush1.msra.mxu0 0.0
      %777 = vmatprep.subr.mxu0 0.0
      %778 = vmatpush1.msra.mxu0 0.0
      %779 = vmatprep.subr.mxu0 0.0
      %780 = vmatpush1.msra.mxu0 0.0
      %781 = vmatprep.subr.mxu0 0.0
      %782 = vmatpush1.msra.mxu0 0.0
      %783 = vmatprep.subr.mxu0 0.0
      %784 = vmatpush1.msra.mxu0 0.0
      %785 = vmatprep.subr.mxu0 0.0
      %786 = vmatpush1.msra.mxu0 0.0
      %787 = vmatprep.subr.mxu0 0.0
      %788 = vmatpush1.msra.mxu0 0.0
      %789 = vmatprep.subr.mxu0 0.0
      %790 = vmatpush1.msra.mxu0 0.0
      %791 = vmatprep.subr.mxu0 0.0
      %792 = vmatpush1.msra.mxu0 0.0
      %793 = vmatprep.subr.mxu0 0.0
      %794 = vmatpush1.msra.mxu0 0.0
      %795 = vmatprep.subr.mxu0 0.0
      %796 = vmatpush1.msra.mxu0 0.0
      %797 = vmatprep.subr.mxu0 0.0
      %798 = vmatpush1.msra.mxu0 0.0
      %799 = vmatprep.subr.mxu0 0.0
      %800 = vmatpush1.msra.mxu0 0.0
      %801 = vmatprep.subr.mxu0 0.0
      %802 = vmatpush1.msra.mxu0 0.0
      %803 = vmatprep.subr.mxu0 0.0
      %804 = vmatpush1.msra.mxu0 0.0
      %805 = vmatprep.subr.mxu0 0.0
      %806 = vmatpush1.msra.mxu0 0.0
      %807 = vmatprep.subr.mxu0 0.0
      %808 = vmatpush1.msra.mxu0 0.0
      %809 = vmatprep.mubr.f32.mxu0 0.0
      %810 = vmatmul.mubr.f32.gmra.mrb[0].mxu0 %v586
      %v811 = vpop.f32.mrb[0].mxu0
      %v812 = vadd.f32 0.0, %v811
      %v813 = vpop.f32.mrb[0].mxu0
      %v814 = vadd.f32 0.0, %v813
      %815 = vmatprep.mubr.f32.mxu0 0.0
      %816 = vmatmul.mubr.f32.gmra.mrb[0].mxu0 %v589
      %v817 = vpop.f32.mrb[0].mxu0
      %v818 = vadd.f32 0.0, %v817
      %v819 = vpop.f32.mrb[0].mxu0
      %v820 = vadd.f32 0.0, %v819
      %821 = vdwg.mxu0
      %v822 = vld [vmem:[%s5] sm:$0xff]
      %v823 = vld [vmem:[%s5 + $0x8] sm:$0xff]
      %v824 = vld [vmem:[%s5 + $0x10] sm:$0xff]
      %v825 = vld [vmem:[%s5 + $0x18] sm:$0xff]
      %v826 = vld [vmem:[%s5 + $0x20] sm:$0x7]
      %v827 = vld [vmem:[%s4 + $0x30] sm:$0xff]
      %v828 = vld [vmem:[%s4 + $0x38] sm:$0xff]
      %v829 = vld [vmem:[%s4 + $0x40] sm:$0xff]
      %v830 = vld [vmem:[%s4 + $0x48] sm:$0xff]
      %v831 = vld [vmem:[%s4 + $0x50] sm:$0xff]
      %v832 = vld [vmem:[%s4 + $0x58] sm:$0xff]
      %v833 = vld [vmem:[%s4 + $0xf0] sm:$0xff]
      %v834 = vld [vmem:[%s4 + $0xf8] sm:$0xff]
      %v835 = vld [vmem:[%s4 + $0x100] sm:$0xff]
      %v836 = vld [vmem:[%s4 + $0x108] sm:$0xff]
      %v837 = vld [vmem:[%s4 + $0x110] sm:$0xff]
      %v838 = vld [vmem:[%s4 + $0x118] sm:$0xff]
      %v839 = vld [vmem:[%s4 + $0x1b0] sm:$0xff]
      %v840 = vld [vmem:[%s4 + $0x1b8] sm:$0xff]
      %v841 = vld [vmem:[%s4 + $0x1c0] sm:$0xff]
      %v842 = vld [vmem:[%s4 + $0x1c8] sm:$0xff]
      %v843 = vld [vmem:[%s4 + $0x1d0] sm:$0xff]
      %v844 = vld [vmem:[%s4 + $0x1d8] sm:$0xff]
      %v845 = vld [vmem:[%s4 + $0x270] sm:$0xff]
      %v846 = vld [vmem:[%s4 + $0x278] sm:$0xff]
      %v847 = vld [vmem:[%s4 + $0x280] sm:$0xff]
      %v848 = vld [vmem:[%s4 + $0x288] sm:$0xff]
      %v849 = vld [vmem:[%s4 + $0x290] sm:$0xff]
      %v850 = vld [vmem:[%s4 + $0x298] sm:$0xff]
      %v851 = vld [vmem:[%s4 + $0x330] sm:$0xff]
      %v852 = vld [vmem:[%s4 + $0x338] sm:$0xff]
      %v853 = vld [vmem:[%s4 + $0x340] sm:$0xff]
      %v854 = vld [vmem:[%s4 + $0x348] sm:$0xff]
      %v855 = vld [vmem:[%s4 + $0x350] sm:$0xff]
      %v856 = vld [vmem:[%s4 + $0x358] sm:$0xff]
      %v857 = vld [vmem:[%s4 + $0x3f0] sm:$0xff]
      %v858 = vld [vmem:[%s4 + $0x3f8] sm:$0xff]
      %v859 = vld [vmem:[%s4 + $0x400] sm:$0xff]
      %v860 = vld [vmem:[%s4 + $0x408] sm:$0xff]
      %v861 = vld [vmem:[%s4 + $0x410] sm:$0xff]
      %v862 = vld [vmem:[%s4 + $0x418] sm:$0xff]
      %v863 = vld [vmem:[%s4 + $0x4b0] sm:$0xff]
      %v864 = vld [vmem:[%s4 + $0x4b8] sm:$0xff]
      %v865 = vld [vmem:[%s4 + $0x4c0] sm:$0xff]
      %v866 = vld [vmem:[%s4 + $0x4c8] sm:$0xff]
      %v867 = vld [vmem:[%s4 + $0x4d0] sm:$0xff]
      %v868 = vld [vmem:[%s4 + $0x4d8] sm:$0xff]
      %v869 = vld [vmem:[%s4 + $0x570] sm:$0xff]
      %v870 = vld [vmem:[%s4 + $0x578] sm:$0xff]
      %v871 = vld [vmem:[%s4 + $0x580] sm:$0xff]
      %v872 = vld [vmem:[%s4 + $0x588] sm:$0xff]
      %v873 = vld [vmem:[%s4 + $0x590] sm:$0xff]
      %v874 = vld [vmem:[%s4 + $0x598] sm:$0xff]
      %v875 = vld [vmem:[%s4 + $0x630] sm:$0xff]
      %v876 = vld [vmem:[%s4 + $0x638] sm:$0xff]
      %v877 = vld [vmem:[%s4 + $0x640] sm:$0xff]
      %v878 = vld [vmem:[%s4 + $0x648] sm:$0xff]
      %v879 = vld [vmem:[%s4 + $0x650] sm:$0xff]
      %v880 = vld [vmem:[%s4 + $0x658] sm:$0xff]
      %v881 = vld [vmem:[%s4 + $0x6f0] sm:$0xff]
      %v882 = vld [vmem:[%s4 + $0x6f8] sm:$0xff]
      %v883 = vld [vmem:[%s4 + $0x700] sm:$0xff]
      %v884 = vld [vmem:[%s4 + $0x708] sm:$0xff]
      %v885 = vld [vmem:[%s4 + $0x710] sm:$0xff]
      %v886 = vld [vmem:[%s4 + $0x718] sm:$0xff]
      %v887 = vld [vmem:[%s4 + $0x7b0] sm:$0xff]
      %v888 = vld [vmem:[%s4 + $0x7b8] sm:$0xff]
      %v889 = vld [vmem:[%s4 + $0x7c0] sm:$0xff]
      %v890 = vld [vmem:[%s4 + $0x7c8] sm:$0xff]
      %v891 = vld [vmem:[%s4 + $0x7d0] sm:$0xff]
      %v892 = vld [vmem:[%s4 + $0x7d8] sm:$0xff]
      %v893 = vld [vmem:[%s4 + $0x870] sm:$0xff]
      %v894 = vld [vmem:[%s4 + $0x878] sm:$0xff]
      %v895 = vld [vmem:[%s4 + $0x880] sm:$0xff]
      %v896 = vld [vmem:[%s4 + $0x888] sm:$0xff]
      %v897 = vld [vmem:[%s4 + $0x890] sm:$0xff]
      %v898 = vld [vmem:[%s4 + $0x898] sm:$0xff]
      %899 = vmatprep.subr.mxu0 %v828
      %900 = vmatpush1.msra.mxu0 %v827
      %901 = vmatprep.subr.mxu0 %v834
      %902 = vmatpush1.msra.mxu0 %v833
      %903 = vmatprep.subr.mxu0 %v840
      %904 = vmatpush1.msra.mxu0 %v839
      %905 = vmatprep.subr.mxu0 %v846
      %906 = vmatpush1.msra.mxu0 %v845
      %907 = vmatprep.subr.mxu0 %v852
      %908 = vmatpush1.msra.mxu0 %v851
      %909 = vmatprep.subr.mxu0 %v858
      %910 = vmatpush1.msra.mxu0 %v857
      %911 = vmatprep.subr.mxu0 %v864
      %912 = vmatpush1.msra.mxu0 %v863
      %913 = vmatprep.subr.mxu0 %v870
      %914 = vmatpush1.msra.mxu0 %v869
      %915 = vmatprep.subr.mxu0 %v876
      %916 = vmatpush1.msra.mxu0 %v875
      %917 = vmatprep.subr.mxu0 %v882
      %918 = vmatpush1.msra.mxu0 %v881
      %919 = vmatprep.subr.mxu0 %v888
      %920 = vmatpush1.msra.mxu0 %v887
      %921 = vmatprep.subr.mxu0 %v894
      %922 = vmatpush1.msra.mxu0 %v893
      %923 = vmatprep.subr.mxu0 0.0
      %924 = vmatpush1.msra.mxu0 0.0
      %925 = vmatprep.subr.mxu0 0.0
      %926 = vmatpush1.msra.mxu0 0.0
      %927 = vmatprep.subr.mxu0 0.0
      %928 = vmatpush1.msra.mxu0 0.0
      %929 = vmatprep.subr.mxu0 0.0
      %930 = vmatpush1.msra.mxu0 0.0
      %931 = vmatprep.subr.mxu0 0.0
      %932 = vmatpush1.msra.mxu0 0.0
      %933 = vmatprep.subr.mxu0 0.0
      %934 = vmatpush1.msra.mxu0 0.0
      %935 = vmatprep.subr.mxu0 0.0
      %936 = vmatpush1.msra.mxu0 0.0
      %937 = vmatprep.subr.mxu0 0.0
      %938 = vmatpush1.msra.mxu0 0.0
      %939 = vmatprep.subr.mxu0 0.0
      %940 = vmatpush1.msra.mxu0 0.0
      %941 = vmatprep.subr.mxu0 0.0
      %942 = vmatpush1.msra.mxu0 0.0
      %943 = vmatprep.subr.mxu0 0.0
      %944 = vmatpush1.msra.mxu0 0.0
      %945 = vmatprep.subr.mxu0 0.0
      %946 = vmatpush1.msra.mxu0 0.0
      %947 = vmatprep.subr.mxu0 0.0
      %948 = vmatpush1.msra.mxu0 0.0
      %949 = vmatprep.subr.mxu0 0.0
      %950 = vmatpush1.msra.mxu0 0.0
      %951 = vmatprep.subr.mxu0 0.0
      %952 = vmatpush1.msra.mxu0 0.0
      %953 = vmatprep.subr.mxu0 0.0
      %954 = vmatpush1.msra.mxu0 0.0
      %955 = vmatprep.subr.mxu0 0.0
      %956 = vmatpush1.msra.mxu0 0.0
      %957 = vmatprep.subr.mxu0 0.0
      %958 = vmatpush1.msra.mxu0 0.0
      %959 = vmatprep.subr.mxu0 0.0
      %960 = vmatpush1.msra.mxu0 0.0
      %961 = vmatprep.subr.mxu0 0.0
      %962 = vmatpush1.msra.mxu0 0.0
      %963 = vmatprep.mubr.f32.mxu0 0.0
      %964 = vmatmul.mubr.f32.gmra.mrb[0].mxu0 %v586
      %v965 = vpop.f32.mrb[0].mxu0
      %v966 = vadd.f32 0.0, %v965
      %v967 = vpop.f32.mrb[0].mxu0
      %v968 = vadd.f32 0.0, %v967
      %969 = vmatprep.mubr.f32.mxu0 0.0
      %970 = vmatmul.mubr.f32.gmra.mrb[0].mxu0 %v589
      %v971 = vpop.f32.mrb[0].mxu0
      %v972 = vadd.f32 0.0, %v971
      %v973 = vpop.f32.mrb[0].mxu0
      %v974 = vadd.f32 0.0, %v973
      %975 = vdwg.mxu0
      %976 = vmatprep.subr.mxu0 %v830
      %977 = vmatpush1.msra.mxu0 %v829
      %978 = vmatprep.subr.mxu0 %v836
      %979 = vmatpush1.msra.mxu0 %v835
      %980 = vmatprep.subr.mxu0 %v842
      %981 = vmatpush1.msra.mxu0 %v841
      %982 = vmatprep.subr.mxu0 %v848
      %983 = vmatpush1.msra.mxu0 %v847
      %984 = vmatprep.subr.mxu0 %v854
      %985 = vmatpush1.msra.mxu0 %v853
      %986 = vmatprep.subr.mxu0 %v860
      %987 = vmatpush1.msra.mxu0 %v859
      %988 = vmatprep.subr.mxu0 %v866
      %989 = vmatpush1.msra.mxu0 %v865
      %990 = vmatprep.subr.mxu0 %v872
      %991 = vmatpush1.msra.mxu0 %v871
      %992 = vmatprep.subr.mxu0 %v878
      %993 = vmatpush1.msra.mxu0 %v877
      %994 = vmatprep.subr.mxu0 %v884
      %995 = vmatpush1.msra.mxu0 %v883
      %996 = vmatprep.subr.mxu0 %v890
      %997 = vmatpush1.msra.mxu0 %v889
      %998 = vmatprep.subr.mxu0 %v896
      %999 = vmatpush1.msra.mxu0 %v895
      %1000 = vmatprep.subr.mxu0 0.0
      %1001 = vmatpush1.msra.mxu0 0.0
      %1002 = vmatprep.subr.mxu0 0.0
      %1003 = vmatpush1.msra.mxu0 0.0
      %1004 = vmatprep.subr.mxu0 0.0
      %1005 = vmatpush1.msra.mxu0 0.0
      %1006 = vmatprep.subr.mxu0 0.0
      %1007 = vmatpush1.msra.mxu0 0.0
      %1008 = vmatprep.subr.mxu0 0.0
      %1009 = vmatpush1.msra.mxu0 0.0
      %1010 = vmatprep.subr.mxu0 0.0
      %1011 = vmatpush1.msra.mxu0 0.0
      %1012 = vmatprep.subr.mxu0 0.0
      %1013 = vmatpush1.msra.mxu0 0.0
      %1014 = vmatprep.subr.mxu0 0.0
      %1015 = vmatpush1.msra.mxu0 0.0
      %1016 = vmatprep.subr.mxu0 0.0
      %1017 = vmatpush1.msra.mxu0 0.0
      %1018 = vmatprep.subr.mxu0 0.0
      %1019 = vmatpush1.msra.mxu0 0.0
      %1020 = vmatprep.subr.mxu0 0.0
      %1021 = vmatpush1.msra.mxu0 0.0
      %1022 = vmatprep.subr.mxu0 0.0
      %1023 = vmatpush1.msra.mxu0 0.0
      %1024 = vmatprep.subr.mxu0 0.0
      %1025 = vmatpush1.msra.mxu0 0.0
      %1026 = vmatprep.subr.mxu0 0.0
      %1027 = vmatpush1.msra.mxu0 0.0
      %1028 = vmatprep.subr.mxu0 0.0
      %1029 = vmatpush1.msra.mxu0 0.0
      %1030 = vmatprep.subr.mxu0 0.0
      %1031 = vmatpush1.msra.mxu0 0.0
      %1032 = vmatprep.subr.mxu0 0.0
      %1033 = vmatpush1.msra.mxu0 0.0
      %1034 = vmatprep.subr.mxu0 0.0
      %1035 = vmatpush1.msra.mxu0 0.0
      %1036 = vmatprep.subr.mxu0 0.0
      %1037 = vmatpush1.msra.mxu0 0.0
      %1038 = vmatprep.subr.mxu0 0.0
      %1039 = vmatpush1.msra.mxu0 0.0
      %1040 = vmatprep.mubr.f32.mxu0 0.0
      %1041 = vmatmul.mubr.f32.gmra.mrb[0].mxu0 %v586
      %v1042 = vpop.f32.mrb[0].mxu0
      %v1043 = vadd.f32 0.0, %v1042
      %v1044 = vpop.f32.mrb[0].mxu0
      %v1045 = vadd.f32 0.0, %v1044
      %1046 = vmatprep.mubr.f32.mxu0 0.0
      %1047 = vmatmul.mubr.f32.gmra.mrb[0].mxu0 %v589
      %v1048 = vpop.f32.mrb[0].mxu0
      %v1049 = vadd.f32 0.0, %v1048
      %v1050 = vpop.f32.mrb[0].mxu0
      %v1051 = vadd.f32 0.0, %v1050
      %1052 = vdwg.mxu0
      %1053 = vmatprep.subr.mxu0 %v832
      %1054 = vmatpush1.msra.mxu0 %v831
      %1055 = vmatprep.subr.mxu0 %v838
      %1056 = vmatpush1.msra.mxu0 %v837
      %1057 = vmatprep.subr.mxu0 %v844
      %1058 = vmatpush1.msra.mxu0 %v843
      %1059 = vmatprep.subr.mxu0 %v850
      %1060 = vmatpush1.msra.mxu0 %v849
      %1061 = vmatprep.subr.mxu0 %v856
      %1062 = vmatpush1.msra.mxu0 %v855
      %1063 = vmatprep.subr.mxu0 %v862
      %1064 = vmatpush1.msra.mxu0 %v861
      %1065 = vmatprep.subr.mxu0 %v868
      %1066 = vmatpush1.msra.mxu0 %v867
      %1067 = vmatprep.subr.mxu0 %v874
      %1068 = vmatpush1.msra.mxu0 %v873
      %1069 = vmatprep.subr.mxu0 %v880
      %1070 = vmatpush1.msra.mxu0 %v879
      %1071 = vmatprep.subr.mxu0 %v886
      %1072 = vmatpush1.msra.mxu0 %v885
      %1073 = vmatprep.subr.mxu0 %v892
      %1074 = vmatpush1.msra.mxu0 %v891
      %1075 = vmatprep.subr.mxu0 %v898
      %1076 = vmatpush1.msra.mxu0 %v897
      %1077 = vmatprep.subr.mxu0 0.0
      %1078 = vmatpush1.msra.mxu0 0.0
      %1079 = vmatprep.subr.mxu0 0.0
      %1080 = vmatpush1.msra.mxu0 0.0
      %1081 = vmatprep.subr.mxu0 0.0
      %1082 = vmatpush1.msra.mxu0 0.0
      %1083 = vmatprep.subr.mxu0 0.0
      %1084 = vmatpush1.msra.mxu0 0.0
      %1085 = vmatprep.subr.mxu0 0.0
      %1086 = vmatpush1.msra.mxu0 0.0
      %1087 = vmatprep.subr.mxu0 0.0
      %1088 = vmatpush1.msra.mxu0 0.0
      %1089 = vmatprep.subr.mxu0 0.0
      %1090 = vmatpush1.msra.mxu0 0.0
      %1091 = vmatprep.subr.mxu0 0.0
      %1092 = vmatpush1.msra.mxu0 0.0
      %1093 = vmatprep.subr.mxu0 0.0
      %1094 = vmatpush1.msra.mxu0 0.0
      %1095 = vmatprep.subr.mxu0 0.0
      %1096 = vmatpush1.msra.mxu0 0.0
      %1097 = vmatprep.subr.mxu0 0.0
      %1098 = vmatpush1.msra.mxu0 0.0
      %1099 = vmatprep.subr.mxu0 0.0
      %1100 = vmatpush1.msra.mxu0 0.0
      %1101 = vmatprep.subr.mxu0 0.0
      %1102 = vmatpush1.msra.mxu0 0.0
      %1103 = vmatprep.subr.mxu0 0.0
      %1104 = vmatpush1.msra.mxu0 0.0
      %1105 = vmatprep.subr.mxu0 0.0
      %1106 = vmatpush1.msra.mxu0 0.0
      %1107 = vmatprep.subr.mxu0 0.0
      %1108 = vmatpush1.msra.mxu0 0.0
      %1109 = vmatprep.subr.mxu0 0.0
      %1110 = vmatpush1.msra.mxu0 0.0
      %1111 = vmatprep.subr.mxu0 0.0
      %1112 = vmatpush1.msra.mxu0 0.0
      %1113 = vmatprep.subr.mxu0 0.0
      %1114 = vmatpush1.msra.mxu0 0.0
      %1115 = vmatprep.subr.mxu0 0.0
      %1116 = vmatpush1.msra.mxu0 0.0
      %1117 = vmatprep.mubr.f32.mxu0 0.0
      %1118 = vmatmul.mubr.f32.gmra.mrb[0].mxu0 %v586
      %v1119 = vpop.f32.mrb[0].mxu0
      %v1120 = vadd.f32 0.0, %v1119
      %v1121 = vpop.f32.mrb[0].mxu0
      %v1122 = vadd.f32 0.0, %v1121
      %1123 = vmatprep.mubr.f32.mxu0 0.0
      %1124 = vmatmul.mubr.f32.gmra.mrb[0].mxu0 %v589
      %v1125 = vpop.f32.mrb[0].mxu0
      %v1126 = vadd.f32 0.0, %v1125
      %v1127 = vpop.f32.mrb[0].mxu0
      %v1128 = vadd.f32 0.0, %v1127
      %1129 = vdwg.mxu0
      %s1130 = scalar_lea.vmem %s5, 40
      %v1131 = vld [vmem:[%s1130] sm:$0xff]
      %v1132 = vld [vmem:[%s1130 + $0x8] sm:$0xff]
      %v1133 = vld [vmem:[%s1130 + $0x10] sm:$0xff]
      %v1134 = vld [vmem:[%s1130 + $0x18] sm:$0xff]
      %v1135 = vld [vmem:[%s1130 + $0x20] sm:$0x7]
      %vm1136 = vcmask 130048
      %v1138 = vsel %vm1136, %v1131, 0
      %v1141 = vsel %vm1136, %v1132, 0
      %v1144 = vsel %vm1136, %v1133, 0
      %v1147 = vsel %vm1136, %v1134, 0
      %v1150 = vsel %vm1136, %v1135, 0
      %1152 = vmatprep.subr.mxu0 %v968
      %1153 = vmatpush1.msra.mxu0 %v966
      %1154 = vmatprep.subr.mxu0 %v974
      %1155 = vmatpush1.msra.mxu0 %v972
      %1156 = vmatprep.subr.mxu0 0.0
      %1157 = vmatpush1.msra.mxu0 0.0
      %1158 = vmatprep.subr.mxu0 0.0
      %1159 = vmatpush1.msra.mxu0 0.0
      %1160 = vmatprep.subr.mxu0 0.0
      %1161 = vmatpush1.msra.mxu0 0.0
      %1162 = vmatprep.subr.mxu0 0.0
      %1163 = vmatpush1.msra.mxu0 0.0
      %1164 = vmatprep.subr.mxu0 0.0
      %1165 = vmatpush1.msra.mxu0 0.0
      %1166 = vmatprep.subr.mxu0 0.0
      %1167 = vmatpush1.msra.mxu0 0.0
      %1168 = vmatprep.subr.mxu0 0.0
      %1169 = vmatpush1.msra.mxu0 0.0
      %1170 = vmatprep.subr.mxu0 0.0
      %1171 = vmatpush1.msra.mxu0 0.0
      %1172 = vmatprep.subr.mxu0 0.0
      %1173 = vmatpush1.msra.mxu0 0.0
      %1174 = vmatprep.subr.mxu0 0.0
      %1175 = vmatpush1.msra.mxu0 0.0
      %1176 = vmatprep.subr.mxu0 0.0
      %1177 = vmatpush1.msra.mxu0 0.0
      %1178 = vmatprep.subr.mxu0 0.0
      %1179 = vmatpush1.msra.mxu0 0.0
      %1180 = vmatprep.subr.mxu0 0.0
      %1181 = vmatpush1.msra.mxu0 0.0
      %1182 = vmatprep.subr.mxu0 0.0
      %1183 = vmatpush1.msra.mxu0 0.0
      %1184 = vmatprep.subr.mxu0 0.0
      %1185 = vmatpush1.msra.mxu0 0.0
      %1186 = vmatprep.subr.mxu0 0.0
      %1187 = vmatpush1.msra.mxu0 0.0
      %1188 = vmatprep.subr.mxu0 0.0
      %1189 = vmatpush1.msra.mxu0 0.0
      %1190 = vmatprep.subr.mxu0 0.0
      %1191 = vmatpush1.msra.mxu0 0.0
      %1192 = vmatprep.subr.mxu0 0.0
      %1193 = vmatpush1.msra.mxu0 0.0
      %1194 = vmatprep.subr.mxu0 0.0
      %1195 = vmatpush1.msra.mxu0 0.0
      %1196 = vmatprep.subr.mxu0 0.0
      %1197 = vmatpush1.msra.mxu0 0.0
      %1198 = vmatprep.subr.mxu0 0.0
      %1199 = vmatpush1.msra.mxu0 0.0
      %1200 = vmatprep.subr.mxu0 0.0
      %1201 = vmatpush1.msra.mxu0 0.0
      %1202 = vmatprep.subr.mxu0 0.0
      %1203 = vmatpush1.msra.mxu0 0.0
      %1204 = vmatprep.subr.mxu0 0.0
      %1205 = vmatpush1.msra.mxu0 0.0
      %1206 = vmatprep.subr.mxu0 0.0
      %1207 = vmatpush1.msra.mxu0 0.0
      %1208 = vmatprep.subr.mxu0 0.0
      %1209 = vmatpush1.msra.mxu0 0.0
      %1210 = vmatprep.subr.mxu0 0.0
      %1211 = vmatpush1.msra.mxu0 0.0
      %1212 = vmatprep.subr.mxu0 0.0
      %1213 = vmatpush1.msra.mxu0 0.0
      %1214 = vmatprep.subr.mxu0 0.0
      %1215 = vmatpush1.msra.mxu0 0.0
      %1216 = vmatprep.mubr.f32.mxu0 0.0
      %1217 = vmatmul.mubr.f32.gmra.mrb[0].mxu0 %v1138
      %v1218 = vpop.f32.mrb[0].mxu0
      %v1219 = vadd.f32 0.0, %v1218
      %v1220 = vpop.f32.mrb[0].mxu0
      %v1221 = vadd.f32 0.0, %v1220
      %1222 = vmatprep.mubr.f32.mxu0 0.0
      %1223 = vmatmul.mubr.f32.gmra.mrb[0].mxu0 %v1141
      %v1224 = vpop.f32.mrb[0].mxu0
      %v1225 = vadd.f32 0.0, %v1224
      %v1226 = vpop.f32.mrb[0].mxu0
      %v1227 = vadd.f32 0.0, %v1226
      %1228 = vmatprep.mubr.f32.mxu0 0.0
      %1229 = vmatmul.mubr.f32.gmra.mrb[0].mxu0 %v1144
      %v1230 = vpop.f32.mrb[0].mxu0
      %v1231 = vadd.f32 0.0, %v1230
      %v1232 = vpop.f32.mrb[0].mxu0
      %v1233 = vadd.f32 0.0, %v1232
      %1234 = vmatprep.mubr.f32.mxu0 0.0
      %1235 = vmatmul.mubr.f32.gmra.mrb[0].mxu0 %v1147
      %v1236 = vpop.f32.mrb[0].mxu0
      %v1237 = vadd.f32 0.0, %v1236
      %v1238 = vpop.f32.mrb[0].mxu0
      %v1239 = vadd.f32 0.0, %v1238
      %1240 = vmatprep.mubr.f32.mxu0 0.0
      %1241 = vmatmul.mubr.f32.gmra.mrb[0].mxu0 %v1150
      %v1242 = vpop.f32.mrb[0].mxu0
      %v1243 = vadd.f32 0.0, %v1242
      %v1244 = vpop.f32.mrb[0].mxu0
      %v1245 = vadd.f32 0.0, %v1244
      %1246 = vdwg.mxu0
      %1247 = vmatprep.subr.mxu0 %v1045
      %1248 = vmatpush1.msra.mxu0 %v1043
      %1249 = vmatprep.subr.mxu0 %v1051
      %1250 = vmatpush1.msra.mxu0 %v1049
      %1251 = vmatprep.subr.mxu0 0.0
      %1252 = vmatpush1.msra.mxu0 0.0
      %1253 = vmatprep.subr.mxu0 0.0
      %1254 = vmatpush1.msra.mxu0 0.0
      %1255 = vmatprep.subr.mxu0 0.0
      %1256 = vmatpush1.msra.mxu0 0.0
      %1257 = vmatprep.subr.mxu0 0.0
      %1258 = vmatpush1.msra.mxu0 0.0
      %1259 = vmatprep.subr.mxu0 0.0
      %1260 = vmatpush1.msra.mxu0 0.0
      %1261 = vmatprep.subr.mxu0 0.0
      %1262 = vmatpush1.msra.mxu0 0.0
      %1263 = vmatprep.subr.mxu0 0.0
      %1264 = vmatpush1.msra.mxu0 0.0
      %1265 = vmatprep.subr.mxu0 0.0
      %1266 = vmatpush1.msra.mxu0 0.0
      %1267 = vmatprep.subr.mxu0 0.0
      %1268 = vmatpush1.msra.mxu0 0.0
      %1269 = vmatprep.subr.mxu0 0.0
      %1270 = vmatpush1.msra.mxu0 0.0
      %1271 = vmatprep.subr.mxu0 0.0
      %1272 = vmatpush1.msra.mxu0 0.0
      %1273 = vmatprep.subr.mxu0 0.0
      %1274 = vmatpush1.msra.mxu0 0.0
      %1275 = vmatprep.subr.mxu0 0.0
      %1276 = vmatpush1.msra.mxu0 0.0
      %1277 = vmatprep.subr.mxu0 0.0
      %1278 = vmatpush1.msra.mxu0 0.0
      %1279 = vmatprep.subr.mxu0 0.0
      %1280 = vmatpush1.msra.mxu0 0.0
      %1281 = vmatprep.subr.mxu0 0.0
      %1282 = vmatpush1.msra.mxu0 0.0
      %1283 = vmatprep.subr.mxu0 0.0
      %1284 = vmatpush1.msra.mxu0 0.0
      %1285 = vmatprep.subr.mxu0 0.0
      %1286 = vmatpush1.msra.mxu0 0.0
      %1287 = vmatprep.subr.mxu0 0.0
      %1288 = vmatpush1.msra.mxu0 0.0
      %1289 = vmatprep.subr.mxu0 0.0
      %1290 = vmatpush1.msra.mxu0 0.0
      %1291 = vmatprep.subr.mxu0 0.0
      %1292 = vmatpush1.msra.mxu0 0.0
      %1293 = vmatprep.subr.mxu0 0.0
      %1294 = vmatpush1.msra.mxu0 0.0
      %1295 = vmatprep.subr.mxu0 0.0
      %1296 = vmatpush1.msra.mxu0 0.0
      %1297 = vmatprep.subr.mxu0 0.0
      %1298 = vmatpush1.msra.mxu0 0.0
      %1299 = vmatprep.subr.mxu0 0.0
      %1300 = vmatpush1.msra.mxu0 0.0
      %1301 = vmatprep.subr.mxu0 0.0
      %1302 = vmatpush1.msra.mxu0 0.0
      %1303 = vmatprep.subr.mxu0 0.0
      %1304 = vmatpush1.msra.mxu0 0.0
      %1305 = vmatprep.subr.mxu0 0.0
      %1306 = vmatpush1.msra.mxu0 0.0
      %1307 = vmatprep.subr.mxu0 0.0
      %1308 = vmatpush1.msra.mxu0 0.0
      %1309 = vmatprep.subr.mxu0 0.0
      %1310 = vmatpush1.msra.mxu0 0.0
      %1311 = vmatprep.mubr.f32.mxu0 0.0
      %1312 = vmatmul.mubr.f32.gmra.mrb[0].mxu0 %v1138
      %v1313 = vpop.f32.mrb[0].mxu0
      %v1314 = vadd.f32 0.0, %v1313
      %v1315 = vpop.f32.mrb[0].mxu0
      %v1316 = vadd.f32 0.0, %v1315
      %1317 = vmatprep.mubr.f32.mxu0 0.0
      %1318 = vmatmul.mubr.f32.gmra.mrb[0].mxu0 %v1141
      %v1319 = vpop.f32.mrb[0].mxu0
      %v1320 = vadd.f32 0.0, %v1319
      %v1321 = vpop.f32.mrb[0].mxu0
      %v1322 = vadd.f32 0.0, %v1321
      %1323 = vmatprep.mubr.f32.mxu0 0.0
      %1324 = vmatmul.mubr.f32.gmra.mrb[0].mxu0 %v1144
      %v1325 = vpop.f32.mrb[0].mxu0
      %v1326 = vadd.f32 0.0, %v1325
      %v1327 = vpop.f32.mrb[0].mxu0
      %v1328 = vadd.f32 0.0, %v1327
      %1329 = vmatprep.mubr.f32.mxu0 0.0
      %1330 = vmatmul.mubr.f32.gmra.mrb[0].mxu0 %v1147
      %v1331 = vpop.f32.mrb[0].mxu0
      %v1332 = vadd.f32 0.0, %v1331
      %v1333 = vpop.f32.mrb[0].mxu0
      %v1334 = vadd.f32 0.0, %v1333
      %1335 = vmatprep.mubr.f32.mxu0 0.0
      %1336 = vmatmul.mubr.f32.gmra.mrb[0].mxu0 %v1150
      %v1337 = vpop.f32.mrb[0].mxu0
      %v1338 = vadd.f32 0.0, %v1337
      %v1339 = vpop.f32.mrb[0].mxu0
      %v1340 = vadd.f32 0.0, %v1339
      %1341 = vdwg.mxu0
      %1342 = vmatprep.subr.mxu0 %v1122
      %1343 = vmatpush1.msra.mxu0 %v1120
      %1344 = vmatprep.subr.mxu0 %v1128
      %1345 = vmatpush1.msra.mxu0 %v1126
      %1346 = vmatprep.subr.mxu0 0.0
      %1347 = vmatpush1.msra.mxu0 0.0
      %1348 = vmatprep.subr.mxu0 0.0
      %1349 = vmatpush1.msra.mxu0 0.0
      %1350 = vmatprep.subr.mxu0 0.0
      %1351 = vmatpush1.msra.mxu0 0.0
      %1352 = vmatprep.subr.mxu0 0.0
      %1353 = vmatpush1.msra.mxu0 0.0
      %1354 = vmatprep.subr.mxu0 0.0
      %1355 = vmatpush1.msra.mxu0 0.0
      %1356 = vmatprep.subr.mxu0 0.0
      %1357 = vmatpush1.msra.mxu0 0.0
      %1358 = vmatprep.subr.mxu0 0.0
      %1359 = vmatpush1.msra.mxu0 0.0
      %1360 = vmatprep.subr.mxu0 0.0
      %1361 = vmatpush1.msra.mxu0 0.0
      %1362 = vmatprep.subr.mxu0 0.0
      %1363 = vmatpush1.msra.mxu0 0.0
      %1364 = vmatprep.subr.mxu0 0.0
      %1365 = vmatpush1.msra.mxu0 0.0
      %1366 = vmatprep.subr.mxu0 0.0
      %1367 = vmatpush1.msra.mxu0 0.0
      %1368 = vmatprep.subr.mxu0 0.0
      %1369 = vmatpush1.msra.mxu0 0.0
      %1370 = vmatprep.subr.mxu0 0.0
      %1371 = vmatpush1.msra.mxu0 0.0
      %1372 = vmatprep.subr.mxu0 0.0
      %1373 = vmatpush1.msra.mxu0 0.0
      %1374 = vmatprep.subr.mxu0 0.0
      %1375 = vmatpush1.msra.mxu0 0.0
      %1376 = vmatprep.subr.mxu0 0.0
      %1377 = vmatpush1.msra.mxu0 0.0
      %1378 = vmatprep.subr.mxu0 0.0
      %1379 = vmatpush1.msra.mxu0 0.0
      %1380 = vmatprep.subr.mxu0 0.0
      %1381 = vmatpush1.msra.mxu0 0.0
      %1382 = vmatprep.subr.mxu0 0.0
      %1383 = vmatpush1.msra.mxu0 0.0
      %1384 = vmatprep.subr.mxu0 0.0
      %1385 = vmatpush1.msra.mxu0 0.0
      %1386 = vmatprep.subr.mxu0 0.0
      %1387 = vmatpush1.msra.mxu0 0.0
      %1388 = vmatprep.subr.mxu0 0.0
      %1389 = vmatpush1.msra.mxu0 0.0
      %1390 = vmatprep.subr.mxu0 0.0
      %1391 = vmatpush1.msra.mxu0 0.0
      %1392 = vmatprep.subr.mxu0 0.0
      %1393 = vmatpush1.msra.mxu0 0.0
      %1394 = vmatprep.subr.mxu0 0.0
      %1395 = vmatpush1.msra.mxu0 0.0
      %1396 = vmatprep.subr.mxu0 0.0
      %1397 = vmatpush1.msra.mxu0 0.0
      %1398 = vmatprep.subr.mxu0 0.0
      %1399 = vmatpush1.msra.mxu0 0.0
      %1400 = vmatprep.subr.mxu0 0.0
      %1401 = vmatpush1.msra.mxu0 0.0
      %1402 = vmatprep.subr.mxu0 0.0
      %1403 = vmatpush1.msra.mxu0 0.0
      %1404 = vmatprep.subr.mxu0 0.0
      %1405 = vmatpush1.msra.mxu0 0.0
      %1406 = vmatprep.mubr.f32.mxu0 0.0
      %1407 = vmatmul.mubr.f32.gmra.mrb[0].mxu0 %v1138
      %v1408 = vpop.f32.mrb[0].mxu0
      %v1409 = vadd.f32 0.0, %v1408
      %v1410 = vpop.f32.mrb[0].mxu0
      %v1411 = vadd.f32 0.0, %v1410
      %1412 = vmatprep.mubr.f32.mxu0 0.0
      %1413 = vmatmul.mubr.f32.gmra.mrb[0].mxu0 %v1141
      %v1414 = vpop.f32.mrb[0].mxu0
      %v1415 = vadd.f32 0.0, %v1414
      %v1416 = vpop.f32.mrb[0].mxu0
      %v1417 = vadd.f32 0.0, %v1416
      %1418 = vmatprep.mubr.f32.mxu0 0.0
      %1419 = vmatmul.mubr.f32.gmra.mrb[0].mxu0 %v1144
      %v1420 = vpop.f32.mrb[0].mxu0
      %v1421 = vadd.f32 0.0, %v1420
      %v1422 = vpop.f32.mrb[0].mxu0
      %v1423 = vadd.f32 0.0, %v1422
      %1424 = vmatprep.mubr.f32.mxu0 0.0
      %1425 = vmatmul.mubr.f32.gmra.mrb[0].mxu0 %v1147
      %v1426 = vpop.f32.mrb[0].mxu0
      %v1427 = vadd.f32 0.0, %v1426
      %v1428 = vpop.f32.mrb[0].mxu0
      %v1429 = vadd.f32 0.0, %v1428
      %1430 = vmatprep.mubr.f32.mxu0 0.0
      %1431 = vmatmul.mubr.f32.gmra.mrb[0].mxu0 %v1150
      %v1432 = vpop.f32.mrb[0].mxu0
      %v1433 = vadd.f32 0.0, %v1432
      %v1434 = vpop.f32.mrb[0].mxu0
      %v1435 = vadd.f32 0.0, %v1434
      %1436 = vdwg.mxu0
      %v1438 = vsel %vm1136, %v822, 0
      %v1441 = vsel %vm1136, %v823, 0
      %v1444 = vsel %vm1136, %v824, 0
      %v1447 = vsel %vm1136, %v825, 0
      %v1450 = vsel %vm1136, %v826, 0
      %1452 = vmatprep.subr.mxu0 %v660
      %1453 = vmatpush1.msra.mxu0 %v658
      %1454 = vmatprep.subr.mxu0 %v666
      %1455 = vmatpush1.msra.mxu0 %v664
      %1456 = vmatprep.subr.mxu0 0.0
      %1457 = vmatpush1.msra.mxu0 0.0
      %1458 = vmatprep.subr.mxu0 0.0
      %1459 = vmatpush1.msra.mxu0 0.0
      %1460 = vmatprep.subr.mxu0 0.0
      %1461 = vmatpush1.msra.mxu0 0.0
      %1462 = vmatprep.subr.mxu0 0.0
      %1463 = vmatpush1.msra.mxu0 0.0
      %1464 = vmatprep.subr.mxu0 0.0
      %1465 = vmatpush1.msra.mxu0 0.0
      %1466 = vmatprep.subr.mxu0 0.0
      %1467 = vmatpush1.msra.mxu0 0.0
      %1468 = vmatprep.subr.mxu0 0.0
      %1469 = vmatpush1.msra.mxu0 0.0
      %1470 = vmatprep.subr.mxu0 0.0
      %1471 = vmatpush1.msra.mxu0 0.0
      %1472 = vmatprep.subr.mxu0 0.0
      %1473 = vmatpush1.msra.mxu0 0.0
      %1474 = vmatprep.subr.mxu0 0.0
      %1475 = vmatpush1.msra.mxu0 0.0
      %1476 = vmatprep.subr.mxu0 0.0
      %1477 = vmatpush1.msra.mxu0 0.0
      %1478 = vmatprep.subr.mxu0 0.0
      %1479 = vmatpush1.msra.mxu0 0.0
      %1480 = vmatprep.subr.mxu0 0.0
      %1481 = vmatpush1.msra.mxu0 0.0
      %1482 = vmatprep.subr.mxu0 0.0
      %1483 = vmatpush1.msra.mxu0 0.0
      %1484 = vmatprep.subr.mxu0 0.0
      %1485 = vmatpush1.msra.mxu0 0.0
      %1486 = vmatprep.subr.mxu0 0.0
      %1487 = vmatpush1.msra.mxu0 0.0
      %1488 = vmatprep.subr.mxu0 0.0
      %1489 = vmatpush1.msra.mxu0 0.0
      %1490 = vmatprep.subr.mxu0 0.0
      %1491 = vmatpush1.msra.mxu0 0.0
      %1492 = vmatprep.subr.mxu0 0.0
      %1493 = vmatpush1.msra.mxu0 0.0
      %1494 = vmatprep.subr.mxu0 0.0
      %1495 = vmatpush1.msra.mxu0 0.0
      %1496 = vmatprep.subr.mxu0 0.0
      %1497 = vmatpush1.msra.mxu0 0.0
      %1498 = vmatprep.subr.mxu0 0.0
      %1499 = vmatpush1.msra.mxu0 0.0
      %1500 = vmatprep.subr.mxu0 0.0
      %1501 = vmatpush1.msra.mxu0 0.0
      %1502 = vmatprep.subr.mxu0 0.0
      %1503 = vmatpush1.msra.mxu0 0.0
      %1504 = vmatprep.subr.mxu0 0.0
      %1505 = vmatpush1.msra.mxu0 0.0
      %1506 = vmatprep.subr.mxu0 0.0
      %1507 = vmatpush1.msra.mxu0 0.0
      %1508 = vmatprep.subr.mxu0 0.0
      %1509 = vmatpush1.msra.mxu0 0.0
      %1510 = vmatprep.subr.mxu0 0.0
      %1511 = vmatpush1.msra.mxu0 0.0
      %1512 = vmatprep.subr.mxu0 0.0
      %1513 = vmatpush1.msra.mxu0 0.0
      %1514 = vmatprep.subr.mxu0 0.0
      %1515 = vmatpush1.msra.mxu0 0.0
      %1516 = vmatprep.mubr.f32.mxu0 0.0
      %1517 = vmatmul.mubr.f32.gmra.mrb[0].mxu0 %v1438
      %v1518 = vpop.f32.mrb[0].mxu0
      %v1519 = vadd.f32 %v1219, %v1518
      %v1520 = vpop.f32.mrb[0].mxu0
      %v1521 = vadd.f32 %v1221, %v1520
      %1522 = vmatprep.mubr.f32.mxu0 0.0
      %1523 = vmatmul.mubr.f32.gmra.mrb[0].mxu0 %v1441
      %v1524 = vpop.f32.mrb[0].mxu0
      %v1525 = vadd.f32 %v1225, %v1524
      %v1526 = vpop.f32.mrb[0].mxu0
      %v1527 = vadd.f32 %v1227, %v1526
      %1528 = vmatprep.mubr.f32.mxu0 0.0
      %1529 = vmatmul.mubr.f32.gmra.mrb[0].mxu0 %v1444
      %v1530 = vpop.f32.mrb[0].mxu0
      %v1531 = vadd.f32 %v1231, %v1530
      %v1532 = vpop.f32.mrb[0].mxu0
      %v1533 = vadd.f32 %v1233, %v1532
      %1534 = vmatprep.mubr.f32.mxu0 0.0
      %1535 = vmatmul.mubr.f32.gmra.mrb[0].mxu0 %v1447
      %v1536 = vpop.f32.mrb[0].mxu0
      %v1537 = vadd.f32 %v1237, %v1536
      %v1538 = vpop.f32.mrb[0].mxu0
      %v1539 = vadd.f32 %v1239, %v1538
      %1540 = vmatprep.mubr.f32.mxu0 0.0
      %1541 = vmatmul.mubr.f32.gmra.mrb[0].mxu0 %v1450
      %v1542 = vpop.f32.mrb[0].mxu0
      %v1543 = vadd.f32 %v1243, %v1542
      %v1544 = vpop.f32.mrb[0].mxu0
      %v1545 = vadd.f32 %v1245, %v1544
      %1546 = vdwg.mxu0
      %1547 = vmatprep.subr.mxu0 %v737
      %1548 = vmatpush1.msra.mxu0 %v735
      %1549 = vmatprep.subr.mxu0 %v743
      %1550 = vmatpush1.msra.mxu0 %v741
      %1551 = vmatprep.subr.mxu0 0.0
      %1552 = vmatpush1.msra.mxu0 0.0
      %1553 = vmatprep.subr.mxu0 0.0
      %1554 = vmatpush1.msra.mxu0 0.0
      %1555 = vmatprep.subr.mxu0 0.0
      %1556 = vmatpush1.msra.mxu0 0.0
      %1557 = vmatprep.subr.mxu0 0.0
      %1558 = vmatpush1.msra.mxu0 0.0
      %1559 = vmatprep.subr.mxu0 0.0
      %1560 = vmatpush1.msra.mxu0 0.0
      %1561 = vmatprep.subr.mxu0 0.0
      %1562 = vmatpush1.msra.mxu0 0.0
      %1563 = vmatprep.subr.mxu0 0.0
      %1564 = vmatpush1.msra.mxu0 0.0
      %1565 = vmatprep.subr.mxu0 0.0
      %1566 = vmatpush1.msra.mxu0 0.0
      %1567 = vmatprep.subr.mxu0 0.0
      %1568 = vmatpush1.msra.mxu0 0.0
      %1569 = vmatprep.subr.mxu0 0.0
      %1570 = vmatpush1.msra.mxu0 0.0
      %1571 = vmatprep.subr.mxu0 0.0
      %1572 = vmatpush1.msra.mxu0 0.0
      %1573 = vmatprep.subr.mxu0 0.0
      %1574 = vmatpush1.msra.mxu0 0.0
      %1575 = vmatprep.subr.mxu0 0.0
      %1576 = vmatpush1.msra.mxu0 0.0
      %1577 = vmatprep.subr.mxu0 0.0
      %1578 = vmatpush1.msra.mxu0 0.0
      %1579 = vmatprep.subr.mxu0 0.0
      %1580 = vmatpush1.msra.mxu0 0.0
      %1581 = vmatprep.subr.mxu0 0.0
      %1582 = vmatpush1.msra.mxu0 0.0
      %1583 = vmatprep.subr.mxu0 0.0
      %1584 = vmatpush1.msra.mxu0 0.0
      %1585 = vmatprep.subr.mxu0 0.0
      %1586 = vmatpush1.msra.mxu0 0.0
      %1587 = vmatprep.subr.mxu0 0.0
      %1588 = vmatpush1.msra.mxu0 0.0
      %1589 = vmatprep.subr.mxu0 0.0
      %1590 = vmatpush1.msra.mxu0 0.0
      %1591 = vmatprep.subr.mxu0 0.0
      %1592 = vmatpush1.msra.mxu0 0.0
      %1593 = vmatprep.subr.mxu0 0.0
      %1594 = vmatpush1.msra.mxu0 0.0
      %1595 = vmatprep.subr.mxu0 0.0
      %1596 = vmatpush1.msra.mxu0 0.0
      %1597 = vmatprep.subr.mxu0 0.0
      %1598 = vmatpush1.msra.mxu0 0.0
      %1599 = vmatprep.subr.mxu0 0.0
      %1600 = vmatpush1.msra.mxu0 0.0
      %1601 = vmatprep.subr.mxu0 0.0
      %1602 = vmatpush1.msra.mxu0 0.0
      %1603 = vmatprep.subr.mxu0 0.0
      %1604 = vmatpush1.msra.mxu0 0.0
      %1605 = vmatprep.subr.mxu0 0.0
      %1606 = vmatpush1.msra.mxu0 0.0
      %1607 = vmatprep.subr.mxu0 0.0
      %1608 = vmatpush1.msra.mxu0 0.0
      %1609 = vmatprep.subr.mxu0 0.0
      %1610 = vmatpush1.msra.mxu0 0.0
      %1611 = vmatprep.mubr.f32.mxu0 0.0
      %1612 = vmatmul.mubr.f32.gmra.mrb[0].mxu0 %v1438
      %v1613 = vpop.f32.mrb[0].mxu0
      %v1614 = vadd.f32 %v1314, %v1613
      %v1615 = vpop.f32.mrb[0].mxu0
      %v1616 = vadd.f32 %v1316, %v1615
      %1617 = vmatprep.mubr.f32.mxu0 0.0
      %1618 = vmatmul.mubr.f32.gmra.mrb[0].mxu0 %v1441
      %v1619 = vpop.f32.mrb[0].mxu0
      %v1620 = vadd.f32 %v1320, %v1619
      %v1621 = vpop.f32.mrb[0].mxu0
      %v1622 = vadd.f32 %v1322, %v1621
      %1623 = vmatprep.mubr.f32.mxu0 0.0
      %1624 = vmatmul.mubr.f32.gmra.mrb[0].mxu0 %v1444
      %v1625 = vpop.f32.mrb[0].mxu0
      %v1626 = vadd.f32 %v1326, %v1625
      %v1627 = vpop.f32.mrb[0].mxu0
      %v1628 = vadd.f32 %v1328, %v1627
      %1629 = vmatprep.mubr.f32.mxu0 0.0
      %1630 = vmatmul.mubr.f32.gmra.mrb[0].mxu0 %v1447
      %v1631 = vpop.f32.mrb[0].mxu0
      %v1632 = vadd.f32 %v1332, %v1631
      %v1633 = vpop.f32.mrb[0].mxu0
      %v1634 = vadd.f32 %v1334, %v1633
      %1635 = vmatprep.mubr.f32.mxu0 0.0
      %1636 = vmatmul.mubr.f32.gmra.mrb[0].mxu0 %v1450
      %v1637 = vpop.f32.mrb[0].mxu0
      %v1638 = vadd.f32 %v1338, %v1637
      %v1639 = vpop.f32.mrb[0].mxu0
      %v1640 = vadd.f32 %v1340, %v1639
      %1641 = vdwg.mxu0
      %1642 = vmatprep.subr.mxu0 %v814
      %1643 = vmatpush1.msra.mxu0 %v812
      %1644 = vmatprep.subr.mxu0 %v820
      %1645 = vmatpush1.msra.mxu0 %v818
      %1646 = vmatprep.subr.mxu0 0.0
      %1647 = vmatpush1.msra.mxu0 0.0
      %1648 = vmatprep.subr.mxu0 0.0
      %1649 = vmatpush1.msra.mxu0 0.0
      %1650 = vmatprep.subr.mxu0 0.0
      %1651 = vmatpush1.msra.mxu0 0.0
      %1652 = vmatprep.subr.mxu0 0.0
      %1653 = vmatpush1.msra.mxu0 0.0
      %1654 = vmatprep.subr.mxu0 0.0
      %1655 = vmatpush1.msra.mxu0 0.0
      %1656 = vmatprep.subr.mxu0 0.0
      %1657 = vmatpush1.msra.mxu0 0.0
      %1658 = vmatprep.subr.mxu0 0.0
      %1659 = vmatpush1.msra.mxu0 0.0
      %1660 = vmatprep.subr.mxu0 0.0
      %1661 = vmatpush1.msra.mxu0 0.0
      %1662 = vmatprep.subr.mxu0 0.0
      %1663 = vmatpush1.msra.mxu0 0.0
      %1664 = vmatprep.subr.mxu0 0.0
      %1665 = vmatpush1.msra.mxu0 0.0
      %1666 = vmatprep.subr.mxu0 0.0
      %1667 = vmatpush1.msra.mxu0 0.0
      %1668 = vmatprep.subr.mxu0 0.0
      %1669 = vmatpush1.msra.mxu0 0.0
      %1670 = vmatprep.subr.mxu0 0.0
      %1671 = vmatpush1.msra.mxu0 0.0
      %1672 = vmatprep.subr.mxu0 0.0
      %1673 = vmatpush1.msra.mxu0 0.0
      %1674 = vmatprep.subr.mxu0 0.0
      %1675 = vmatpush1.msra.mxu0 0.0
      %1676 = vmatprep.subr.mxu0 0.0
      %1677 = vmatpush1.msra.mxu0 0.0
      %1678 = vmatprep.subr.mxu0 0.0
      %1679 = vmatpush1.msra.mxu0 0.0
      %1680 = vmatprep.subr.mxu0 0.0
      %1681 = vmatpush1.msra.mxu0 0.0
      %1682 = vmatprep.subr.mxu0 0.0
      %1683 = vmatpush1.msra.mxu0 0.0
      %1684 = vmatprep.subr.mxu0 0.0
      %1685 = vmatpush1.msra.mxu0 0.0
      %1686 = vmatprep.subr.mxu0 0.0
      %1687 = vmatpush1.msra.mxu0 0.0
      %1688 = vmatprep.subr.mxu0 0.0
      %1689 = vmatpush1.msra.mxu0 0.0
      %1690 = vmatprep.subr.mxu0 0.0
      %1691 = vmatpush1.msra.mxu0 0.0
      %1692 = vmatprep.subr.mxu0 0.0
      %1693 = vmatpush1.msra.mxu0 0.0
      %1694 = vmatprep.subr.mxu0 0.0
      %1695 = vmatpush1.msra.mxu0 0.0
      %1696 = vmatprep.subr.mxu0 0.0
      %1697 = vmatpush1.msra.mxu0 0.0
      %1698 = vmatprep.subr.mxu0 0.0
      %1699 = vmatpush1.msra.mxu0 0.0
      %1700 = vmatprep.subr.mxu0 0.0
      %1701 = vmatpush1.msra.mxu0 0.0
      %1702 = vmatprep.subr.mxu0 0.0
      %1703 = vmatpush1.msra.mxu0 0.0
      %1704 = vmatprep.subr.mxu0 0.0
      %1705 = vmatpush1.msra.mxu0 0.0
      %1706 = vmatprep.mubr.f32.mxu0 0.0
      %1707 = vmatmul.mubr.f32.gmra.mrb[0].mxu0 %v1438
      %v1708 = vpop.f32.mrb[0].mxu0
      %v1709 = vadd.f32 %v1409, %v1708
      %v1710 = vpop.f32.mrb[0].mxu0
      %v1711 = vadd.f32 %v1411, %v1710
      %1712 = vmatprep.mubr.f32.mxu0 0.0
      %1713 = vmatmul.mubr.f32.gmra.mrb[0].mxu0 %v1441
      %v1714 = vpop.f32.mrb[0].mxu0
      %v1715 = vadd.f32 %v1415, %v1714
      %v1716 = vpop.f32.mrb[0].mxu0
      %v1717 = vadd.f32 %v1417, %v1716
      %1718 = vmatprep.mubr.f32.mxu0 0.0
      %1719 = vmatmul.mubr.f32.gmra.mrb[0].mxu0 %v1444
      %v1720 = vpop.f32.mrb[0].mxu0
      %v1721 = vadd.f32 %v1421, %v1720
      %v1722 = vpop.f32.mrb[0].mxu0
      %v1723 = vadd.f32 %v1423, %v1722
      %1724 = vmatprep.mubr.f32.mxu0 0.0
      %1725 = vmatmul.mubr.f32.gmra.mrb[0].mxu0 %v1447
      %v1726 = vpop.f32.mrb[0].mxu0
      %v1727 = vadd.f32 %v1427, %v1726
      %v1728 = vpop.f32.mrb[0].mxu0
      %v1729 = vadd.f32 %v1429, %v1728
      %1730 = vmatprep.mubr.f32.mxu0 0.0
      %1731 = vmatmul.mubr.f32.gmra.mrb[0].mxu0 %v1450
      %v1732 = vpop.f32.mrb[0].mxu0
      %v1733 = vadd.f32 %v1433, %v1732
      %v1734 = vpop.f32.mrb[0].mxu0
      %v1735 = vadd.f32 %v1435, %v1734
      %1736 = vdwg.mxu0
      %v1737 = vld [vmem:[%s4 + $0x60] sm:$0xff]
      %v1738 = vld [vmem:[%s4 + $0x68] sm:$0xff]
      %v1739 = vld [vmem:[%s4 + $0x70] sm:$0xff]
      %v1740 = vld [vmem:[%s4 + $0x78] sm:$0xff]
      %v1741 = vld [vmem:[%s4 + $0x80] sm:$0xff]
      %v1742 = vld [vmem:[%s4 + $0x88] sm:$0xff]
      %v1743 = vld [vmem:[%s4 + $0x120] sm:$0xff]
      %v1744 = vld [vmem:[%s4 + $0x128] sm:$0xff]
      %v1745 = vld [vmem:[%s4 + $0x130] sm:$0xff]
      %v1746 = vld [vmem:[%s4 + $0x138] sm:$0xff]
      %v1747 = vld [vmem:[%s4 + $0x140] sm:$0xff]
      %v1748 = vld [vmem:[%s4 + $0x148] sm:$0xff]
      %v1749 = vld [vmem:[%s4 + $0x1e0] sm:$0xff]
      %v1750 = vld [vmem:[%s4 + $0x1e8] sm:$0xff]
      %v1751 = vld [vmem:[%s4 + $0x1f0] sm:$0xff]
      %v1752 = vld [vmem:[%s4 + $0x1f8] sm:$0xff]
      %v1753 = vld [vmem:[%s4 + $0x200] sm:$0xff]
      %v1754 = vld [vmem:[%s4 + $0x208] sm:$0xff]
      %v1755 = vld [vmem:[%s4 + $0x2a0] sm:$0xff]
      %v1756 = vld [vmem:[%s4 + $0x2a8] sm:$0xff]
      %v1757 = vld [vmem:[%s4 + $0x2b0] sm:$0xff]
      %v1758 = vld [vmem:[%s4 + $0x2b8] sm:$0xff]
      %v1759 = vld [vmem:[%s4 + $0x2c0] sm:$0xff]
      %v1760 = vld [vmem:[%s4 + $0x2c8] sm:$0xff]
      %v1761 = vld [vmem:[%s4 + $0x360] sm:$0xff]
      %v1762 = vld [vmem:[%s4 + $0x368] sm:$0xff]
      %v1763 = vld [vmem:[%s4 + $0x370] sm:$0xff]
      %v1764 = vld [vmem:[%s4 + $0x378] sm:$0xff]
      %v1765 = vld [vmem:[%s4 + $0x380] sm:$0xff]
      %v1766 = vld [vmem:[%s4 + $0x388] sm:$0xff]
      %v1767 = vld [vmem:[%s4 + $0x420] sm:$0xff]
      %v1768 = vld [vmem:[%s4 + $0x428] sm:$0xff]
      %v1769 = vld [vmem:[%s4 + $0x430] sm:$0xff]
      %v1770 = vld [vmem:[%s4 + $0x438] sm:$0xff]
      %v1771 = vld [vmem:[%s4 + $0x440] sm:$0xff]
      %v1772 = vld [vmem:[%s4 + $0x448] sm:$0xff]
      %v1773 = vld [vmem:[%s4 + $0x4e0] sm:$0xff]
      %v1774 = vld [vmem:[%s4 + $0x4e8] sm:$0xff]
      %v1775 = vld [vmem:[%s4 + $0x4f0] sm:$0xff]
      %v1776 = vld [vmem:[%s4 + $0x4f8] sm:$0xff]
      %v1777 = vld [vmem:[%s4 + $0x500] sm:$0xff]
      %v1778 = vld [vmem:[%s4 + $0x508] sm:$0xff]
      %v1779 = vld [vmem:[%s4 + $0x5a0] sm:$0xff]
      %v1780 = vld [vmem:[%s4 + $0x5a8] sm:$0xff]
      %v1781 = vld [vmem:[%s4 + $0x5b0] sm:$0xff]
      %v1782 = vld [vmem:[%s4 + $0x5b8] sm:$0xff]
      %v1783 = vld [vmem:[%s4 + $0x5c0] sm:$0xff]
      %v1784 = vld [vmem:[%s4 + $0x5c8] sm:$0xff]
      %v1785 = vld [vmem:[%s4 + $0x660] sm:$0xff]
      %v1786 = vld [vmem:[%s4 + $0x668] sm:$0xff]
      %v1787 = vld [vmem:[%s4 + $0x670] sm:$0xff]
      %v1788 = vld [vmem:[%s4 + $0x678] sm:$0xff]
      %v1789 = vld [vmem:[%s4 + $0x680] sm:$0xff]
      %v1790 = vld [vmem:[%s4 + $0x688] sm:$0xff]
      %v1791 = vld [vmem:[%s4 + $0x720] sm:$0xff]
      %v1792 = vld [vmem:[%s4 + $0x728] sm:$0xff]
      %v1793 = vld [vmem:[%s4 + $0x730] sm:$0xff]
      %v1794 = vld [vmem:[%s4 + $0x738] sm:$0xff]
      %v1795 = vld [vmem:[%s4 + $0x740] sm:$0xff]
      %v1796 = vld [vmem:[%s4 + $0x748] sm:$0xff]
      %v1797 = vld [vmem:[%s4 + $0x7e0] sm:$0xff]
      %v1798 = vld [vmem:[%s4 + $0x7e8] sm:$0xff]
      %v1799 = vld [vmem:[%s4 + $0x7f0] sm:$0xff]
      %v1800 = vld [vmem:[%s4 + $0x7f8] sm:$0xff]
      %v1801 = vld [vmem:[%s4 + $0x800] sm:$0xff]
      %v1802 = vld [vmem:[%s4 + $0x808] sm:$0xff]
      %v1803 = vld [vmem:[%s4 + $0x8a0] sm:$0xff]
      %v1804 = vld [vmem:[%s4 + $0x8a8] sm:$0xff]
      %v1805 = vld [vmem:[%s4 + $0x8b0] sm:$0xff]
      %v1806 = vld [vmem:[%s4 + $0x8b8] sm:$0xff]
      %v1807 = vld [vmem:[%s4 + $0x8c0] sm:$0xff]
      %v1808 = vld [vmem:[%s4 + $0x8c8] sm:$0xff]
      %1809 = vmatprep.subr.mxu0 %v1738
      %1810 = vmatpush1.msra.mxu0 %v1737
      %1811 = vmatprep.subr.mxu0 %v1744
      %1812 = vmatpush1.msra.mxu0 %v1743
      %1813 = vmatprep.subr.mxu0 %v1750
      %1814 = vmatpush1.msra.mxu0 %v1749
      %1815 = vmatprep.subr.mxu0 %v1756
      %1816 = vmatpush1.msra.mxu0 %v1755
      %1817 = vmatprep.subr.mxu0 %v1762
      %1818 = vmatpush1.msra.mxu0 %v1761
      %1819 = vmatprep.subr.mxu0 %v1768
      %1820 = vmatpush1.msra.mxu0 %v1767
      %1821 = vmatprep.subr.mxu0 %v1774
      %1822 = vmatpush1.msra.mxu0 %v1773
      %1823 = vmatprep.subr.mxu0 %v1780
      %1824 = vmatpush1.msra.mxu0 %v1779
      %1825 = vmatprep.subr.mxu0 %v1786
      %1826 = vmatpush1.msra.mxu0 %v1785
      %1827 = vmatprep.subr.mxu0 %v1792
      %1828 = vmatpush1.msra.mxu0 %v1791
      %1829 = vmatprep.subr.mxu0 %v1798
      %1830 = vmatpush1.msra.mxu0 %v1797
      %1831 = vmatprep.subr.mxu0 %v1804
      %1832 = vmatpush1.msra.mxu0 %v1803
      %1833 = vmatprep.subr.mxu0 0.0
      %1834 = vmatpush1.msra.mxu0 0.0
      %1835 = vmatprep.subr.mxu0 0.0
      %1836 = vmatpush1.msra.mxu0 0.0
      %1837 = vmatprep.subr.mxu0 0.0
      %1838 = vmatpush1.msra.mxu0 0.0
      %1839 = vmatprep.subr.mxu0 0.0
      %1840 = vmatpush1.msra.mxu0 0.0
      %1841 = vmatprep.subr.mxu0 0.0
      %1842 = vmatpush1.msra.mxu0 0.0
      %1843 = vmatprep.subr.mxu0 0.0
      %1844 = vmatpush1.msra.mxu0 0.0
      %1845 = vmatprep.subr.mxu0 0.0
      %1846 = vmatpush1.msra.mxu0 0.0
      %1847 = vmatprep.subr.mxu0 0.0
      %1848 = vmatpush1.msra.mxu0 0.0
      %1849 = vmatprep.subr.mxu0 0.0
      %1850 = vmatpush1.msra.mxu0 0.0
      %1851 = vmatprep.subr.mxu0 0.0
      %1852 = vmatpush1.msra.mxu0 0.0
      %1853 = vmatprep.subr.mxu0 0.0
      %1854 = vmatpush1.msra.mxu0 0.0
      %1855 = vmatprep.subr.mxu0 0.0
      %1856 = vmatpush1.msra.mxu0 0.0
      %1857 = vmatprep.subr.mxu0 0.0
      %1858 = vmatpush1.msra.mxu0 0.0
      %1859 = vmatprep.subr.mxu0 0.0
      %1860 = vmatpush1.msra.mxu0 0.0
      %1861 = vmatprep.subr.mxu0 0.0
      %1862 = vmatpush1.msra.mxu0 0.0
      %1863 = vmatprep.subr.mxu0 0.0
      %1864 = vmatpush1.msra.mxu0 0.0
      %1865 = vmatprep.subr.mxu0 0.0
      %1866 = vmatpush1.msra.mxu0 0.0
      %1867 = vmatprep.subr.mxu0 0.0
      %1868 = vmatpush1.msra.mxu0 0.0
      %1869 = vmatprep.subr.mxu0 0.0
      %1870 = vmatpush1.msra.mxu0 0.0
      %1871 = vmatprep.subr.mxu0 0.0
      %1872 = vmatpush1.msra.mxu0 0.0
      %1873 = vmatprep.mubr.f32.mxu0 0.0
      %1874 = vmatmul.mubr.f32.gmra.mrb[0].mxu0 %v586
      %v1875 = vpop.f32.mrb[0].mxu0
      %v1876 = vadd.f32 0.0, %v1875
      %v1877 = vpop.f32.mrb[0].mxu0
      %v1878 = vadd.f32 0.0, %v1877
      %1879 = vmatprep.mubr.f32.mxu0 0.0
      %1880 = vmatmul.mubr.f32.gmra.mrb[0].mxu0 %v589
      %v1881 = vpop.f32.mrb[0].mxu0
      %v1882 = vadd.f32 0.0, %v1881
      %v1883 = vpop.f32.mrb[0].mxu0
      %v1884 = vadd.f32 0.0, %v1883
      %1885 = vdwg.mxu0
      %1886 = vmatprep.subr.mxu0 %v1740
      %1887 = vmatpush1.msra.mxu0 %v1739
      %1888 = vmatprep.subr.mxu0 %v1746
      %1889 = vmatpush1.msra.mxu0 %v1745
      %1890 = vmatprep.subr.mxu0 %v1752
      %1891 = vmatpush1.msra.mxu0 %v1751
      %1892 = vmatprep.subr.mxu0 %v1758
      %1893 = vmatpush1.msra.mxu0 %v1757
      %1894 = vmatprep.subr.mxu0 %v1764
      %1895 = vmatpush1.msra.mxu0 %v1763
      %1896 = vmatprep.subr.mxu0 %v1770
      %1897 = vmatpush1.msra.mxu0 %v1769
      %1898 = vmatprep.subr.mxu0 %v1776
      %1899 = vmatpush1.msra.mxu0 %v1775
      %1900 = vmatprep.subr.mxu0 %v1782
      %1901 = vmatpush1.msra.mxu0 %v1781
      %1902 = vmatprep.subr.mxu0 %v1788
      %1903 = vmatpush1.msra.mxu0 %v1787
      %1904 = vmatprep.subr.mxu0 %v1794
      %1905 = vmatpush1.msra.mxu0 %v1793
      %1906 = vmatprep.subr.mxu0 %v1800
      %1907 = vmatpush1.msra.mxu0 %v1799
      %1908 = vmatprep.subr.mxu0 %v1806
      %1909 = vmatpush1.msra.mxu0 %v1805
      %1910 = vmatprep.subr.mxu0 0.0
      %1911 = vmatpush1.msra.mxu0 0.0
      %1912 = vmatprep.subr.mxu0 0.0
      %1913 = vmatpush1.msra.mxu0 0.0
      %1914 = vmatprep.subr.mxu0 0.0
      %1915 = vmatpush1.msra.mxu0 0.0
      %1916 = vmatprep.subr.mxu0 0.0
      %1917 = vmatpush1.msra.mxu0 0.0
      %1918 = vmatprep.subr.mxu0 0.0
      %1919 = vmatpush1.msra.mxu0 0.0
      %1920 = vmatprep.subr.mxu0 0.0
      %1921 = vmatpush1.msra.mxu0 0.0
      %1922 = vmatprep.subr.mxu0 0.0
      %1923 = vmatpush1.msra.mxu0 0.0
      %1924 = vmatprep.subr.mxu0 0.0
      %1925 = vmatpush1.msra.mxu0 0.0
      %1926 = vmatprep.subr.mxu0 0.0
      %1927 = vmatpush1.msra.mxu0 0.0
      %1928 = vmatprep.subr.mxu0 0.0
      %1929 = vmatpush1.msra.mxu0 0.0
      %1930 = vmatprep.subr.mxu0 0.0
      %1931 = vmatpush1.msra.mxu0 0.0
      %1932 = vmatprep.subr.mxu0 0.0
      %1933 = vmatpush1.msra.mxu0 0.0
      %1934 = vmatprep.subr.mxu0 0.0
      %1935 = vmatpush1.msra.mxu0 0.0
      %1936 = vmatprep.subr.mxu0 0.0
      %1937 = vmatpush1.msra.mxu0 0.0
      %1938 = vmatprep.subr.mxu0 0.0
      %1939 = vmatpush1.msra.mxu0 0.0
      %1940 = vmatprep.subr.mxu0 0.0
      %1941 = vmatpush1.msra.mxu0 0.0
      %1942 = vmatprep.subr.mxu0 0.0
      %1943 = vmatpush1.msra.mxu0 0.0
      %1944 = vmatprep.subr.mxu0 0.0
      %1945 = vmatpush1.msra.mxu0 0.0
      %1946 = vmatprep.subr.mxu0 0.0
      %1947 = vmatpush1.msra.mxu0 0.0
      %1948 = vmatprep.subr.mxu0 0.0
      %1949 = vmatpush1.msra.mxu0 0.0
      %1950 = vmatprep.mubr.f32.mxu0 0.0
      %1951 = vmatmul.mubr.f32.gmra.mrb[0].mxu0 %v586
      %v1952 = vpop.f32.mrb[0].mxu0
      %v1953 = vadd.f32 0.0, %v1952
      %v1954 = vpop.f32.mrb[0].mxu0
      %v1955 = vadd.f32 0.0, %v1954
      %1956 = vmatprep.mubr.f32.mxu0 0.0
      %1957 = vmatmul.mubr.f32.gmra.mrb[0].mxu0 %v589
      %v1958 = vpop.f32.mrb[0].mxu0
      %v1959 = vadd.f32 0.0, %v1958
      %v1960 = vpop.f32.mrb[0].mxu0
      %v1961 = vadd.f32 0.0, %v1960
      %1962 = vdwg.mxu0
      %1963 = vmatprep.subr.mxu0 %v1742
      %1964 = vmatpush1.msra.mxu0 %v1741
      %1965 = vmatprep.subr.mxu0 %v1748
      %1966 = vmatpush1.msra.mxu0 %v1747
      %1967 = vmatprep.subr.mxu0 %v1754
      %1968 = vmatpush1.msra.mxu0 %v1753
      %1969 = vmatprep.subr.mxu0 %v1760
      %1970 = vmatpush1.msra.mxu0 %v1759
      %1971 = vmatprep.subr.mxu0 %v1766
      %1972 = vmatpush1.msra.mxu0 %v1765
      %1973 = vmatprep.subr.mxu0 %v1772
      %1974 = vmatpush1.msra.mxu0 %v1771
      %1975 = vmatprep.subr.mxu0 %v1778
      %1976 = vmatpush1.msra.mxu0 %v1777
      %1977 = vmatprep.subr.mxu0 %v1784
      %1978 = vmatpush1.msra.mxu0 %v1783
      %1979 = vmatprep.subr.mxu0 %v1790
      %1980 = vmatpush1.msra.mxu0 %v1789
      %1981 = vmatprep.subr.mxu0 %v1796
      %1982 = vmatpush1.msra.mxu0 %v1795
      %1983 = vmatprep.subr.mxu0 %v1802
      %1984 = vmatpush1.msra.mxu0 %v1801
      %1985 = vmatprep.subr.mxu0 %v1808
      %1986 = vmatpush1.msra.mxu0 %v1807
      %1987 = vmatprep.subr.mxu0 0.0
      %1988 = vmatpush1.msra.mxu0 0.0
      %1989 = vmatprep.subr.mxu0 0.0
      %1990 = vmatpush1.msra.mxu0 0.0
      %1991 = vmatprep.subr.mxu0 0.0
      %1992 = vmatpush1.msra.mxu0 0.0
      %1993 = vmatprep.subr.mxu0 0.0
      %1994 = vmatpush1.msra.mxu0 0.0
      %1995 = vmatprep.subr.mxu0 0.0
      %1996 = vmatpush1.msra.mxu0 0.0
      %1997 = vmatprep.subr.mxu0 0.0
      %1998 = vmatpush1.msra.mxu0 0.0
      %1999 = vmatprep.subr.mxu0 0.0
      %2000 = vmatpush1.msra.mxu0 0.0
      %2001 = vmatprep.subr.mxu0 0.0
      %2002 = vmatpush1.msra.mxu0 0.0
      %2003 = vmatprep.subr.mxu0 0.0
      %2004 = vmatpush1.msra.mxu0 0.0
      %2005 = vmatprep.subr.mxu0 0.0
      %2006 = vmatpush1.msra.mxu0 0.0
      %2007 = vmatprep.subr.mxu0 0.0
      %2008 = vmatpush1.msra.mxu0 0.0
      %2009 = vmatprep.subr.mxu0 0.0
      %2010 = vmatpush1.msra.mxu0 0.0
      %2011 = vmatprep.subr.mxu0 0.0
      %2012 = vmatpush1.msra.mxu0 0.0
      %2013 = vmatprep.subr.mxu0 0.0
      %2014 = vmatpush1.msra.mxu0 0.0
      %2015 = vmatprep.subr.mxu0 0.0
      %2016 = vmatpush1.msra.mxu0 0.0
      %2017 = vmatprep.subr.mxu0 0.0
      %2018 = vmatpush1.msra.mxu0 0.0
      %2019 = vmatprep.subr.mxu0 0.0
      %2020 = vmatpush1.msra.mxu0 0.0
      %2021 = vmatprep.subr.mxu0 0.0
      %2022 = vmatpush1.msra.mxu0 0.0
      %2023 = vmatprep.subr.mxu0 0.0
      %2024 = vmatpush1.msra.mxu0 0.0
      %2025 = vmatprep.subr.mxu0 0.0
      %2026 = vmatpush1.msra.mxu0 0.0
      %2027 = vmatprep.mubr.f32.mxu0 0.0
      %2028 = vmatmul.mubr.f32.gmra.mrb[0].mxu0 %v586
      %v2029 = vpop.f32.mrb[0].mxu0
      %v2030 = vadd.f32 0.0, %v2029
      %v2031 = vpop.f32.mrb[0].mxu0
      %v2032 = vadd.f32 0.0, %v2031
      %2033 = vmatprep.mubr.f32.mxu0 0.0
      %2034 = vmatmul.mubr.f32.gmra.mrb[0].mxu0 %v589
      %v2035 = vpop.f32.mrb[0].mxu0
      %v2036 = vadd.f32 0.0, %v2035
      %v2037 = vpop.f32.mrb[0].mxu0
      %v2038 = vadd.f32 0.0, %v2037
      %2039 = vdwg.mxu0
      %s2040 = scalar_lea.vmem %s5, 80
      %v2041 = vld [vmem:[%s2040] sm:$0xff]
      %v2042 = vld [vmem:[%s2040 + $0x8] sm:$0xff]
      %v2043 = vld [vmem:[%s2040 + $0x10] sm:$0xff]
      %v2044 = vld [vmem:[%s2040 + $0x18] sm:$0xff]
      %v2045 = vld [vmem:[%s2040 + $0x20] sm:$0x7]
      %v2047 = vsel %vm1136, %v2041, 0
      %v2050 = vsel %vm1136, %v2042, 0
      %v2053 = vsel %vm1136, %v2043, 0
      %v2056 = vsel %vm1136, %v2044, 0
      %v2059 = vsel %vm1136, %v2045, 0
      %2061 = vmatprep.subr.mxu0 %v1878
      %2062 = vmatpush1.msra.mxu0 %v1876
      %2063 = vmatprep.subr.mxu0 %v1884
      %2064 = vmatpush1.msra.mxu0 %v1882
      %2065 = vmatprep.subr.mxu0 0.0
      %2066 = vmatpush1.msra.mxu0 0.0
      %2067 = vmatprep.subr.mxu0 0.0
      %2068 = vmatpush1.msra.mxu0 0.0
      %2069 = vmatprep.subr.mxu0 0.0
      %2070 = vmatpush1.msra.mxu0 0.0
      %2071 = vmatprep.subr.mxu0 0.0
      %2072 = vmatpush1.msra.mxu0 0.0
      %2073 = vmatprep.subr.mxu0 0.0
      %2074 = vmatpush1.msra.mxu0 0.0
      %2075 = vmatprep.subr.mxu0 0.0
      %2076 = vmatpush1.msra.mxu0 0.0
      %2077 = vmatprep.subr.mxu0 0.0
      %2078 = vmatpush1.msra.mxu0 0.0
      %2079 = vmatprep.subr.mxu0 0.0
      %2080 = vmatpush1.msra.mxu0 0.0
      %2081 = vmatprep.subr.mxu0 0.0
      %2082 = vmatpush1.msra.mxu0 0.0
      %2083 = vmatprep.subr.mxu0 0.0
      %2084 = vmatpush1.msra.mxu0 0.0
      %2085 = vmatprep.subr.mxu0 0.0
      %2086 = vmatpush1.msra.mxu0 0.0
      %2087 = vmatprep.subr.mxu0 0.0
      %2088 = vmatpush1.msra.mxu0 0.0
      %2089 = vmatprep.subr.mxu0 0.0
      %2090 = vmatpush1.msra.mxu0 0.0
      %2091 = vmatprep.subr.mxu0 0.0
      %2092 = vmatpush1.msra.mxu0 0.0
      %2093 = vmatprep.subr.mxu0 0.0
      %2094 = vmatpush1.msra.mxu0 0.0
      %2095 = vmatprep.subr.mxu0 0.0
      %2096 = vmatpush1.msra.mxu0 0.0
      %2097 = vmatprep.subr.mxu0 0.0
      %2098 = vmatpush1.msra.mxu0 0.0
      %2099 = vmatprep.subr.mxu0 0.0
      %2100 = vmatpush1.msra.mxu0 0.0
      %2101 = vmatprep.subr.mxu0 0.0
      %2102 = vmatpush1.msra.mxu0 0.0
      %2103 = vmatprep.subr.mxu0 0.0
      %2104 = vmatpush1.msra.mxu0 0.0
      %2105 = vmatprep.subr.mxu0 0.0
      %2106 = vmatpush1.msra.mxu0 0.0
      %2107 = vmatprep.subr.mxu0 0.0
      %2108 = vmatpush1.msra.mxu0 0.0
      %2109 = vmatprep.subr.mxu0 0.0
      %2110 = vmatpush1.msra.mxu0 0.0
      %2111 = vmatprep.subr.mxu0 0.0
      %2112 = vmatpush1.msra.mxu0 0.0
      %2113 = vmatprep.subr.mxu0 0.0
      %2114 = vmatpush1.msra.mxu0 0.0
      %2115 = vmatprep.subr.mxu0 0.0
      %2116 = vmatpush1.msra.mxu0 0.0
      %2117 = vmatprep.subr.mxu0 0.0
      %2118 = vmatpush1.msra.mxu0 0.0
      %2119 = vmatprep.subr.mxu0 0.0
      %2120 = vmatpush1.msra.mxu0 0.0
      %2121 = vmatprep.subr.mxu0 0.0
      %2122 = vmatpush1.msra.mxu0 0.0
      %2123 = vmatprep.subr.mxu0 0.0
      %2124 = vmatpush1.msra.mxu0 0.0
      %2125 = vmatprep.mubr.f32.mxu0 0.0
      %2126 = vmatmul.mubr.f32.gmra.mrb[0].mxu0 %v2047
      %v2127 = vpop.f32.mrb[0].mxu0
      %v2128 = vadd.f32 0.0, %v2127
      %v2129 = vpop.f32.mrb[0].mxu0
      %v2130 = vadd.f32 0.0, %v2129
      %2131 = vmatprep.mubr.f32.mxu0 0.0
      %2132 = vmatmul.mubr.f32.gmra.mrb[0].mxu0 %v2050
      %v2133 = vpop.f32.mrb[0].mxu0
      %v2134 = vadd.f32 0.0, %v2133
      %v2135 = vpop.f32.mrb[0].mxu0
      %v2136 = vadd.f32 0.0, %v2135
      %2137 = vmatprep.mubr.f32.mxu0 0.0
      %2138 = vmatmul.mubr.f32.gmra.mrb[0].mxu0 %v2053
      %v2139 = vpop.f32.mrb[0].mxu0
      %v2140 = vadd.f32 0.0, %v2139
      %v2141 = vpop.f32.mrb[0].mxu0
      %v2142 = vadd.f32 0.0, %v2141
      %2143 = vmatprep.mubr.f32.mxu0 0.0
      %2144 = vmatmul.mubr.f32.gmra.mrb[0].mxu0 %v2056
      %v2145 = vpop.f32.mrb[0].mxu0
      %v2146 = vadd.f32 0.0, %v2145
      %v2147 = vpop.f32.mrb[0].mxu0
      %v2148 = vadd.f32 0.0, %v2147
      %2149 = vmatprep.mubr.f32.mxu0 0.0
      %2150 = vmatmul.mubr.f32.gmra.mrb[0].mxu0 %v2059
      %v2151 = vpop.f32.mrb[0].mxu0
      %v2152 = vadd.f32 0.0, %v2151
      %v2153 = vpop.f32.mrb[0].mxu0
      %v2154 = vadd.f32 0.0, %v2153
      %2155 = vdwg.mxu0
      %2156 = vmatprep.subr.mxu0 %v1955
      %2157 = vmatpush1.msra.mxu0 %v1953
      %2158 = vmatprep.subr.mxu0 %v1961
      %2159 = vmatpush1.msra.mxu0 %v1959
      %2160 = vmatprep.subr.mxu0 0.0
      %2161 = vmatpush1.msra.mxu0 0.0
      %2162 = vmatprep.subr.mxu0 0.0
      %2163 = vmatpush1.msra.mxu0 0.0
      %2164 = vmatprep.subr.mxu0 0.0
      %2165 = vmatpush1.msra.mxu0 0.0
      %2166 = vmatprep.subr.mxu0 0.0
      %2167 = vmatpush1.msra.mxu0 0.0
      %2168 = vmatprep.subr.mxu0 0.0
      %2169 = vmatpush1.msra.mxu0 0.0
      %2170 = vmatprep.subr.mxu0 0.0
      %2171 = vmatpush1.msra.mxu0 0.0
      %2172 = vmatprep.subr.mxu0 0.0
      %2173 = vmatpush1.msra.mxu0 0.0
      %2174 = vmatprep.subr.mxu0 0.0
      %2175 = vmatpush1.msra.mxu0 0.0
      %2176 = vmatprep.subr.mxu0 0.0
      %2177 = vmatpush1.msra.mxu0 0.0
      %2178 = vmatprep.subr.mxu0 0.0
      %2179 = vmatpush1.msra.mxu0 0.0
      %2180 = vmatprep.subr.mxu0 0.0
      %2181 = vmatpush1.msra.mxu0 0.0
      %2182 = vmatprep.subr.mxu0 0.0
      %2183 = vmatpush1.msra.mxu0 0.0
      %2184 = vmatprep.subr.mxu0 0.0
      %2185 = vmatpush1.msra.mxu0 0.0
      %2186 = vmatprep.subr.mxu0 0.0
      %2187 = vmatpush1.msra.mxu0 0.0
      %2188 = vmatprep.subr.mxu0 0.0
      %2189 = vmatpush1.msra.mxu0 0.0
      %2190 = vmatprep.subr.mxu0 0.0
      %2191 = vmatpush1.msra.mxu0 0.0
      %2192 = vmatprep.subr.mxu0 0.0
      %2193 = vmatpush1.msra.mxu0 0.0
      %2194 = vmatprep.subr.mxu0 0.0
      %2195 = vmatpush1.msra.mxu0 0.0
      %2196 = vmatprep.subr.mxu0 0.0
      %2197 = vmatpush1.msra.mxu0 0.0
      %2198 = vmatprep.subr.mxu0 0.0
      %2199 = vmatpush1.msra.mxu0 0.0
      %2200 = vmatprep.subr.mxu0 0.0
      %2201 = vmatpush1.msra.mxu0 0.0
      %2202 = vmatprep.subr.mxu0 0.0
      %2203 = vmatpush1.msra.mxu0 0.0
      %2204 = vmatprep.subr.mxu0 0.0
      %2205 = vmatpush1.msra.mxu0 0.0
      %2206 = vmatprep.subr.mxu0 0.0
      %2207 = vmatpush1.msra.mxu0 0.0
      %2208 = vmatprep.subr.mxu0 0.0
      %2209 = vmatpush1.msra.mxu0 0.0
      %2210 = vmatprep.subr.mxu0 0.0
      %2211 = vmatpush1.msra.mxu0 0.0
      %2212 = vmatprep.subr.mxu0 0.0
      %2213 = vmatpush1.msra.mxu0 0.0
      %2214 = vmatprep.subr.mxu0 0.0
      %2215 = vmatpush1.msra.mxu0 0.0
      %2216 = vmatprep.subr.mxu0 0.0
      %2217 = vmatpush1.msra.mxu0 0.0
      %2218 = vmatprep.subr.mxu0 0.0
      %2219 = vmatpush1.msra.mxu0 0.0
      %2220 = vmatprep.mubr.f32.mxu0 0.0
      %2221 = vmatmul.mubr.f32.gmra.mrb[0].mxu0 %v2047
      %v2222 = vpop.f32.mrb[0].mxu0
      %v2223 = vadd.f32 0.0, %v2222
      %v2224 = vpop.f32.mrb[0].mxu0
      %v2225 = vadd.f32 0.0, %v2224
      %2226 = vmatprep.mubr.f32.mxu0 0.0
      %2227 = vmatmul.mubr.f32.gmra.mrb[0].mxu0 %v2050
      %v2228 = vpop.f32.mrb[0].mxu0
      %v2229 = vadd.f32 0.0, %v2228
      %v2230 = vpop.f32.mrb[0].mxu0
      %v2231 = vadd.f32 0.0, %v2230
      %2232 = vmatprep.mubr.f32.mxu0 0.0
      %2233 = vmatmul.mubr.f32.gmra.mrb[0].mxu0 %v2053
      %v2234 = vpop.f32.mrb[0].mxu0
      %v2235 = vadd.f32 0.0, %v2234
      %v2236 = vpop.f32.mrb[0].mxu0
      %v2237 = vadd.f32 0.0, %v2236
      %2238 = vmatprep.mubr.f32.mxu0 0.0
      %2239 = vmatmul.mubr.f32.gmra.mrb[0].mxu0 %v2056
      %v2240 = vpop.f32.mrb[0].mxu0
      %v2241 = vadd.f32 0.0, %v2240
      %v2242 = vpop.f32.mrb[0].mxu0
      %v2243 = vadd.f32 0.0, %v2242
      %2244 = vmatprep.mubr.f32.mxu0 0.0
      %2245 = vmatmul.mubr.f32.gmra.mrb[0].mxu0 %v2059
      %v2246 = vpop.f32.mrb[0].mxu0
      %v2247 = vadd.f32 0.0, %v2246
      %v2248 = vpop.f32.mrb[0].mxu0
      %v2249 = vadd.f32 0.0, %v2248
      %2250 = vdwg.mxu0
      %2251 = vmatprep.subr.mxu0 %v2032
      %2252 = vmatpush1.msra.mxu0 %v2030
      %2253 = vmatprep.subr.mxu0 %v2038
      %2254 = vmatpush1.msra.mxu0 %v2036
      %2255 = vmatprep.subr.mxu0 0.0
      %2256 = vmatpush1.msra.mxu0 0.0
      %2257 = vmatprep.subr.mxu0 0.0
      %2258 = vmatpush1.msra.mxu0 0.0
      %2259 = vmatprep.subr.mxu0 0.0
      %2260 = vmatpush1.msra.mxu0 0.0
      %2261 = vmatprep.subr.mxu0 0.0
      %2262 = vmatpush1.msra.mxu0 0.0
      %2263 = vmatprep.subr.mxu0 0.0
      %2264 = vmatpush1.msra.mxu0 0.0
      %2265 = vmatprep.subr.mxu0 0.0
      %2266 = vmatpush1.msra.mxu0 0.0
      %2267 = vmatprep.subr.mxu0 0.0
      %2268 = vmatpush1.msra.mxu0 0.0
      %2269 = vmatprep.subr.mxu0 0.0
      %2270 = vmatpush1.msra.mxu0 0.0
      %2271 = vmatprep.subr.mxu0 0.0
      %2272 = vmatpush1.msra.mxu0 0.0
      %2273 = vmatprep.subr.mxu0 0.0
      %2274 = vmatpush1.msra.mxu0 0.0
      %2275 = vmatprep.subr.mxu0 0.0
      %2276 = vmatpush1.msra.mxu0 0.0
      %2277 = vmatprep.subr.mxu0 0.0
      %2278 = vmatpush1.msra.mxu0 0.0
      %2279 = vmatprep.subr.mxu0 0.0
      %2280 = vmatpush1.msra.mxu0 0.0
      %2281 = vmatprep.subr.mxu0 0.0
      %2282 = vmatpush1.msra.mxu0 0.0
      %2283 = vmatprep.subr.mxu0 0.0
      %2284 = vmatpush1.msra.mxu0 0.0
      %2285 = vmatprep.subr.mxu0 0.0
      %2286 = vmatpush1.msra.mxu0 0.0
      %2287 = vmatprep.subr.mxu0 0.0
      %2288 = vmatpush1.msra.mxu0 0.0
      %2289 = vmatprep.subr.mxu0 0.0
      %2290 = vmatpush1.msra.mxu0 0.0
      %2291 = vmatprep.subr.mxu0 0.0
      %2292 = vmatpush1.msra.mxu0 0.0
      %2293 = vmatprep.subr.mxu0 0.0
      %2294 = vmatpush1.msra.mxu0 0.0
      %2295 = vmatprep.subr.mxu0 0.0
      %2296 = vmatpush1.msra.mxu0 0.0
      %2297 = vmatprep.subr.mxu0 0.0
      %2298 = vmatpush1.msra.mxu0 0.0
      %2299 = vmatprep.subr.mxu0 0.0
      %2300 = vmatpush1.msra.mxu0 0.0
      %2301 = vmatprep.subr.mxu0 0.0
      %2302 = vmatpush1.msra.mxu0 0.0
      %2303 = vmatprep.subr.mxu0 0.0
      %2304 = vmatpush1.msra.mxu0 0.0
      %2305 = vmatprep.subr.mxu0 0.0
      %2306 = vmatpush1.msra.mxu0 0.0
      %2307 = vmatprep.subr.mxu0 0.0
      %2308 = vmatpush1.msra.mxu0 0.0
      %2309 = vmatprep.subr.mxu0 0.0
      %2310 = vmatpush1.msra.mxu0 0.0
      %2311 = vmatprep.subr.mxu0 0.0
      %2312 = vmatpush1.msra.mxu0 0.0
      %2313 = vmatprep.subr.mxu0 0.0
      %2314 = vmatpush1.msra.mxu0 0.0
      %2315 = vmatprep.mubr.f32.mxu0 0.0
      %2316 = vmatmul.mubr.f32.gmra.mrb[0].mxu0 %v2047
      %v2317 = vpop.f32.mrb[0].mxu0
      %v2318 = vadd.f32 0.0, %v2317
      %v2319 = vpop.f32.mrb[0].mxu0
      %v2320 = vadd.f32 0.0, %v2319
      %2321 = vmatprep.mubr.f32.mxu0 0.0
      %2322 = vmatmul.mubr.f32.gmra.mrb[0].mxu0 %v2050
      %v2323 = vpop.f32.mrb[0].mxu0
      %v2324 = vadd.f32 0.0, %v2323
      %v2325 = vpop.f32.mrb[0].mxu0
      %v2326 = vadd.f32 0.0, %v2325
      %2327 = vmatprep.mubr.f32.mxu0 0.0
      %2328 = vmatmul.mubr.f32.gmra.mrb[0].mxu0 %v2053
      %v2329 = vpop.f32.mrb[0].mxu0
      %v2330 = vadd.f32 0.0, %v2329
      %v2331 = vpop.f32.mrb[0].mxu0
      %v2332 = vadd.f32 0.0, %v2331
      %2333 = vmatprep.mubr.f32.mxu0 0.0
      %2334 = vmatmul.mubr.f32.gmra.mrb[0].mxu0 %v2056
      %v2335 = vpop.f32.mrb[0].mxu0
      %v2336 = vadd.f32 0.0, %v2335
      %v2337 = vpop.f32.mrb[0].mxu0
      %v2338 = vadd.f32 0.0, %v2337
      %2339 = vmatprep.mubr.f32.mxu0 0.0
      %2340 = vmatmul.mubr.f32.gmra.mrb[0].mxu0 %v2059
      %v2341 = vpop.f32.mrb[0].mxu0
      %v2342 = vadd.f32 0.0, %v2341
      %v2343 = vpop.f32.mrb[0].mxu0
      %v2344 = vadd.f32 0.0, %v2343
      %2345 = vdwg.mxu0
      %v2346 = vadd.f32 %v1519, %v2128
      %v2347 = vadd.f32 %v1521, %v2130
      %v2348 = vadd.f32 %v1614, %v2223
      %v2349 = vadd.f32 %v1616, %v2225
      %v2350 = vadd.f32 %v1709, %v2318
      %v2351 = vadd.f32 %v1711, %v2320
      %v2352 = vadd.f32 %v1525, %v2134
      %v2353 = vadd.f32 %v1527, %v2136
      %v2354 = vadd.f32 %v1620, %v2229
      %v2355 = vadd.f32 %v1622, %v2231
      %v2356 = vadd.f32 %v1715, %v2324
      %v2357 = vadd.f32 %v1717, %v2326
      %v2358 = vadd.f32 %v1531, %v2140
      %v2359 = vadd.f32 %v1533, %v2142
      %v2360 = vadd.f32 %v1626, %v2235
      %v2361 = vadd.f32 %v1628, %v2237
      %v2362 = vadd.f32 %v1721, %v2330
      %v2363 = vadd.f32 %v1723, %v2332
      %v2364 = vadd.f32 %v1537, %v2146
      %v2365 = vadd.f32 %v1539, %v2148
      %v2366 = vadd.f32 %v1632, %v2241
      %v2367 = vadd.f32 %v1634, %v2243
      %v2368 = vadd.f32 %v1727, %v2336
      %v2369 = vadd.f32 %v1729, %v2338
      %v2370 = vadd.f32 %v1543, %v2152
      %v2371 = vadd.f32 %v1545, %v2154
      %v2372 = vadd.f32 %v1638, %v2247
      %v2373 = vadd.f32 %v1640, %v2249
      %v2374 = vadd.f32 %v1733, %v2342
      %v2375 = vadd.f32 %v1735, %v2344
      %v2376 = vld [vmem:[%s4 + $0x90] sm:$0xff]
      %v2377 = vld [vmem:[%s4 + $0x98] sm:$0xff]
      %v2378 = vld [vmem:[%s4 + $0xa0] sm:$0xff]
      %v2379 = vld [vmem:[%s4 + $0xa8] sm:$0xff]
      %v2380 = vld [vmem:[%s4 + $0xb0] sm:$0xff]
      %v2381 = vld [vmem:[%s4 + $0xb8] sm:$0xff]
      %v2382 = vld [vmem:[%s4 + $0x150] sm:$0xff]
      %v2383 = vld [vmem:[%s4 + $0x158] sm:$0xff]
      %v2384 = vld [vmem:[%s4 + $0x160] sm:$0xff]
      %v2385 = vld [vmem:[%s4 + $0x168] sm:$0xff]
      %v2386 = vld [vmem:[%s4 + $0x170] sm:$0xff]
      %v2387 = vld [vmem:[%s4 + $0x178] sm:$0xff]
      %v2388 = vld [vmem:[%s4 + $0x210] sm:$0xff]
      %v2389 = vld [vmem:[%s4 + $0x218] sm:$0xff]
      %v2390 = vld [vmem:[%s4 + $0x220] sm:$0xff]
      %v2391 = vld [vmem:[%s4 + $0x228] sm:$0xff]
      %v2392 = vld [vmem:[%s4 + $0x230] sm:$0xff]
      %v2393 = vld [vmem:[%s4 + $0x238] sm:$0xff]
      %v2394 = vld [vmem:[%s4 + $0x2d0] sm:$0xff]
      %v2395 = vld [vmem:[%s4 + $0x2d8] sm:$0xff]
      %v2396 = vld [vmem:[%s4 + $0x2e0] sm:$0xff]
      %v2397 = vld [vmem:[%s4 + $0x2e8] sm:$0xff]
      %v2398 = vld [vmem:[%s4 + $0x2f0] sm:$0xff]
      %v2399 = vld [vmem:[%s4 + $0x2f8] sm:$0xff]
      %v2400 = vld [vmem:[%s4 + $0x390] sm:$0xff]
      %v2401 = vld [vmem:[%s4 + $0x398] sm:$0xff]
      %v2402 = vld [vmem:[%s4 + $0x3a0] sm:$0xff]
      %v2403 = vld [vmem:[%s4 + $0x3a8] sm:$0xff]
      %v2404 = vld [vmem:[%s4 + $0x3b0] sm:$0xff]
      %v2405 = vld [vmem:[%s4 + $0x3b8] sm:$0xff]
      %v2406 = vld [vmem:[%s4 + $0x450] sm:$0xff]
      %v2407 = vld [vmem:[%s4 + $0x458] sm:$0xff]
      %v2408 = vld [vmem:[%s4 + $0x460] sm:$0xff]
      %v2409 = vld [vmem:[%s4 + $0x468] sm:$0xff]
      %v2410 = vld [vmem:[%s4 + $0x470] sm:$0xff]
      %v2411 = vld [vmem:[%s4 + $0x478] sm:$0xff]
      %v2412 = vld [vmem:[%s4 + $0x510] sm:$0xff]
      %v2413 = vld [vmem:[%s4 + $0x518] sm:$0xff]
      %v2414 = vld [vmem:[%s4 + $0x520] sm:$0xff]
      %v2415 = vld [vmem:[%s4 + $0x528] sm:$0xff]
      %v2416 = vld [vmem:[%s4 + $0x530] sm:$0xff]
      %v2417 = vld [vmem:[%s4 + $0x538] sm:$0xff]
      %v2418 = vld [vmem:[%s4 + $0x5d0] sm:$0xff]
      %v2419 = vld [vmem:[%s4 + $0x5d8] sm:$0xff]
      %v2420 = vld [vmem:[%s4 + $0x5e0] sm:$0xff]
      %v2421 = vld [vmem:[%s4 + $0x5e8] sm:$0xff]
      %v2422 = vld [vmem:[%s4 + $0x5f0] sm:$0xff]
      %v2423 = vld [vmem:[%s4 + $0x5f8] sm:$0xff]
      %v2424 = vld [vmem:[%s4 + $0x690] sm:$0xff]
      %v2425 = vld [vmem:[%s4 + $0x698] sm:$0xff]
      %v2426 = vld [vmem:[%s4 + $0x6a0] sm:$0xff]
      %v2427 = vld [vmem:[%s4 + $0x6a8] sm:$0xff]
      %v2428 = vld [vmem:[%s4 + $0x6b0] sm:$0xff]
      %v2429 = vld [vmem:[%s4 + $0x6b8] sm:$0xff]
      %v2430 = vld [vmem:[%s4 + $0x750] sm:$0xff]
      %v2431 = vld [vmem:[%s4 + $0x758] sm:$0xff]
      %v2432 = vld [vmem:[%s4 + $0x760] sm:$0xff]
      %v2433 = vld [vmem:[%s4 + $0x768] sm:$0xff]
      %v2434 = vld [vmem:[%s4 + $0x770] sm:$0xff]
      %v2435 = vld [vmem:[%s4 + $0x778] sm:$0xff]
      %v2436 = vld [vmem:[%s4 + $0x810] sm:$0xff]
      %v2437 = vld [vmem:[%s4 + $0x818] sm:$0xff]
      %v2438 = vld [vmem:[%s4 + $0x820] sm:$0xff]
      %v2439 = vld [vmem:[%s4 + $0x828] sm:$0xff]
      %v2440 = vld [vmem:[%s4 + $0x830] sm:$0xff]
      %v2441 = vld [vmem:[%s4 + $0x838] sm:$0xff]
      %v2442 = vld [vmem:[%s4 + $0x8d0] sm:$0xff]
      %v2443 = vld [vmem:[%s4 + $0x8d8] sm:$0xff]
      %v2444 = vld [vmem:[%s4 + $0x8e0] sm:$0xff]
      %v2445 = vld [vmem:[%s4 + $0x8e8] sm:$0xff]
      %v2446 = vld [vmem:[%s4 + $0x8f0] sm:$0xff]
      %v2447 = vld [vmem:[%s4 + $0x8f8] sm:$0xff]
      %2448 = vmatprep.subr.mxu0 %v2377
      %2449 = vmatpush1.msra.mxu0 %v2376
      %2450 = vmatprep.subr.mxu0 %v2383
      %2451 = vmatpush1.msra.mxu0 %v2382
      %2452 = vmatprep.subr.mxu0 %v2389
      %2453 = vmatpush1.msra.mxu0 %v2388
      %2454 = vmatprep.subr.mxu0 %v2395
      %2455 = vmatpush1.msra.mxu0 %v2394
      %2456 = vmatprep.subr.mxu0 %v2401
      %2457 = vmatpush1.msra.mxu0 %v2400
      %2458 = vmatprep.subr.mxu0 %v2407
      %2459 = vmatpush1.msra.mxu0 %v2406
      %2460 = vmatprep.subr.mxu0 %v2413
      %2461 = vmatpush1.msra.mxu0 %v2412
      %2462 = vmatprep.subr.mxu0 %v2419
      %2463 = vmatpush1.msra.mxu0 %v2418
      %2464 = vmatprep.subr.mxu0 %v2425
      %2465 = vmatpush1.msra.mxu0 %v2424
      %2466 = vmatprep.subr.mxu0 %v2431
      %2467 = vmatpush1.msra.mxu0 %v2430
      %2468 = vmatprep.subr.mxu0 %v2437
      %2469 = vmatpush1.msra.mxu0 %v2436
      %2470 = vmatprep.subr.mxu0 %v2443
      %2471 = vmatpush1.msra.mxu0 %v2442
      %2472 = vmatprep.subr.mxu0 0.0
      %2473 = vmatpush1.msra.mxu0 0.0
      %2474 = vmatprep.subr.mxu0 0.0
      %2475 = vmatpush1.msra.mxu0 0.0
      %2476 = vmatprep.subr.mxu0 0.0
      %2477 = vmatpush1.msra.mxu0 0.0
      %2478 = vmatprep.subr.mxu0 0.0
      %2479 = vmatpush1.msra.mxu0 0.0
      %2480 = vmatprep.subr.mxu0 0.0
      %2481 = vmatpush1.msra.mxu0 0.0
      %2482 = vmatprep.subr.mxu0 0.0
      %2483 = vmatpush1.msra.mxu0 0.0
      %2484 = vmatprep.subr.mxu0 0.0
      %2485 = vmatpush1.msra.mxu0 0.0
      %2486 = vmatprep.subr.mxu0 0.0
      %2487 = vmatpush1.msra.mxu0 0.0
      %2488 = vmatprep.subr.mxu0 0.0
      %2489 = vmatpush1.msra.mxu0 0.0
      %2490 = vmatprep.subr.mxu0 0.0
      %2491 = vmatpush1.msra.mxu0 0.0
      %2492 = vmatprep.subr.mxu0 0.0
      %2493 = vmatpush1.msra.mxu0 0.0
      %2494 = vmatprep.subr.mxu0 0.0
      %2495 = vmatpush1.msra.mxu0 0.0
      %2496 = vmatprep.subr.mxu0 0.0
      %2497 = vmatpush1.msra.mxu0 0.0
      %2498 = vmatprep.subr.mxu0 0.0
      %2499 = vmatpush1.msra.mxu0 0.0
      %2500 = vmatprep.subr.mxu0 0.0
      %2501 = vmatpush1.msra.mxu0 0.0
      %2502 = vmatprep.subr.mxu0 0.0
      %2503 = vmatpush1.msra.mxu0 0.0
      %2504 = vmatprep.subr.mxu0 0.0
      %2505 = vmatpush1.msra.mxu0 0.0
      %2506 = vmatprep.subr.mxu0 0.0
      %2507 = vmatpush1.msra.mxu0 0.0
      %2508 = vmatprep.subr.mxu0 0.0
      %2509 = vmatpush1.msra.mxu0 0.0
      %2510 = vmatprep.subr.mxu0 0.0
      %2511 = vmatpush1.msra.mxu0 0.0
      %2512 = vmatprep.mubr.f32.mxu0 0.0
      %2513 = vmatmul.mubr.f32.gmra.mrb[0].mxu0 %v586
      %v2514 = vpop.f32.mrb[0].mxu0
      %v2515 = vadd.f32 0.0, %v2514
      %v2516 = vpop.f32.mrb[0].mxu0
      %v2517 = vadd.f32 0.0, %v2516
      %2518 = vmatprep.mubr.f32.mxu0 0.0
      %2519 = vmatmul.mubr.f32.gmra.mrb[0].mxu0 %v589
      %v2520 = vpop.f32.mrb[0].mxu0
      %v2521 = vadd.f32 0.0, %v2520
      %v2522 = vpop.f32.mrb[0].mxu0
      %v2523 = vadd.f32 0.0, %v2522
      %2524 = vdwg.mxu0
      %2525 = vmatprep.subr.mxu0 %v2379
      %2526 = vmatpush1.msra.mxu0 %v2378
      %2527 = vmatprep.subr.mxu0 %v2385
      %2528 = vmatpush1.msra.mxu0 %v2384
      %2529 = vmatprep.subr.mxu0 %v2391
      %2530 = vmatpush1.msra.mxu0 %v2390
      %2531 = vmatprep.subr.mxu0 %v2397
      %2532 = vmatpush1.msra.mxu0 %v2396
      %2533 = vmatprep.subr.mxu0 %v2403
      %2534 = vmatpush1.msra.mxu0 %v2402
      %2535 = vmatprep.subr.mxu0 %v2409
      %2536 = vmatpush1.msra.mxu0 %v2408
      %2537 = vmatprep.subr.mxu0 %v2415
      %2538 = vmatpush1.msra.mxu0 %v2414
      %2539 = vmatprep.subr.mxu0 %v2421
      %2540 = vmatpush1.msra.mxu0 %v2420
      %2541 = vmatprep.subr.mxu0 %v2427
      %2542 = vmatpush1.msra.mxu0 %v2426
      %2543 = vmatprep.subr.mxu0 %v2433
      %2544 = vmatpush1.msra.mxu0 %v2432
      %2545 = vmatprep.subr.mxu0 %v2439
      %2546 = vmatpush1.msra.mxu0 %v2438
      %2547 = vmatprep.subr.mxu0 %v2445
      %2548 = vmatpush1.msra.mxu0 %v2444
      %2549 = vmatprep.subr.mxu0 0.0
      %2550 = vmatpush1.msra.mxu0 0.0
      %2551 = vmatprep.subr.mxu0 0.0
      %2552 = vmatpush1.msra.mxu0 0.0
      %2553 = vmatprep.subr.mxu0 0.0
      %2554 = vmatpush1.msra.mxu0 0.0
      %2555 = vmatprep.subr.mxu0 0.0
      %2556 = vmatpush1.msra.mxu0 0.0
      %2557 = vmatprep.subr.mxu0 0.0
      %2558 = vmatpush1.msra.mxu0 0.0
      %2559 = vmatprep.subr.mxu0 0.0
      %2560 = vmatpush1.msra.mxu0 0.0
      %2561 = vmatprep.subr.mxu0 0.0
      %2562 = vmatpush1.msra.mxu0 0.0
      %2563 = vmatprep.subr.mxu0 0.0
      %2564 = vmatpush1.msra.mxu0 0.0
      %2565 = vmatprep.subr.mxu0 0.0
      %2566 = vmatpush1.msra.mxu0 0.0
      %2567 = vmatprep.subr.mxu0 0.0
      %2568 = vmatpush1.msra.mxu0 0.0
      %2569 = vmatprep.subr.mxu0 0.0
      %2570 = vmatpush1.msra.mxu0 0.0
      %2571 = vmatprep.subr.mxu0 0.0
      %2572 = vmatpush1.msra.mxu0 0.0
      %2573 = vmatprep.subr.mxu0 0.0
      %2574 = vmatpush1.msra.mxu0 0.0
      %2575 = vmatprep.subr.mxu0 0.0
      %2576 = vmatpush1.msra.mxu0 0.0
      %2577 = vmatprep.subr.mxu0 0.0
      %2578 = vmatpush1.msra.mxu0 0.0
      %2579 = vmatprep.subr.mxu0 0.0
      %2580 = vmatpush1.msra.mxu0 0.0
      %2581 = vmatprep.subr.mxu0 0.0
      %2582 = vmatpush1.msra.mxu0 0.0
      %2583 = vmatprep.subr.mxu0 0.0
      %2584 = vmatpush1.msra.mxu0 0.0
      %2585 = vmatprep.subr.mxu0 0.0
      %2586 = vmatpush1.msra.mxu0 0.0
      %2587 = vmatprep.subr.mxu0 0.0
      %2588 = vmatpush1.msra.mxu0 0.0
      %2589 = vmatprep.mubr.f32.mxu0 0.0
      %2590 = vmatmul.mubr.f32.gmra.mrb[0].mxu0 %v586
      %v2591 = vpop.f32.mrb[0].mxu0
      %v2592 = vadd.f32 0.0, %v2591
      %v2593 = vpop.f32.mrb[0].mxu0
      %v2594 = vadd.f32 0.0, %v2593
      %2595 = vmatprep.mubr.f32.mxu0 0.0
      %2596 = vmatmul.mubr.f32.gmra.mrb[0].mxu0 %v589
      %v2597 = vpop.f32.mrb[0].mxu0
      %v2598 = vadd.f32 0.0, %v2597
      %v2599 = vpop.f32.mrb[0].mxu0
      %v2600 = vadd.f32 0.0, %v2599
      %2601 = vdwg.mxu0
      %2602 = vmatprep.subr.mxu0 %v2381
      %2603 = vmatpush1.msra.mxu0 %v2380
      %2604 = vmatprep.subr.mxu0 %v2387
      %2605 = vmatpush1.msra.mxu0 %v2386
      %2606 = vmatprep.subr.mxu0 %v2393
      %2607 = vmatpush1.msra.mxu0 %v2392
      %2608 = vmatprep.subr.mxu0 %v2399
      %2609 = vmatpush1.msra.mxu0 %v2398
      %2610 = vmatprep.subr.mxu0 %v2405
      %2611 = vmatpush1.msra.mxu0 %v2404
      %2612 = vmatprep.subr.mxu0 %v2411
      %2613 = vmatpush1.msra.mxu0 %v2410
      %2614 = vmatprep.subr.mxu0 %v2417
      %2615 = vmatpush1.msra.mxu0 %v2416
      %2616 = vmatprep.subr.mxu0 %v2423
      %2617 = vmatpush1.msra.mxu0 %v2422
      %2618 = vmatprep.subr.mxu0 %v2429
      %2619 = vmatpush1.msra.mxu0 %v2428
      %2620 = vmatprep.subr.mxu0 %v2435
      %2621 = vmatpush1.msra.mxu0 %v2434
      %2622 = vmatprep.subr.mxu0 %v2441
      %2623 = vmatpush1.msra.mxu0 %v2440
      %2624 = vmatprep.subr.mxu0 %v2447
      %2625 = vmatpush1.msra.mxu0 %v2446
      %2626 = vmatprep.subr.mxu0 0.0
      %2627 = vmatpush1.msra.mxu0 0.0
      %2628 = vmatprep.subr.mxu0 0.0
      %2629 = vmatpush1.msra.mxu0 0.0
      %2630 = vmatprep.subr.mxu0 0.0
      %2631 = vmatpush1.msra.mxu0 0.0
      %2632 = vmatprep.subr.mxu0 0.0
      %2633 = vmatpush1.msra.mxu0 0.0
      %2634 = vmatprep.subr.mxu0 0.0
      %2635 = vmatpush1.msra.mxu0 0.0
      %2636 = vmatprep.subr.mxu0 0.0
      %2637 = vmatpush1.msra.mxu0 0.0
      %2638 = vmatprep.subr.mxu0 0.0
      %2639 = vmatpush1.msra.mxu0 0.0
      %2640 = vmatprep.subr.mxu0 0.0
      %2641 = vmatpush1.msra.mxu0 0.0
      %2642 = vmatprep.subr.mxu0 0.0
      %2643 = vmatpush1.msra.mxu0 0.0
      %2644 = vmatprep.subr.mxu0 0.0
      %2645 = vmatpush1.msra.mxu0 0.0
      %2646 = vmatprep.subr.mxu0 0.0
      %2647 = vmatpush1.msra.mxu0 0.0
      %2648 = vmatprep.subr.mxu0 0.0
      %2649 = vmatpush1.msra.mxu0 0.0
      %2650 = vmatprep.subr.mxu0 0.0
      %2651 = vmatpush1.msra.mxu0 0.0
      %2652 = vmatprep.subr.mxu0 0.0
      %2653 = vmatpush1.msra.mxu0 0.0
      %2654 = vmatprep.subr.mxu0 0.0
      %2655 = vmatpush1.msra.mxu0 0.0
      %2656 = vmatprep.subr.mxu0 0.0
      %2657 = vmatpush1.msra.mxu0 0.0
      %2658 = vmatprep.subr.mxu0 0.0
      %2659 = vmatpush1.msra.mxu0 0.0
      %2660 = vmatprep.subr.mxu0 0.0
      %2661 = vmatpush1.msra.mxu0 0.0
      %2662 = vmatprep.subr.mxu0 0.0
      %2663 = vmatpush1.msra.mxu0 0.0
      %2664 = vmatprep.subr.mxu0 0.0
      %2665 = vmatpush1.msra.mxu0 0.0
      %2666 = vmatprep.mubr.f32.mxu0 0.0
      %2667 = vmatmul.mubr.f32.gmra.mrb[0].mxu0 %v586
      %v2668 = vpop.f32.mrb[0].mxu0
      %v2669 = vadd.f32 0.0, %v2668
      %v2670 = vpop.f32.mrb[0].mxu0
      %v2671 = vadd.f32 0.0, %v2670
      %2672 = vmatprep.mubr.f32.mxu0 0.0
      %2673 = vmatmul.mubr.f32.gmra.mrb[0].mxu0 %v589
      %v2674 = vpop.f32.mrb[0].mxu0
      %v2675 = vadd.f32 0.0, %v2674
      %v2676 = vpop.f32.mrb[0].mxu0
      %v2677 = vadd.f32 0.0, %v2676
      %2678 = vdwg.mxu0
      %s2679 = scalar_lea.vmem %s5, 120
      %v2680 = vld [vmem:[%s2679] sm:$0xff]
      %v2681 = vld [vmem:[%s2679 + $0x8] sm:$0xff]
      %v2682 = vld [vmem:[%s2679 + $0x10] sm:$0xff]
      %v2683 = vld [vmem:[%s2679 + $0x18] sm:$0xff]
      %v2684 = vld [vmem:[%s2679 + $0x20] sm:$0x7]
      %v2686 = vsel %vm1136, %v2680, 0
      %v2689 = vsel %vm1136, %v2681, 0
      %v2692 = vsel %vm1136, %v2682, 0
      %v2695 = vsel %vm1136, %v2683, 0
      %v2698 = vsel %vm1136, %v2684, 0
      %2700 = vmatprep.subr.mxu0 %v2517
      %2701 = vmatpush1.msra.mxu0 %v2515
      %2702 = vmatprep.subr.mxu0 %v2523
      %2703 = vmatpush1.msra.mxu0 %v2521
      %2704 = vmatprep.subr.mxu0 0.0
      %2705 = vmatpush1.msra.mxu0 0.0
      %2706 = vmatprep.subr.mxu0 0.0
      %2707 = vmatpush1.msra.mxu0 0.0
      %2708 = vmatprep.subr.mxu0 0.0
      %2709 = vmatpush1.msra.mxu0 0.0
      %2710 = vmatprep.subr.mxu0 0.0
      %2711 = vmatpush1.msra.mxu0 0.0
      %2712 = vmatprep.subr.mxu0 0.0
      %2713 = vmatpush1.msra.mxu0 0.0
      %2714 = vmatprep.subr.mxu0 0.0
      %2715 = vmatpush1.msra.mxu0 0.0
      %2716 = vmatprep.subr.mxu0 0.0
      %2717 = vmatpush1.msra.mxu0 0.0
      %2718 = vmatprep.subr.mxu0 0.0
      %2719 = vmatpush1.msra.mxu0 0.0
      %2720 = vmatprep.subr.mxu0 0.0
      %2721 = vmatpush1.msra.mxu0 0.0
      %2722 = vmatprep.subr.mxu0 0.0
      %2723 = vmatpush1.msra.mxu0 0.0
      %2724 = vmatprep.subr.mxu0 0.0
      %2725 = vmatpush1.msra.mxu0 0.0
      %2726 = vmatprep.subr.mxu0 0.0
      %2727 = vmatpush1.msra.mxu0 0.0
      %2728 = vmatprep.subr.mxu0 0.0
      %2729 = vmatpush1.msra.mxu0 0.0
      %2730 = vmatprep.subr.mxu0 0.0
      %2731 = vmatpush1.msra.mxu0 0.0
      %2732 = vmatprep.subr.mxu0 0.0
      %2733 = vmatpush1.msra.mxu0 0.0
      %2734 = vmatprep.subr.mxu0 0.0
      %2735 = vmatpush1.msra.mxu0 0.0
      %2736 = vmatprep.subr.mxu0 0.0
      %2737 = vmatpush1.msra.mxu0 0.0
      %2738 = vmatprep.subr.mxu0 0.0
      %2739 = vmatpush1.msra.mxu0 0.0
      %2740 = vmatprep.subr.mxu0 0.0
      %2741 = vmatpush1.msra.mxu0 0.0
      %2742 = vmatprep.subr.mxu0 0.0
      %2743 = vmatpush1.msra.mxu0 0.0
      %2744 = vmatprep.subr.mxu0 0.0
      %2745 = vmatpush1.msra.mxu0 0.0
      %2746 = vmatprep.subr.mxu0 0.0
      %2747 = vmatpush1.msra.mxu0 0.0
      %2748 = vmatprep.subr.mxu0 0.0
      %2749 = vmatpush1.msra.mxu0 0.0
      %2750 = vmatprep.subr.mxu0 0.0
      %2751 = vmatpush1.msra.mxu0 0.0
      %2752 = vmatprep.subr.mxu0 0.0
      %2753 = vmatpush1.msra.mxu0 0.0
      %2754 = vmatprep.subr.mxu0 0.0
      %2755 = vmatpush1.msra.mxu0 0.0
      %2756 = vmatprep.subr.mxu0 0.0
      %2757 = vmatpush1.msra.mxu0 0.0
      %2758 = vmatprep.subr.mxu0 0.0
      %2759 = vmatpush1.msra.mxu0 0.0
      %2760 = vmatprep.subr.mxu0 0.0
      %2761 = vmatpush1.msra.mxu0 0.0
      %2762 = vmatprep.subr.mxu0 0.0
      %2763 = vmatpush1.msra.mxu0 0.0
      %2764 = vmatprep.mubr.f32.mxu0 0.0
      %2765 = vmatmul.mubr.f32.gmra.mrb[0].mxu0 %v2686
      %v2766 = vpop.f32.mrb[0].mxu0
      %v2767 = vadd.f32 0.0, %v2766
      %v2768 = vpop.f32.mrb[0].mxu0
      %v2769 = vadd.f32 0.0, %v2768
      %2770 = vmatprep.mubr.f32.mxu0 0.0
      %2771 = vmatmul.mubr.f32.gmra.mrb[0].mxu0 %v2689
      %v2772 = vpop.f32.mrb[0].mxu0
      %v2773 = vadd.f32 0.0, %v2772
      %v2774 = vpop.f32.mrb[0].mxu0
      %v2775 = vadd.f32 0.0, %v2774
      %2776 = vmatprep.mubr.f32.mxu0 0.0
      %2777 = vmatmul.mubr.f32.gmra.mrb[0].mxu0 %v2692
      %v2778 = vpop.f32.mrb[0].mxu0
      %v2779 = vadd.f32 0.0, %v2778
      %v2780 = vpop.f32.mrb[0].mxu0
      %v2781 = vadd.f32 0.0, %v2780
      %2782 = vmatprep.mubr.f32.mxu0 0.0
      %2783 = vmatmul.mubr.f32.gmra.mrb[0].mxu0 %v2695
      %v2784 = vpop.f32.mrb[0].mxu0
      %v2785 = vadd.f32 0.0, %v2784
      %v2786 = vpop.f32.mrb[0].mxu0
      %v2787 = vadd.f32 0.0, %v2786
      %2788 = vmatprep.mubr.f32.mxu0 0.0
      %2789 = vmatmul.mubr.f32.gmra.mrb[0].mxu0 %v2698
      %v2790 = vpop.f32.mrb[0].mxu0
      %v2791 = vadd.f32 0.0, %v2790
      %v2792 = vpop.f32.mrb[0].mxu0
      %v2793 = vadd.f32 0.0, %v2792
      %2794 = vdwg.mxu0
      %2795 = vmatprep.subr.mxu0 %v2594
      %2796 = vmatpush1.msra.mxu0 %v2592
      %2797 = vmatprep.subr.mxu0 %v2600
      %2798 = vmatpush1.msra.mxu0 %v2598
      %2799 = vmatprep.subr.mxu0 0.0
      %2800 = vmatpush1.msra.mxu0 0.0
      %2801 = vmatprep.subr.mxu0 0.0
      %2802 = vmatpush1.msra.mxu0 0.0
      %2803 = vmatprep.subr.mxu0 0.0
      %2804 = vmatpush1.msra.mxu0 0.0
      %2805 = vmatprep.subr.mxu0 0.0
      %2806 = vmatpush1.msra.mxu0 0.0
      %2807 = vmatprep.subr.mxu0 0.0
      %2808 = vmatpush1.msra.mxu0 0.0
      %2809 = vmatprep.subr.mxu0 0.0
      %2810 = vmatpush1.msra.mxu0 0.0
      %2811 = vmatprep.subr.mxu0 0.0
      %2812 = vmatpush1.msra.mxu0 0.0
      %2813 = vmatprep.subr.mxu0 0.0
      %2814 = vmatpush1.msra.mxu0 0.0
      %2815 = vmatprep.subr.mxu0 0.0
      %2816 = vmatpush1.msra.mxu0 0.0
      %2817 = vmatprep.subr.mxu0 0.0
      %2818 = vmatpush1.msra.mxu0 0.0
      %2819 = vmatprep.subr.mxu0 0.0
      %2820 = vmatpush1.msra.mxu0 0.0
      %2821 = vmatprep.subr.mxu0 0.0
      %2822 = vmatpush1.msra.mxu0 0.0
      %2823 = vmatprep.subr.mxu0 0.0
      %2824 = vmatpush1.msra.mxu0 0.0
      %2825 = vmatprep.subr.mxu0 0.0
      %2826 = vmatpush1.msra.mxu0 0.0
      %2827 = vmatprep.subr.mxu0 0.0
      %2828 = vmatpush1.msra.mxu0 0.0
      %2829 = vmatprep.subr.mxu0 0.0
      %2830 = vmatpush1.msra.mxu0 0.0
      %2831 = vmatprep.subr.mxu0 0.0
      %2832 = vmatpush1.msra.mxu0 0.0
      %2833 = vmatprep.subr.mxu0 0.0
      %2834 = vmatpush1.msra.mxu0 0.0
      %2835 = vmatprep.subr.mxu0 0.0
      %2836 = vmatpush1.msra.mxu0 0.0
      %2837 = vmatprep.subr.mxu0 0.0
      %2838 = vmatpush1.msra.mxu0 0.0
      %2839 = vmatprep.subr.mxu0 0.0
      %2840 = vmatpush1.msra.mxu0 0.0
      %2841 = vmatprep.subr.mxu0 0.0
      %2842 = vmatpush1.msra.mxu0 0.0
      %2843 = vmatprep.subr.mxu0 0.0
      %2844 = vmatpush1.msra.mxu0 0.0
      %2845 = vmatprep.subr.mxu0 0.0
      %2846 = vmatpush1.msra.mxu0 0.0
      %2847 = vmatprep.subr.mxu0 0.0
      %2848 = vmatpush1.msra.mxu0 0.0
      %2849 = vmatprep.subr.mxu0 0.0
      %2850 = vmatpush1.msra.mxu0 0.0
      %2851 = vmatprep.subr.mxu0 0.0
      %2852 = vmatpush1.msra.mxu0 0.0
      %2853 = vmatprep.subr.mxu0 0.0
      %2854 = vmatpush1.msra.mxu0 0.0
      %2855 = vmatprep.subr.mxu0 0.0
      %2856 = vmatpush1.msra.mxu0 0.0
      %2857 = vmatprep.subr.mxu0 0.0
      %2858 = vmatpush1.msra.mxu0 0.0
      %2859 = vmatprep.mubr.f32.mxu0 0.0
      %2860 = vmatmul.mubr.f32.gmra.mrb[0].mxu0 %v2686
      %v2861 = vpop.f32.mrb[0].mxu0
      %v2862 = vadd.f32 0.0, %v2861
      %v2863 = vpop.f32.mrb[0].mxu0
      %v2864 = vadd.f32 0.0, %v2863
      %2865 = vmatprep.mubr.f32.mxu0 0.0
      %2866 = vmatmul.mubr.f32.gmra.mrb[0].mxu0 %v2689
      %v2867 = vpop.f32.mrb[0].mxu0
      %v2868 = vadd.f32 0.0, %v2867
      %v2869 = vpop.f32.mrb[0].mxu0
      %v2870 = vadd.f32 0.0, %v2869
      %2871 = vmatprep.mubr.f32.mxu0 0.0
      %2872 = vmatmul.mubr.f32.gmra.mrb[0].mxu0 %v2692
      %v2873 = vpop.f32.mrb[0].mxu0
      %v2874 = vadd.f32 0.0, %v2873
      %v2875 = vpop.f32.mrb[0].mxu0
      %v2876 = vadd.f32 0.0, %v2875
      %2877 = vmatprep.mubr.f32.mxu0 0.0
      %2878 = vmatmul.mubr.f32.gmra.mrb[0].mxu0 %v2695
      %v2879 = vpop.f32.mrb[0].mxu0
      %v2880 = vadd.f32 0.0, %v2879
      %v2881 = vpop.f32.mrb[0].mxu0
      %v2882 = vadd.f32 0.0, %v2881
      %2883 = vmatprep.mubr.f32.mxu0 0.0
      %2884 = vmatmul.mubr.f32.gmra.mrb[0].mxu0 %v2698
      %v2885 = vpop.f32.mrb[0].mxu0
      %v2886 = vadd.f32 0.0, %v2885
      %v2887 = vpop.f32.mrb[0].mxu0
      %v2888 = vadd.f32 0.0, %v2887
      %2889 = vdwg.mxu0
      %2890 = vmatprep.subr.mxu0 %v2671
      %2891 = vmatpush1.msra.mxu0 %v2669
      %2892 = vmatprep.subr.mxu0 %v2677
      %2893 = vmatpush1.msra.mxu0 %v2675
      %2894 = vmatprep.subr.mxu0 0.0
      %2895 = vmatpush1.msra.mxu0 0.0
      %2896 = vmatprep.subr.mxu0 0.0
      %2897 = vmatpush1.msra.mxu0 0.0
      %2898 = vmatprep.subr.mxu0 0.0
      %2899 = vmatpush1.msra.mxu0 0.0
      %2900 = vmatprep.subr.mxu0 0.0
      %2901 = vmatpush1.msra.mxu0 0.0
      %2902 = vmatprep.subr.mxu0 0.0
      %2903 = vmatpush1.msra.mxu0 0.0
      %2904 = vmatprep.subr.mxu0 0.0
      %2905 = vmatpush1.msra.mxu0 0.0
      %2906 = vmatprep.subr.mxu0 0.0
      %2907 = vmatpush1.msra.mxu0 0.0
      %2908 = vmatprep.subr.mxu0 0.0
      %2909 = vmatpush1.msra.mxu0 0.0
      %2910 = vmatprep.subr.mxu0 0.0
      %2911 = vmatpush1.msra.mxu0 0.0
      %2912 = vmatprep.subr.mxu0 0.0
      %2913 = vmatpush1.msra.mxu0 0.0
      %2914 = vmatprep.subr.mxu0 0.0
      %2915 = vmatpush1.msra.mxu0 0.0
      %2916 = vmatprep.subr.mxu0 0.0
      %2917 = vmatpush1.msra.mxu0 0.0
      %2918 = vmatprep.subr.mxu0 0.0
      %2919 = vmatpush1.msra.mxu0 0.0
      %2920 = vmatprep.subr.mxu0 0.0
      %2921 = vmatpush1.msra.mxu0 0.0
      %2922 = vmatprep.subr.mxu0 0.0
      %2923 = vmatpush1.msra.mxu0 0.0
      %2924 = vmatprep.subr.mxu0 0.0
      %2925 = vmatpush1.msra.mxu0 0.0
      %2926 = vmatprep.subr.mxu0 0.0
      %2927 = vmatpush1.msra.mxu0 0.0
      %2928 = vmatprep.subr.mxu0 0.0
      %2929 = vmatpush1.msra.mxu0 0.0
      %2930 = vmatprep.subr.mxu0 0.0
      %2931 = vmatpush1.msra.mxu0 0.0
      %2932 = vmatprep.subr.mxu0 0.0
      %2933 = vmatpush1.msra.mxu0 0.0
      %2934 = vmatprep.subr.mxu0 0.0
      %2935 = vmatpush1.msra.mxu0 0.0
      %2936 = vmatprep.subr.mxu0 0.0
      %2937 = vmatpush1.msra.mxu0 0.0
      %2938 = vmatprep.subr.mxu0 0.0
      %2939 = vmatpush1.msra.mxu0 0.0
      %2940 = vmatprep.subr.mxu0 0.0
      %2941 = vmatpush1.msra.mxu0 0.0
      %2942 = vmatprep.subr.mxu0 0.0
      %2943 = vmatpush1.msra.mxu0 0.0
      %2944 = vmatprep.subr.mxu0 0.0
      %2945 = vmatpush1.msra.mxu0 0.0
      %2946 = vmatprep.subr.mxu0 0.0
      %2947 = vmatpush1.msra.mxu0 0.0
      %2948 = vmatprep.subr.mxu0 0.0
      %2949 = vmatpush1.msra.mxu0 0.0
      %2950 = vmatprep.subr.mxu0 0.0
      %2951 = vmatpush1.msra.mxu0 0.0
      %2952 = vmatprep.subr.mxu0 0.0
      %2953 = vmatpush1.msra.mxu0 0.0
      %2954 = vmatprep.mubr.f32.mxu0 0.0
      %2955 = vmatmul.mubr.f32.gmra.mrb[0].mxu0 %v2686
      %v2956 = vpop.f32.mrb[0].mxu0
      %v2957 = vadd.f32 0.0, %v2956
      %v2958 = vpop.f32.mrb[0].mxu0
      %v2959 = vadd.f32 0.0, %v2958
      %2960 = vmatprep.mubr.f32.mxu0 0.0
      %2961 = vmatmul.mubr.f32.gmra.mrb[0].mxu0 %v2689
      %v2962 = vpop.f32.mrb[0].mxu0
      %v2963 = vadd.f32 0.0, %v2962
      %v2964 = vpop.f32.mrb[0].mxu0
      %v2965 = vadd.f32 0.0, %v2964
      %2966 = vmatprep.mubr.f32.mxu0 0.0
      %2967 = vmatmul.mubr.f32.gmra.mrb[0].mxu0 %v2692
      %v2968 = vpop.f32.mrb[0].mxu0
      %v2969 = vadd.f32 0.0, %v2968
      %v2970 = vpop.f32.mrb[0].mxu0
      %v2971 = vadd.f32 0.0, %v2970
      %2972 = vmatprep.mubr.f32.mxu0 0.0
      %2973 = vmatmul.mubr.f32.gmra.mrb[0].mxu0 %v2695
      %v2974 = vpop.f32.mrb[0].mxu0
      %v2975 = vadd.f32 0.0, %v2974
      %v2976 = vpop.f32.mrb[0].mxu0
      %v2977 = vadd.f32 0.0, %v2976
      %2978 = vmatprep.mubr.f32.mxu0 0.0
      %2979 = vmatmul.mubr.f32.gmra.mrb[0].mxu0 %v2698
      %v2980 = vpop.f32.mrb[0].mxu0
      %v2981 = vadd.f32 0.0, %v2980
      %v2982 = vpop.f32.mrb[0].mxu0
      %v2983 = vadd.f32 0.0, %v2982
      %2984 = vdwg.mxu0
      %v2985 = vadd.f32 %v2346, %v2767
      %v2986 = vadd.f32 %v2347, %v2769
      %v2987 = vadd.f32 %v2348, %v2862
      %v2988 = vadd.f32 %v2349, %v2864
      %v2989 = vadd.f32 %v2350, %v2957
      %v2990 = vadd.f32 %v2351, %v2959
      %v2991 = vadd.f32 %v2352, %v2773
      %v2992 = vadd.f32 %v2353, %v2775
      %v2993 = vadd.f32 %v2354, %v2868
      %v2994 = vadd.f32 %v2355, %v2870
      %v2995 = vadd.f32 %v2356, %v2963
      %v2996 = vadd.f32 %v2357, %v2965
      %v2997 = vadd.f32 %v2358, %v2779
      %v2998 = vadd.f32 %v2359, %v2781
      %v2999 = vadd.f32 %v2360, %v2874
      %v3000 = vadd.f32 %v2361, %v2876
      %v3001 = vadd.f32 %v2362, %v2969
      %v3002 = vadd.f32 %v2363, %v2971
      %v3003 = vadd.f32 %v2364, %v2785
      %v3004 = vadd.f32 %v2365, %v2787
      %v3005 = vadd.f32 %v2366, %v2880
      %v3006 = vadd.f32 %v2367, %v2882
      %v3007 = vadd.f32 %v2368, %v2975
      %v3008 = vadd.f32 %v2369, %v2977
      %v3009 = vadd.f32 %v2370, %v2791
      %v3010 = vadd.f32 %v2371, %v2793
      %v3011 = vadd.f32 %v2372, %v2886
      %v3012 = vadd.f32 %v2373, %v2888
      %v3013 = vadd.f32 %v2374, %v2981
      %v3014 = vadd.f32 %v2375, %v2983
      %v3015 = vld [vmem:[%s6] ss:$8 sm:$0xf]
      %v3016 = vld [vmem:[%s6] ss:$8 sm:$0x30]
      %v3017 = vor.u32 %v3015, %v3016
      %v3019 = vlaneseq
      %v3020 = vshrl.u32 %v3019, 7
      %v3021 = vsub.s32 0, %v3020
      %v3022 = vrot.slane %v3017, %v3021
      %v3023 = vlaneseq
      %v3024 = vshrl.u32 %v3023, 7
      %v3025 = vsub.s32 1, %v3024
      %v3026 = vrot.slane %v3017, %v3025
      %v3027 = vlaneseq
      %v3028 = vshrl.u32 %v3027, 7
      %v3029 = vsub.s32 2, %v3028
      %v3030 = vrot.slane %v3017, %v3029
      %v3031 = vlaneseq
      %v3032 = vshrl.u32 %v3031, 7
      %v3033 = vsub.s32 3, %v3032
      %v3034 = vrot.slane %v3017, %v3033
      %v3035 = vlaneseq
      %v3036 = vshrl.u32 %v3035, 7
      %v3037 = vsub.s32 4, %v3036
      %v3038 = vrot.slane %v3017, %v3037
      %v3039 = vlaneseq
      %v3040 = vshrl.u32 %v3039, 7
      %v3041 = vsub.s32 5, %v3040
      %v3042 = vrot.slane %v3017, %v3041
      %v3049 = vadd.f32 %v2985, %v3022
      %v3050 = vadd.f32 %v2986, %v3026
      %v3051 = vadd.f32 %v2987, %v3030
      %v3052 = vadd.f32 %v2988, %v3034
      %v3053 = vadd.f32 %v2989, %v3038
      %v3054 = vadd.f32 %v2990, %v3042
      %v3055 = vadd.f32 %v2991, %v3022
      %v3056 = vadd.f32 %v2992, %v3026
      %v3057 = vadd.f32 %v2993, %v3030
      %v3058 = vadd.f32 %v2994, %v3034
      %v3059 = vadd.f32 %v2995, %v3038
      %v3060 = vadd.f32 %v2996, %v3042
      %v3061 = vadd.f32 %v2997, %v3022
      %v3062 = vadd.f32 %v2998, %v3026
      %v3063 = vadd.f32 %v2999, %v3030
      %v3064 = vadd.f32 %v3000, %v3034
      %v3065 = vadd.f32 %v3001, %v3038
      %v3066 = vadd.f32 %v3002, %v3042
      %v3067 = vadd.f32 %v3003, %v3022
      %v3068 = vadd.f32 %v3004, %v3026
      %v3069 = vadd.f32 %v3005, %v3030
      %v3070 = vadd.f32 %v3006, %v3034
      %v3071 = vadd.f32 %v3007, %v3038
      %v3072 = vadd.f32 %v3008, %v3042
      %v3073 = vadd.f32 %v3009, %v3022
      %v3074 = vadd.f32 %v3010, %v3026
      %v3075 = vadd.f32 %v3011, %v3030
      %v3076 = vadd.f32 %v3012, %v3034
      %v3077 = vadd.f32 %v3013, %v3038
      %v3078 = vadd.f32 %v3014, %v3042
      %v3079 = vadd.f32 %v3049, 3.0
      %v3080 = vadd.f32 %v3050, 3.0
      %v3081 = vadd.f32 %v3051, 3.0
      %v3082 = vadd.f32 %v3052, 3.0
      %v3083 = vadd.f32 %v3053, 3.0
      %v3084 = vadd.f32 %v3054, 3.0
      %v3085 = vadd.f32 %v3055, 3.0
      %v3086 = vadd.f32 %v3056, 3.0
      %v3087 = vadd.f32 %v3057, 3.0
      %v3088 = vadd.f32 %v3058, 3.0
      %v3089 = vadd.f32 %v3059, 3.0
      %v3090 = vadd.f32 %v3060, 3.0
      %v3091 = vadd.f32 %v3061, 3.0
      %v3092 = vadd.f32 %v3062, 3.0
      %v3093 = vadd.f32 %v3063, 3.0
      %v3094 = vadd.f32 %v3064, 3.0
      %v3095 = vadd.f32 %v3065, 3.0
      %v3096 = vadd.f32 %v3066, 3.0
      %v3097 = vadd.f32 %v3067, 3.0
      %v3098 = vadd.f32 %v3068, 3.0
      %v3099 = vadd.f32 %v3069, 3.0
      %v3100 = vadd.f32 %v3070, 3.0
      %v3101 = vadd.f32 %v3071, 3.0
      %v3102 = vadd.f32 %v3072, 3.0
      %v3103 = vadd.f32 %v3073, 3.0
      %v3104 = vadd.f32 %v3074, 3.0
      %v3105 = vadd.f32 %v3075, 3.0
      %v3106 = vadd.f32 %v3076, 3.0
      %v3107 = vadd.f32 %v3077, 3.0
      %v3108 = vadd.f32 %v3078, 3.0
      %v3109 = vmax.f32 %v3079, 0.0
      %v3110 = vmax.f32 %v3080, 0.0
      %v3111 = vmax.f32 %v3081, 0.0
      %v3112 = vmax.f32 %v3082, 0.0
      %v3113 = vmax.f32 %v3083, 0.0
      %v3114 = vmax.f32 %v3084, 0.0
      %v3115 = vmax.f32 %v3085, 0.0
      %v3116 = vmax.f32 %v3086, 0.0
      %v3117 = vmax.f32 %v3087, 0.0
      %v3118 = vmax.f32 %v3088, 0.0
      %v3119 = vmax.f32 %v3089, 0.0
      %v3120 = vmax.f32 %v3090, 0.0
      %v3121 = vmax.f32 %v3091, 0.0
      %v3122 = vmax.f32 %v3092, 0.0
      %v3123 = vmax.f32 %v3093, 0.0
      %v3124 = vmax.f32 %v3094, 0.0
      %v3125 = vmax.f32 %v3095, 0.0
      %v3126 = vmax.f32 %v3096, 0.0
      %v3127 = vmax.f32 %v3097, 0.0
      %v3128 = vmax.f32 %v3098, 0.0
      %v3129 = vmax.f32 %v3099, 0.0
      %v3130 = vmax.f32 %v3100, 0.0
      %v3131 = vmax.f32 %v3101, 0.0
      %v3132 = vmax.f32 %v3102, 0.0
      %v3133 = vmax.f32 %v3103, 0.0
      %v3134 = vmax.f32 %v3104, 0.0
      %v3135 = vmax.f32 %v3105, 0.0
      %v3136 = vmax.f32 %v3106, 0.0
      %v3137 = vmax.f32 %v3107, 0.0
      %v3138 = vmax.f32 %v3108, 0.0
      %v3139 = vmin.f32 %v3109, 6.0
      %v3140 = vmin.f32 %v3110, 6.0
      %v3141 = vmin.f32 %v3111, 6.0
      %v3142 = vmin.f32 %v3112, 6.0
      %v3143 = vmin.f32 %v3113, 6.0
      %v3144 = vmin.f32 %v3114, 6.0
      %v3145 = vmin.f32 %v3115, 6.0
      %v3146 = vmin.f32 %v3116, 6.0
      %v3147 = vmin.f32 %v3117, 6.0
      %v3148 = vmin.f32 %v3118, 6.0
      %v3149 = vmin.f32 %v3119, 6.0
      %v3150 = vmin.f32 %v3120, 6.0
      %v3151 = vmin.f32 %v3121, 6.0
      %v3152 = vmin.f32 %v3122, 6.0
      %v3153 = vmin.f32 %v3123, 6.0
      %v3154 = vmin.f32 %v3124, 6.0
      %v3155 = vmin.f32 %v3125, 6.0
      %v3156 = vmin.f32 %v3126, 6.0
      %v3157 = vmin.f32 %v3127, 6.0
      %v3158 = vmin.f32 %v3128, 6.0
      %v3159 = vmin.f32 %v3129, 6.0
      %v3160 = vmin.f32 %v3130, 6.0
      %v3161 = vmin.f32 %v3131, 6.0
      %v3162 = vmin.f32 %v3132, 6.0
      %v3163 = vmin.f32 %v3133, 6.0
      %v3164 = vmin.f32 %v3134, 6.0
      %v3165 = vmin.f32 %v3135, 6.0
      %v3166 = vmin.f32 %v3136, 6.0
      %v3167 = vmin.f32 %v3137, 6.0
      %v3168 = vmin.f32 %v3138, 6.0
      %v3169 = vmul.f32 %v3049, %v3139
      %v3170 = vmul.f32 %v3050, %v3140
      %v3171 = vmul.f32 %v3051, %v3141
      %v3172 = vmul.f32 %v3052, %v3142
      %v3173 = vmul.f32 %v3053, %v3143
      %v3174 = vmul.f32 %v3054, %v3144
      %v3175 = vmul.f32 %v3055, %v3145
      %v3176 = vmul.f32 %v3056, %v3146
      %v3177 = vmul.f32 %v3057, %v3147
      %v3178 = vmul.f32 %v3058, %v3148
      %v3179 = vmul.f32 %v3059, %v3149
      %v3180 = vmul.f32 %v3060, %v3150
      %v3181 = vmul.f32 %v3061, %v3151
      %v3182 = vmul.f32 %v3062, %v3152
      %v3183 = vmul.f32 %v3063, %v3153
      %v3184 = vmul.f32 %v3064, %v3154
      %v3185 = vmul.f32 %v3065, %v3155
      %v3186 = vmul.f32 %v3066, %v3156
      %v3187 = vmul.f32 %v3067, %v3157
      %v3188 = vmul.f32 %v3068, %v3158
      %v3189 = vmul.f32 %v3069, %v3159
      %v3190 = vmul.f32 %v3070, %v3160
      %v3191 = vmul.f32 %v3071, %v3161
      %v3192 = vmul.f32 %v3072, %v3162
      %v3193 = vmul.f32 %v3073, %v3163
      %v3194 = vmul.f32 %v3074, %v3164
      %v3195 = vmul.f32 %v3075, %v3165
      %v3196 = vmul.f32 %v3076, %v3166
      %v3197 = vmul.f32 %v3077, %v3167
      %v3198 = vmul.f32 %v3078, %v3168
      %v3199 = vmul.f32 %v3169, 0.16666667
      %v3200 = vmul.f32 %v3170, 0.16666667
      %v3201 = vmul.f32 %v3171, 0.16666667
      %v3202 = vmul.f32 %v3172, 0.16666667
      %v3203 = vmul.f32 %v3173, 0.16666667
      %v3204 = vmul.f32 %v3174, 0.16666667
      %v3205 = vmul.f32 %v3175, 0.16666667
      %v3206 = vmul.f32 %v3176, 0.16666667
      %v3207 = vmul.f32 %v3177, 0.16666667
      %v3208 = vmul.f32 %v3178, 0.16666667
      %v3209 = vmul.f32 %v3179, 0.16666667
      %v3210 = vmul.f32 %v3180, 0.16666667
      %v3211 = vmul.f32 %v3181, 0.16666667
      %v3212 = vmul.f32 %v3182, 0.16666667
      %v3213 = vmul.f32 %v3183, 0.16666667
      %v3214 = vmul.f32 %v3184, 0.16666667
      %v3215 = vmul.f32 %v3185, 0.16666667
      %v3216 = vmul.f32 %v3186, 0.16666667
      %v3217 = vmul.f32 %v3187, 0.16666667
      %v3218 = vmul.f32 %v3188, 0.16666667
      %v3219 = vmul.f32 %v3189, 0.16666667
      %v3220 = vmul.f32 %v3190, 0.16666667
      %v3221 = vmul.f32 %v3191, 0.16666667
      %v3222 = vmul.f32 %v3192, 0.16666667
      %v3223 = vmul.f32 %v3193, 0.16666667
      %v3224 = vmul.f32 %v3194, 0.16666667
      %v3225 = vmul.f32 %v3195, 0.16666667
      %v3226 = vmul.f32 %v3196, 0.16666667
      %v3227 = vmul.f32 %v3197, 0.16666667
      %v3228 = vmul.f32 %v3198, 0.16666667
      %v3229 = vmax.f32 %v3049, 0.0
      %v3230 = vmax.f32 %v3050, 0.0
      %v3231 = vmax.f32 %v3051, 0.0
      %v3232 = vmax.f32 %v3052, 0.0
      %v3233 = vmax.f32 %v3053, 0.0
      %v3234 = vmax.f32 %v3054, 0.0
      %v3235 = vmax.f32 %v3055, 0.0
      %v3236 = vmax.f32 %v3056, 0.0
      %v3237 = vmax.f32 %v3057, 0.0
      %v3238 = vmax.f32 %v3058, 0.0
      %v3239 = vmax.f32 %v3059, 0.0
      %v3240 = vmax.f32 %v3060, 0.0
      %v3241 = vmax.f32 %v3061, 0.0
      %v3242 = vmax.f32 %v3062, 0.0
      %v3243 = vmax.f32 %v3063, 0.0
      %v3244 = vmax.f32 %v3064, 0.0
      %v3245 = vmax.f32 %v3065, 0.0
      %v3246 = vmax.f32 %v3066, 0.0
      %v3247 = vmax.f32 %v3067, 0.0
      %v3248 = vmax.f32 %v3068, 0.0
      %v3249 = vmax.f32 %v3069, 0.0
      %v3250 = vmax.f32 %v3070, 0.0
      %v3251 = vmax.f32 %v3071, 0.0
      %v3252 = vmax.f32 %v3072, 0.0
      %v3253 = vmax.f32 %v3073, 0.0
      %v3254 = vmax.f32 %v3074, 0.0
      %v3255 = vmax.f32 %v3075, 0.0
      %v3256 = vmax.f32 %v3076, 0.0
      %v3257 = vmax.f32 %v3077, 0.0
      %v3258 = vmax.f32 %v3078, 0.0
      %v3259 = vmin.f32 %v3229, 6.0
      %v3260 = vmin.f32 %v3230, 6.0
      %v3261 = vmin.f32 %v3231, 6.0
      %v3262 = vmin.f32 %v3232, 6.0
      %v3263 = vmin.f32 %v3233, 6.0
      %v3264 = vmin.f32 %v3234, 6.0
      %v3265 = vmin.f32 %v3235, 6.0
      %v3266 = vmin.f32 %v3236, 6.0
      %v3267 = vmin.f32 %v3237, 6.0
      %v3268 = vmin.f32 %v3238, 6.0
      %v3269 = vmin.f32 %v3239, 6.0
      %v3270 = vmin.f32 %v3240, 6.0
      %v3271 = vmin.f32 %v3241, 6.0
      %v3272 = vmin.f32 %v3242, 6.0
      %v3273 = vmin.f32 %v3243, 6.0
      %v3274 = vmin.f32 %v3244, 6.0
      %v3275 = vmin.f32 %v3245, 6.0
      %v3276 = vmin.f32 %v3246, 6.0
      %v3277 = vmin.f32 %v3247, 6.0
      %v3278 = vmin.f32 %v3248, 6.0
      %v3279 = vmin.f32 %v3249, 6.0
      %v3280 = vmin.f32 %v3250, 6.0
      %v3281 = vmin.f32 %v3251, 6.0
      %v3282 = vmin.f32 %v3252, 6.0
      %v3283 = vmin.f32 %v3253, 6.0
      %v3284 = vmin.f32 %v3254, 6.0
      %v3285 = vmin.f32 %v3255, 6.0
      %v3286 = vmin.f32 %v3256, 6.0
      %v3287 = vmin.f32 %v3257, 6.0
      %v3288 = vmin.f32 %v3258, 6.0
      %v3289 = vmin.f32 %v3049, 0.0
      %v3290 = vmin.f32 %v3050, 0.0
      %v3291 = vmin.f32 %v3051, 0.0
      %v3292 = vmin.f32 %v3052, 0.0
      %v3293 = vmin.f32 %v3053, 0.0
      %v3294 = vmin.f32 %v3054, 0.0
      %v3295 = vmin.f32 %v3055, 0.0
      %v3296 = vmin.f32 %v3056, 0.0
      %v3297 = vmin.f32 %v3057, 0.0
      %v3298 = vmin.f32 %v3058, 0.0
      %v3299 = vmin.f32 %v3059, 0.0
      %v3300 = vmin.f32 %v3060, 0.0
      %v3301 = vmin.f32 %v3061, 0.0
      %v3302 = vmin.f32 %v3062, 0.0
      %v3303 = vmin.f32 %v3063, 0.0
      %v3304 = vmin.f32 %v3064, 0.0
      %v3305 = vmin.f32 %v3065, 0.0
      %v3306 = vmin.f32 %v3066, 0.0
      %v3307 = vmin.f32 %v3067, 0.0
      %v3308 = vmin.f32 %v3068, 0.0
      %v3309 = vmin.f32 %v3069, 0.0
      %v3310 = vmin.f32 %v3070, 0.0
      %v3311 = vmin.f32 %v3071, 0.0
      %v3312 = vmin.f32 %v3072, 0.0
      %v3313 = vmin.f32 %v3073, 0.0
      %v3314 = vmin.f32 %v3074, 0.0
      %v3315 = vmin.f32 %v3075, 0.0
      %v3316 = vmin.f32 %v3076, 0.0
      %v3317 = vmin.f32 %v3077, 0.0
      %v3318 = vmin.f32 %v3078, 0.0
      %v3319 = vmul.f32 %v3289, 0.01
      %v3320 = vmul.f32 %v3290, 0.01
      %v3321 = vmul.f32 %v3291, 0.01
      %v3322 = vmul.f32 %v3292, 0.01
      %v3323 = vmul.f32 %v3293, 0.01
      %v3324 = vmul.f32 %v3294, 0.01
      %v3325 = vmul.f32 %v3295, 0.01
      %v3326 = vmul.f32 %v3296, 0.01
      %v3327 = vmul.f32 %v3297, 0.01
      %v3328 = vmul.f32 %v3298, 0.01
      %v3329 = vmul.f32 %v3299, 0.01
      %v3330 = vmul.f32 %v3300, 0.01
      %v3331 = vmul.f32 %v3301, 0.01
      %v3332 = vmul.f32 %v3302, 0.01
      %v3333 = vmul.f32 %v3303, 0.01
      %v3334 = vmul.f32 %v3304, 0.01
      %v3335 = vmul.f32 %v3305, 0.01
      %v3336 = vmul.f32 %v3306, 0.01
      %v3337 = vmul.f32 %v3307, 0.01
      %v3338 = vmul.f32 %v3308, 0.01
      %v3339 = vmul.f32 %v3309, 0.01
      %v3340 = vmul.f32 %v3310, 0.01
      %v3341 = vmul.f32 %v3311, 0.01
      %v3342 = vmul.f32 %v3312, 0.01
      %v3343 = vmul.f32 %v3313, 0.01
      %v3344 = vmul.f32 %v3314, 0.01
      %v3345 = vmul.f32 %v3315, 0.01
      %v3346 = vmul.f32 %v3316, 0.01
      %v3347 = vmul.f32 %v3317, 0.01
      %v3348 = vmul.f32 %v3318, 0.01
      %v3349 = vadd.f32 %v3259, %v3319
      %v3350 = vadd.f32 %v3260, %v3320
      %v3351 = vadd.f32 %v3261, %v3321
      %v3352 = vadd.f32 %v3262, %v3322
      %v3353 = vadd.f32 %v3263, %v3323
      %v3354 = vadd.f32 %v3264, %v3324
      %v3355 = vadd.f32 %v3265, %v3325
      %v3356 = vadd.f32 %v3266, %v3326
      %v3357 = vadd.f32 %v3267, %v3327
      %v3358 = vadd.f32 %v3268, %v3328
      %v3359 = vadd.f32 %v3269, %v3329
      %v3360 = vadd.f32 %v3270, %v3330
      %v3361 = vadd.f32 %v3271, %v3331
      %v3362 = vadd.f32 %v3272, %v3332
      %v3363 = vadd.f32 %v3273, %v3333
      %v3364 = vadd.f32 %v3274, %v3334
      %v3365 = vadd.f32 %v3275, %v3335
      %v3366 = vadd.f32 %v3276, %v3336
      %v3367 = vadd.f32 %v3277, %v3337
      %v3368 = vadd.f32 %v3278, %v3338
      %v3369 = vadd.f32 %v3279, %v3339
      %v3370 = vadd.f32 %v3280, %v3340
      %v3371 = vadd.f32 %v3281, %v3341
      %v3372 = vadd.f32 %v3282, %v3342
      %v3373 = vadd.f32 %v3283, %v3343
      %v3374 = vadd.f32 %v3284, %v3344
      %v3375 = vadd.f32 %v3285, %v3345
      %v3376 = vadd.f32 %v3286, %v3346
      %v3377 = vadd.f32 %v3287, %v3347
      %v3378 = vadd.f32 %v3288, %v3348
      %v3379 = vand.u32 2147483647, %v3049
      %v3380 = vand.u32 2147483647, %v3050
      %v3381 = vand.u32 2147483647, %v3051
      %v3382 = vand.u32 2147483647, %v3052
      %v3383 = vand.u32 2147483647, %v3053
      %v3384 = vand.u32 2147483647, %v3054
      %v3385 = vand.u32 2147483647, %v3055
      %v3386 = vand.u32 2147483647, %v3056
      %v3387 = vand.u32 2147483647, %v3057
      %v3388 = vand.u32 2147483647, %v3058
      %v3389 = vand.u32 2147483647, %v3059
      %v3390 = vand.u32 2147483647, %v3060
      %v3391 = vand.u32 2147483647, %v3061
      %v3392 = vand.u32 2147483647, %v3062
      %v3393 = vand.u32 2147483647, %v3063
      %v3394 = vand.u32 2147483647, %v3064
      %v3395 = vand.u32 2147483647, %v3065
      %v3396 = vand.u32 2147483647, %v3066
      %v3397 = vand.u32 2147483647, %v3067
      %v3398 = vand.u32 2147483647, %v3068
      %v3399 = vand.u32 2147483647, %v3069
      %v3400 = vand.u32 2147483647, %v3070
      %v3401 = vand.u32 2147483647, %v3071
      %v3402 = vand.u32 2147483647, %v3072
      %v3403 = vand.u32 2147483647, %v3073
      %v3404 = vand.u32 2147483647, %v3074
      %v3405 = vand.u32 2147483647, %v3075
      %v3406 = vand.u32 2147483647, %v3076
      %v3407 = vand.u32 2147483647, %v3077
      %v3408 = vand.u32 2147483647, %v3078
      %vm3409 = vcmp.le.f32.partialorder %v3379, 3.0
      %vm3410 = vcmp.le.f32.partialorder %v3380, 3.0
      %vm3411 = vcmp.le.f32.partialorder %v3381, 3.0
      %vm3412 = vcmp.le.f32.partialorder %v3382, 3.0
      %vm3413 = vcmp.le.f32.partialorder %v3383, 3.0
      %vm3414 = vcmp.le.f32.partialorder %v3384, 3.0
      %vm3415 = vcmp.le.f32.partialorder %v3385, 3.0
      %vm3416 = vcmp.le.f32.partialorder %v3386, 3.0
      %vm3417 = vcmp.le.f32.partialorder %v3387, 3.0
      %vm3418 = vcmp.le.f32.partialorder %v3388, 3.0
      %vm3419 = vcmp.le.f32.partialorder %v3389, 3.0
      %vm3420 = vcmp.le.f32.partialorder %v3390, 3.0
      %vm3421 = vcmp.le.f32.partialorder %v3391, 3.0
      %vm3422 = vcmp.le.f32.partialorder %v3392, 3.0
      %vm3423 = vcmp.le.f32.partialorder %v3393, 3.0
      %vm3424 = vcmp.le.f32.partialorder %v3394, 3.0
      %vm3425 = vcmp.le.f32.partialorder %v3395, 3.0
      %vm3426 = vcmp.le.f32.partialorder %v3396, 3.0
      %vm3427 = vcmp.le.f32.partialorder %v3397, 3.0
      %vm3428 = vcmp.le.f32.partialorder %v3398, 3.0
      %vm3429 = vcmp.le.f32.partialorder %v3399, 3.0
      %vm3430 = vcmp.le.f32.partialorder %v3400, 3.0
      %vm3431 = vcmp.le.f32.partialorder %v3401, 3.0
      %vm3432 = vcmp.le.f32.partialorder %v3402, 3.0
      %vm3433 = vcmp.le.f32.partialorder %v3403, 3.0
      %vm3434 = vcmp.le.f32.partialorder %v3404, 3.0
      %vm3435 = vcmp.le.f32.partialorder %v3405, 3.0
      %vm3436 = vcmp.le.f32.partialorder %v3406, 3.0
      %vm3437 = vcmp.le.f32.partialorder %v3407, 3.0
      %vm3438 = vcmp.le.f32.partialorder %v3408, 3.0
      %v3439 = vsel %vm3409, %v3199, %v3349
      %v3440 = vsel %vm3410, %v3200, %v3350
      %v3441 = vsel %vm3411, %v3201, %v3351
      %v3442 = vsel %vm3412, %v3202, %v3352
      %v3443 = vsel %vm3413, %v3203, %v3353
      %v3444 = vsel %vm3414, %v3204, %v3354
      %v3445 = vsel %vm3415, %v3205, %v3355
      %v3446 = vsel %vm3416, %v3206, %v3356
      %v3447 = vsel %vm3417, %v3207, %v3357
      %v3448 = vsel %vm3418, %v3208, %v3358
      %v3449 = vsel %vm3419, %v3209, %v3359
      %v3450 = vsel %vm3420, %v3210, %v3360
      %v3451 = vsel %vm3421, %v3211, %v3361
      %v3452 = vsel %vm3422, %v3212, %v3362
      %v3453 = vsel %vm3423, %v3213, %v3363
      %v3454 = vsel %vm3424, %v3214, %v3364
      %v3455 = vsel %vm3425, %v3215, %v3365
      %v3456 = vsel %vm3426, %v3216, %v3366
      %v3457 = vsel %vm3427, %v3217, %v3367
      %v3458 = vsel %vm3428, %v3218, %v3368
      %v3459 = vsel %vm3429, %v3219, %v3369
      %v3460 = vsel %vm3430, %v3220, %v3370
      %v3461 = vsel %vm3431, %v3221, %v3371
      %v3462 = vsel %vm3432, %v3222, %v3372
      %v3463 = vsel %vm3433, %v3223, %v3373
      %v3464 = vsel %vm3434, %v3224, %v3374
      %v3465 = vsel %vm3435, %v3225, %v3375
      %v3466 = vsel %vm3436, %v3226, %v3376
      %v3467 = vsel %vm3437, %v3227, %v3377
      %v3468 = vsel %vm3438, %v3228, %v3378
      %s3469 = scalar_lea.vmem %s6, 3
      %v3470 = vld [vmem:[%s3469] ss:$8 sm:$0xf]
      %v3471 = vld [vmem:[%s3469] ss:$8 sm:$0x30]
      %v3472 = vor.u32 %v3470, %v3471
      %s3473 = scalar_lea.vmem %s6, 4
      %v3474 = vld [vmem:[%s3473] ss:$8 sm:$0xf]
      %v3475 = vld [vmem:[%s3473] ss:$8 sm:$0x30]
      %v3476 = vor.u32 %v3474, %v3475
      %s3477 = scalar_lea.vmem %s6, 5
      %v3478 = vld [vmem:[%s3477] ss:$8 sm:$0xf]
      %v3479 = vld [vmem:[%s3477] ss:$8 sm:$0x30]
      %v3480 = vor.u32 %v3478, %v3479
      %vm3481 = vcmask 285696
      %v3482 = vsel %vm3481, %v3439, 0.0
      %v3483 = vsel %vm3481, %v3445, 0.0
      %v3484 = vadd.f32 %v3482, %v3483
      %v3485 = vsel %vm3481, %v3451, 0.0
      %v3486 = vadd.f32 %v3484, %v3485
      %v3487 = vsel %vm3481, %v3457, 0.0
      %v3488 = vadd.f32 %v3486, %v3487
      %vm3489 = vcmask 280576
      %v3490 = vsel %vm3489, %v3463, 0.0
      %v3491 = vadd.f32 %v3488, %v3490
      %3492 = vadd.xlane.f32.xlu0 %v3491
      %v3493 = vpop.xlane.xlu0 %3492
      %v3494 = vrot.slane %v3493, 4
      %v3495 = vadd.f32 %v3493, %v3494
      %v3496 = vrot.slane %v3495, 2
      %v3497 = vadd.f32 %v3495, %v3496
      %v3498 = vrot.slane %v3497, 1
      %v3499 = vadd.f32 %v3497, %v3498
      %s3500 = vtos %v3499
      %v3501 = vsel %vm3481, %v3440, 0.0
      %v3502 = vsel %vm3481, %v3446, 0.0
      %v3503 = vadd.f32 %v3501, %v3502
      %v3504 = vsel %vm3481, %v3452, 0.0
      %v3505 = vadd.f32 %v3503, %v3504
      %v3506 = vsel %vm3481, %v3458, 0.0
      %v3507 = vadd.f32 %v3505, %v3506
      %v3508 = vsel %vm3489, %v3464, 0.0
      %v3509 = vadd.f32 %v3507, %v3508
      %3510 = vadd.xlane.f32.xlu0 %v3509
      %v3511 = vpop.xlane.xlu0 %3510
      %v3512 = vrot.slane %v3511, 4
      %v3513 = vadd.f32 %v3511, %v3512
      %v3514 = vrot.slane %v3513, 2
      %v3515 = vadd.f32 %v3513, %v3514
      %v3516 = vrot.slane %v3515, 1
      %v3517 = vadd.f32 %v3515, %v3516
      %s3518 = vtos %v3517
      %s3519 = sadd.f32 %s3500, %s3518
      %s3520 = smul.f32 %s3519, 0.00040816327
      %v3521 = vsel %vm3481, %v3441, 0.0
      %v3522 = vsel %vm3481, %v3447, 0.0
      %v3523 = vadd.f32 %v3521, %v3522
      %v3524 = vsel %vm3481, %v3453, 0.0
      %v3525 = vadd.f32 %v3523, %v3524
      %v3526 = vsel %vm3481, %v3459, 0.0
      %v3527 = vadd.f32 %v3525, %v3526
      %v3528 = vsel %vm3489, %v3465, 0.0
      %v3529 = vadd.f32 %v3527, %v3528
      %3530 = vadd.xlane.f32.xlu0 %v3529
      %v3531 = vpop.xlane.xlu0 %3530
      %v3532 = vrot.slane %v3531, 4
      %v3533 = vadd.f32 %v3531, %v3532
      %v3534 = vrot.slane %v3533, 2
      %v3535 = vadd.f32 %v3533, %v3534
      %v3536 = vrot.slane %v3535, 1
      %v3537 = vadd.f32 %v3535, %v3536
      %s3538 = vtos %v3537
      %v3539 = vsel %vm3481, %v3442, 0.0
      %v3540 = vsel %vm3481, %v3448, 0.0
      %v3541 = vadd.f32 %v3539, %v3540
      %v3542 = vsel %vm3481, %v3454, 0.0
      %v3543 = vadd.f32 %v3541, %v3542
      %v3544 = vsel %vm3481, %v3460, 0.0
      %v3545 = vadd.f32 %v3543, %v3544
      %v3546 = vsel %vm3489, %v3466, 0.0
      %v3547 = vadd.f32 %v3545, %v3546
      %3548 = vadd.xlane.f32.xlu0 %v3547
      %v3549 = vpop.xlane.xlu0 %3548
      %v3550 = vrot.slane %v3549, 4
      %v3551 = vadd.f32 %v3549, %v3550
      %v3552 = vrot.slane %v3551, 2
      %v3553 = vadd.f32 %v3551, %v3552
      %v3554 = vrot.slane %v3553, 1
      %v3555 = vadd.f32 %v3553, %v3554
      %s3556 = vtos %v3555
      %s3557 = sadd.f32 %s3538, %s3556
      %s3558 = smul.f32 %s3557, 0.00040816327
      %v3559 = vsel %vm3481, %v3443, 0.0
      %v3560 = vsel %vm3481, %v3449, 0.0
      %v3561 = vadd.f32 %v3559, %v3560
      %v3562 = vsel %vm3481, %v3455, 0.0
      %v3563 = vadd.f32 %v3561, %v3562
      %v3564 = vsel %vm3481, %v3461, 0.0
      %v3565 = vadd.f32 %v3563, %v3564
      %v3566 = vsel %vm3489, %v3467, 0.0
      %v3567 = vadd.f32 %v3565, %v3566
      %3568 = vadd.xlane.f32.xlu0 %v3567
      %v3569 = vpop.xlane.xlu0 %3568
      %v3570 = vrot.slane %v3569, 4
      %v3571 = vadd.f32 %v3569, %v3570
      %v3572 = vrot.slane %v3571, 2
      %v3573 = vadd.f32 %v3571, %v3572
      %v3574 = vrot.slane %v3573, 1
      %v3575 = vadd.f32 %v3573, %v3574
      %s3576 = vtos %v3575
      %v3577 = vsel %vm3481, %v3444, 0.0
      %v3578 = vsel %vm3481, %v3450, 0.0
      %v3579 = vadd.f32 %v3577, %v3578
      %v3580 = vsel %vm3481, %v3456, 0.0
      %v3581 = vadd.f32 %v3579, %v3580
      %v3582 = vsel %vm3481, %v3462, 0.0
      %v3583 = vadd.f32 %v3581, %v3582
      %v3584 = vsel %vm3489, %v3468, 0.0
      %v3585 = vadd.f32 %v3583, %v3584
      %3586 = vadd.xlane.f32.xlu0 %v3585
      %v3587 = vpop.xlane.xlu0 %3586
      %v3588 = vrot.slane %v3587, 4
      %v3589 = vadd.f32 %v3587, %v3588
      %v3590 = vrot.slane %v3589, 2
      %v3591 = vadd.f32 %v3589, %v3590
      %v3592 = vrot.slane %v3591, 1
      %v3593 = vadd.f32 %v3591, %v3592
      %s3594 = vtos %v3593
      %s3595 = sadd.f32 %s3576, %s3594
      %s3596 = smul.f32 %s3595, 0.00040816327
      %v3597 = vstv %s3520
      %v3598 = vmul.f32 %v3597, %v3472
      %v3599 = vstv %s3558
      %v3600 = vmul.f32 %v3599, %v3476
      %v3601 = vadd.f32 %v3598, %v3600
      %v3602 = vstv %s3596
      %v3603 = vmul.f32 %v3602, %v3480
      %v3604 = vadd.f32 %v3601, %v3603
      %v3606 = vlaneseq
      %v3607 = vshrl.u32 %v3606, 7
      %v3608 = vsub.s32 0, %v3607
      %v3609 = vrot.slane %v3604, %v3608
      %v3610 = vlaneseq
      %v3611 = vshrl.u32 %v3610, 7
      %v3612 = vsub.s32 1, %v3611
      %v3613 = vrot.slane %v3604, %v3612
      %v3614 = vlaneseq
      %v3615 = vshrl.u32 %v3614, 7
      %v3616 = vsub.s32 2, %v3615
      %v3617 = vrot.slane %v3604, %v3616
      %v3618 = vlaneseq
      %v3619 = vshrl.u32 %v3618, 7
      %v3620 = vsub.s32 3, %v3619
      %v3621 = vrot.slane %v3604, %v3620
      %v3622 = vlaneseq
      %v3623 = vshrl.u32 %v3622, 7
      %v3624 = vsub.s32 4, %v3623
      %v3625 = vrot.slane %v3604, %v3624
      %v3626 = vlaneseq
      %v3627 = vshrl.u32 %v3626, 7
      %v3628 = vsub.s32 5, %v3627
      %v3629 = vrot.slane %v3604, %v3628
      %v3636 = vsub.f32 %v3439, %v3609
      %v3637 = vsub.f32 %v3440, %v3613
      %v3638 = vsub.f32 %v3441, %v3617
      %v3639 = vsub.f32 %v3442, %v3621
      %v3640 = vsub.f32 %v3443, %v3625
      %v3641 = vsub.f32 %v3444, %v3629
      %v3642 = vsub.f32 %v3445, %v3609
      %v3643 = vsub.f32 %v3446, %v3613
      %v3644 = vsub.f32 %v3447, %v3617
      %v3645 = vsub.f32 %v3448, %v3621
      %v3646 = vsub.f32 %v3449, %v3625
      %v3647 = vsub.f32 %v3450, %v3629
      %v3648 = vsub.f32 %v3451, %v3609
      %v3649 = vsub.f32 %v3452, %v3613
      %v3650 = vsub.f32 %v3453, %v3617
      %v3651 = vsub.f32 %v3454, %v3621
      %v3652 = vsub.f32 %v3455, %v3625
      %v3653 = vsub.f32 %v3456, %v3629
      %v3654 = vsub.f32 %v3457, %v3609
      %v3655 = vsub.f32 %v3458, %v3613
      %v3656 = vsub.f32 %v3459, %v3617
      %v3657 = vsub.f32 %v3460, %v3621
      %v3658 = vsub.f32 %v3461, %v3625
      %v3659 = vsub.f32 %v3462, %v3629
      %v3660 = vsub.f32 %v3463, %v3609
      %v3661 = vsub.f32 %v3464, %v3613
      %v3662 = vsub.f32 %v3465, %v3617
      %v3663 = vsub.f32 %v3466, %v3621
      %v3664 = vsub.f32 %v3467, %v3625
      %v3665 = vsub.f32 %v3468, %v3629
      %v3666 = vmul.f32 %v3636, %v3636
      %v3667 = vmul.f32 %v3637, %v3637
      %v3668 = vmul.f32 %v3638, %v3638
      %v3669 = vmul.f32 %v3639, %v3639
      %v3670 = vmul.f32 %v3640, %v3640
      %v3671 = vmul.f32 %v3641, %v3641
      %v3672 = vmul.f32 %v3642, %v3642
      %v3673 = vmul.f32 %v3643, %v3643
      %v3674 = vmul.f32 %v3644, %v3644
      %v3675 = vmul.f32 %v3645, %v3645
      %v3676 = vmul.f32 %v3646, %v3646
      %v3677 = vmul.f32 %v3647, %v3647
      %v3678 = vmul.f32 %v3648, %v3648
      %v3679 = vmul.f32 %v3649, %v3649
      %v3680 = vmul.f32 %v3650, %v3650
      %v3681 = vmul.f32 %v3651, %v3651
      %v3682 = vmul.f32 %v3652, %v3652
      %v3683 = vmul.f32 %v3653, %v3653
      %v3684 = vmul.f32 %v3654, %v3654
      %v3685 = vmul.f32 %v3655, %v3655
      %v3686 = vmul.f32 %v3656, %v3656
      %v3687 = vmul.f32 %v3657, %v3657
      %v3688 = vmul.f32 %v3658, %v3658
      %v3689 = vmul.f32 %v3659, %v3659
      %v3690 = vmul.f32 %v3660, %v3660
      %v3691 = vmul.f32 %v3661, %v3661
      %v3692 = vmul.f32 %v3662, %v3662
      %v3693 = vmul.f32 %v3663, %v3663
      %v3694 = vmul.f32 %v3664, %v3664
      %v3695 = vmul.f32 %v3665, %v3665
      %v3696 = vsel %vm3481, %v3666, 0.0
      %v3697 = vsel %vm3481, %v3672, 0.0
      %v3698 = vadd.f32 %v3696, %v3697
      %v3699 = vsel %vm3481, %v3678, 0.0
      %v3700 = vadd.f32 %v3698, %v3699
      %v3701 = vsel %vm3481, %v3684, 0.0
      %v3702 = vadd.f32 %v3700, %v3701
      %v3703 = vsel %vm3489, %v3690, 0.0
      %v3704 = vadd.f32 %v3702, %v3703
      %3705 = vadd.xlane.f32.xlu0 %v3704
      %v3706 = vpop.xlane.xlu0 %3705
      %v3707 = vrot.slane %v3706, 4
      %v3708 = vadd.f32 %v3706, %v3707
      %v3709 = vrot.slane %v3708, 2
      %v3710 = vadd.f32 %v3708, %v3709
      %v3711 = vrot.slane %v3710, 1
      %v3712 = vadd.f32 %v3710, %v3711
      %s3713 = vtos %v3712
      %v3714 = vsel %vm3481, %v3667, 0.0
      %v3715 = vsel %vm3481, %v3673, 0.0
      %v3716 = vadd.f32 %v3714, %v3715
      %v3717 = vsel %vm3481, %v3679, 0.0
      %v3718 = vadd.f32 %v3716, %v3717
      %v3719 = vsel %vm3481, %v3685, 0.0
      %v3720 = vadd.f32 %v3718, %v3719
      %v3721 = vsel %vm3489, %v3691, 0.0
      %v3722 = vadd.f32 %v3720, %v3721
      %3723 = vadd.xlane.f32.xlu0 %v3722
      %v3724 = vpop.xlane.xlu0 %3723
      %v3725 = vrot.slane %v3724, 4
      %v3726 = vadd.f32 %v3724, %v3725
      %v3727 = vrot.slane %v3726, 2
      %v3728 = vadd.f32 %v3726, %v3727
      %v3729 = vrot.slane %v3728, 1
      %v3730 = vadd.f32 %v3728, %v3729
      %s3731 = vtos %v3730
      %s3732 = sadd.f32 %s3713, %s3731
      %s3733 = smul.f32 %s3732, 0.00040816327
      %s3734 = sadd.f32 %s3733, 1e-05
      %v3735 = vstv %s3734
      %v3736 = vrsqrt.pop %v3735
      %s3737 = vtos %v3736
      %v3738 = vsel %vm3481, %v3668, 0.0
      %v3739 = vsel %vm3481, %v3674, 0.0
      %v3740 = vadd.f32 %v3738, %v3739
      %v3741 = vsel %vm3481, %v3680, 0.0
      %v3742 = vadd.f32 %v3740, %v3741
      %v3743 = vsel %vm3481, %v3686, 0.0
      %v3744 = vadd.f32 %v3742, %v3743
      %v3745 = vsel %vm3489, %v3692, 0.0
      %v3746 = vadd.f32 %v3744, %v3745
      %3747 = vadd.xlane.f32.xlu0 %v3746
      %v3748 = vpop.xlane.xlu0 %3747
      %v3749 = vrot.slane %v3748, 4
      %v3750 = vadd.f32 %v3748, %v3749
      %v3751 = vrot.slane %v3750, 2
      %v3752 = vadd.f32 %v3750, %v3751
      %v3753 = vrot.slane %v3752, 1
      %v3754 = vadd.f32 %v3752, %v3753
      %s3755 = vtos %v3754
      %v3756 = vsel %vm3481, %v3669, 0.0
      %v3757 = vsel %vm3481, %v3675, 0.0
      %v3758 = vadd.f32 %v3756, %v3757
      %v3759 = vsel %vm3481, %v3681, 0.0
      %v3760 = vadd.f32 %v3758, %v3759
      %v3761 = vsel %vm3481, %v3687, 0.0
      %v3762 = vadd.f32 %v3760, %v3761
      %v3763 = vsel %vm3489, %v3693, 0.0
      %v3764 = vadd.f32 %v3762, %v3763
      %3765 = vadd.xlane.f32.xlu0 %v3764
      %v3766 = vpop.xlane.xlu0 %3765
      %v3767 = vrot.slane %v3766, 4
      %v3768 = vadd.f32 %v3766, %v3767
      %v3769 = vrot.slane %v3768, 2
      %v3770 = vadd.f32 %v3768, %v3769
      %v3771 = vrot.slane %v3770, 1
      %v3772 = vadd.f32 %v3770, %v3771
      %s3773 = vtos %v3772
      %s3774 = sadd.f32 %s3755, %s3773
      %s3775 = smul.f32 %s3774, 0.00040816327
      %s3776 = sadd.f32 %s3775, 1e-05
      %v3777 = vstv %s3776
      %v3778 = vrsqrt.pop %v3777
      %s3779 = vtos %v3778
      %v3780 = vsel %vm3481, %v3670, 0.0
      %v3781 = vsel %vm3481, %v3676, 0.0
      %v3782 = vadd.f32 %v3780, %v3781
      %v3783 = vsel %vm3481, %v3682, 0.0
      %v3784 = vadd.f32 %v3782, %v3783
      %v3785 = vsel %vm3481, %v3688, 0.0
      %v3786 = vadd.f32 %v3784, %v3785
      %v3787 = vsel %vm3489, %v3694, 0.0
      %v3788 = vadd.f32 %v3786, %v3787
      %3789 = vadd.xlane.f32.xlu0 %v3788
      %v3790 = vpop.xlane.xlu0 %3789
      %v3791 = vrot.slane %v3790, 4
      %v3792 = vadd.f32 %v3790, %v3791
      %v3793 = vrot.slane %v3792, 2
      %v3794 = vadd.f32 %v3792, %v3793
      %v3795 = vrot.slane %v3794, 1
      %v3796 = vadd.f32 %v3794, %v3795
      %s3797 = vtos %v3796
      %v3798 = vsel %vm3481, %v3671, 0.0
      %v3799 = vsel %vm3481, %v3677, 0.0
      %v3800 = vadd.f32 %v3798, %v3799
      %v3801 = vsel %vm3481, %v3683, 0.0
      %v3802 = vadd.f32 %v3800, %v3801
      %v3803 = vsel %vm3481, %v3689, 0.0
      %v3804 = vadd.f32 %v3802, %v3803
      %v3805 = vsel %vm3489, %v3695, 0.0
      %v3806 = vadd.f32 %v3804, %v3805
      %3807 = vadd.xlane.f32.xlu0 %v3806
      %v3808 = vpop.xlane.xlu0 %3807
      %v3809 = vrot.slane %v3808, 4
      %v3810 = vadd.f32 %v3808, %v3809
      %v3811 = vrot.slane %v3810, 2
      %v3812 = vadd.f32 %v3810, %v3811
      %v3813 = vrot.slane %v3812, 1
      %v3814 = vadd.f32 %v3812, %v3813
      %s3815 = vtos %v3814
      %s3816 = sadd.f32 %s3797, %s3815
      %s3817 = smul.f32 %s3816, 0.00040816327
      %s3818 = sadd.f32 %s3817, 1e-05
      %v3819 = vstv %s3818
      %v3820 = vrsqrt.pop %v3819
      %s3821 = vtos %v3820
      %v3822 = vstv %s3737
      %v3823 = vmul.f32 %v3822, %v3472
      %v3824 = vstv %s3779
      %v3825 = vmul.f32 %v3824, %v3476
      %v3826 = vadd.f32 %v3823, %v3825
      %v3827 = vstv %s3821
      %v3828 = vmul.f32 %v3827, %v3480
      %v3829 = vadd.f32 %v3826, %v3828
      %s3830 = scalar_lea.vmem %s6, 1
      %v3831 = vld [vmem:[%s3830] ss:$8 sm:$0xf]
      %v3832 = vld [vmem:[%s3830] ss:$8 sm:$0x30]
      %v3833 = vor.u32 %v3831, %v3832
      %v3834 = vmul.f32 %v3829, %v3833
      %v3836 = vlaneseq
      %v3837 = vshrl.u32 %v3836, 7
      %v3838 = vsub.s32 0, %v3837
      %v3839 = vrot.slane %v3834, %v3838
      %v3840 = vlaneseq
      %v3841 = vshrl.u32 %v3840, 7
      %v3842 = vsub.s32 1, %v3841
      %v3843 = vrot.slane %v3834, %v3842
      %v3844 = vlaneseq
      %v3845 = vshrl.u32 %v3844, 7
      %v3846 = vsub.s32 2, %v3845
      %v3847 = vrot.slane %v3834, %v3846
      %v3848 = vlaneseq
      %v3849 = vshrl.u32 %v3848, 7
      %v3850 = vsub.s32 3, %v3849
      %v3851 = vrot.slane %v3834, %v3850
      %v3852 = vlaneseq
      %v3853 = vshrl.u32 %v3852, 7
      %v3854 = vsub.s32 4, %v3853
      %v3855 = vrot.slane %v3834, %v3854
      %v3856 = vlaneseq
      %v3857 = vshrl.u32 %v3856, 7
      %v3858 = vsub.s32 5, %v3857
      %v3859 = vrot.slane %v3834, %v3858
      %v3866 = vmul.f32 %v3636, %v3839
      %v3867 = vmul.f32 %v3637, %v3843
      %v3868 = vmul.f32 %v3638, %v3847
      %v3869 = vmul.f32 %v3639, %v3851
      %v3870 = vmul.f32 %v3640, %v3855
      %v3871 = vmul.f32 %v3641, %v3859
      %v3872 = vmul.f32 %v3642, %v3839
      %v3873 = vmul.f32 %v3643, %v3843
      %v3874 = vmul.f32 %v3644, %v3847
      %v3875 = vmul.f32 %v3645, %v3851
      %v3876 = vmul.f32 %v3646, %v3855
      %v3877 = vmul.f32 %v3647, %v3859
      %v3878 = vmul.f32 %v3648, %v3839
      %v3879 = vmul.f32 %v3649, %v3843
      %v3880 = vmul.f32 %v3650, %v3847
      %v3881 = vmul.f32 %v3651, %v3851
      %v3882 = vmul.f32 %v3652, %v3855
      %v3883 = vmul.f32 %v3653, %v3859
      %v3884 = vmul.f32 %v3654, %v3839
      %v3885 = vmul.f32 %v3655, %v3843
      %v3886 = vmul.f32 %v3656, %v3847
      %v3887 = vmul.f32 %v3657, %v3851
      %v3888 = vmul.f32 %v3658, %v3855
      %v3889 = vmul.f32 %v3659, %v3859
      %v3890 = vmul.f32 %v3660, %v3839
      %v3891 = vmul.f32 %v3661, %v3843
      %v3892 = vmul.f32 %v3662, %v3847
      %v3893 = vmul.f32 %v3663, %v3851
      %v3894 = vmul.f32 %v3664, %v3855
      %v3895 = vmul.f32 %v3665, %v3859
      %s3896 = scalar_lea.vmem %s6, 2
      %v3897 = vld [vmem:[%s3896] ss:$8 sm:$0xf]
      %v3898 = vld [vmem:[%s3896] ss:$8 sm:$0x30]
      %v3899 = vor.u32 %v3897, %v3898
      %v3901 = vlaneseq
      %v3902 = vshrl.u32 %v3901, 7
      %v3903 = vsub.s32 0, %v3902
      %v3904 = vrot.slane %v3899, %v3903
      %v3905 = vlaneseq
      %v3906 = vshrl.u32 %v3905, 7
      %v3907 = vsub.s32 1, %v3906
      %v3908 = vrot.slane %v3899, %v3907
      %v3909 = vlaneseq
      %v3910 = vshrl.u32 %v3909, 7
      %v3911 = vsub.s32 2, %v3910
      %v3912 = vrot.slane %v3899, %v3911
      %v3913 = vlaneseq
      %v3914 = vshrl.u32 %v3913, 7
      %v3915 = vsub.s32 3, %v3914
      %v3916 = vrot.slane %v3899, %v3915
      %v3917 = vlaneseq
      %v3918 = vshrl.u32 %v3917, 7
      %v3919 = vsub.s32 4, %v3918
      %v3920 = vrot.slane %v3899, %v3919
      %v3921 = vlaneseq
      %v3922 = vshrl.u32 %v3921, 7
      %v3923 = vsub.s32 5, %v3922
      %v3924 = vrot.slane %v3899, %v3923
      %v3931 = vadd.f32 %v3866, %v3904
      %v3932 = vadd.f32 %v3867, %v3908
      %v3933 = vadd.f32 %v3868, %v3912
      %v3934 = vadd.f32 %v3869, %v3916
      %v3935 = vadd.f32 %v3870, %v3920
      %v3936 = vadd.f32 %v3871, %v3924
      %v3937 = vadd.f32 %v3872, %v3904
      %v3938 = vadd.f32 %v3873, %v3908
      %v3939 = vadd.f32 %v3874, %v3912
      %v3940 = vadd.f32 %v3875, %v3916
      %v3941 = vadd.f32 %v3876, %v3920
      %v3942 = vadd.f32 %v3877, %v3924
      %v3943 = vadd.f32 %v3878, %v3904
      %v3944 = vadd.f32 %v3879, %v3908
      %v3945 = vadd.f32 %v3880, %v3912
      %v3946 = vadd.f32 %v3881, %v3916
      %v3947 = vadd.f32 %v3882, %v3920
      %v3948 = vadd.f32 %v3883, %v3924
      %v3949 = vadd.f32 %v3884, %v3904
      %v3950 = vadd.f32 %v3885, %v3908
      %v3951 = vadd.f32 %v3886, %v3912
      %v3952 = vadd.f32 %v3887, %v3916
      %v3953 = vadd.f32 %v3888, %v3920
      %v3954 = vadd.f32 %v3889, %v3924
      %v3955 = vadd.f32 %v3890, %v3904
      %v3956 = vadd.f32 %v3891, %v3908
      %v3957 = vadd.f32 %v3892, %v3912
      %v3958 = vadd.f32 %v3893, %v3916
      %v3959 = vadd.f32 %v3894, %v3920
      %v3960 = vadd.f32 %v3895, %v3924
      %v3961 = vadd.f32 %v3931, 3.0
      %v3962 = vadd.f32 %v3932, 3.0
      %v3963 = vadd.f32 %v3933, 3.0
      %v3964 = vadd.f32 %v3934, 3.0
      %v3965 = vadd.f32 %v3935, 3.0
      %v3966 = vadd.f32 %v3936, 3.0
      %v3967 = vadd.f32 %v3937, 3.0
      %v3968 = vadd.f32 %v3938, 3.0
      %v3969 = vadd.f32 %v3939, 3.0
      %v3970 = vadd.f32 %v3940, 3.0
      %v3971 = vadd.f32 %v3941, 3.0
      %v3972 = vadd.f32 %v3942, 3.0
      %v3973 = vadd.f32 %v3943, 3.0
      %v3974 = vadd.f32 %v3944, 3.0
      %v3975 = vadd.f32 %v3945, 3.0
      %v3976 = vadd.f32 %v3946, 3.0
      %v3977 = vadd.f32 %v3947, 3.0
      %v3978 = vadd.f32 %v3948, 3.0
      %v3979 = vadd.f32 %v3949, 3.0
      %v3980 = vadd.f32 %v3950, 3.0
      %v3981 = vadd.f32 %v3951, 3.0
      %v3982 = vadd.f32 %v3952, 3.0
      %v3983 = vadd.f32 %v3953, 3.0
      %v3984 = vadd.f32 %v3954, 3.0
      %v3985 = vadd.f32 %v3955, 3.0
      %v3986 = vadd.f32 %v3956, 3.0
      %v3987 = vadd.f32 %v3957, 3.0
      %v3988 = vadd.f32 %v3958, 3.0
      %v3989 = vadd.f32 %v3959, 3.0
      %v3990 = vadd.f32 %v3960, 3.0
      %v3991 = vmax.f32 %v3961, 0.0
      %v3992 = vmax.f32 %v3962, 0.0
      %v3993 = vmax.f32 %v3963, 0.0
      %v3994 = vmax.f32 %v3964, 0.0
      %v3995 = vmax.f32 %v3965, 0.0
      %v3996 = vmax.f32 %v3966, 0.0
      %v3997 = vmax.f32 %v3967, 0.0
      %v3998 = vmax.f32 %v3968, 0.0
      %v3999 = vmax.f32 %v3969, 0.0
      %v4000 = vmax.f32 %v3970, 0.0
      %v4001 = vmax.f32 %v3971, 0.0
      %v4002 = vmax.f32 %v3972, 0.0
      %v4003 = vmax.f32 %v3973, 0.0
      %v4004 = vmax.f32 %v3974, 0.0
      %v4005 = vmax.f32 %v3975, 0.0
      %v4006 = vmax.f32 %v3976, 0.0
      %v4007 = vmax.f32 %v3977, 0.0
      %v4008 = vmax.f32 %v3978, 0.0
      %v4009 = vmax.f32 %v3979, 0.0
      %v4010 = vmax.f32 %v3980, 0.0
      %v4011 = vmax.f32 %v3981, 0.0
      %v4012 = vmax.f32 %v3982, 0.0
      %v4013 = vmax.f32 %v3983, 0.0
      %v4014 = vmax.f32 %v3984, 0.0
      %v4015 = vmax.f32 %v3985, 0.0
      %v4016 = vmax.f32 %v3986, 0.0
      %v4017 = vmax.f32 %v3987, 0.0
      %v4018 = vmax.f32 %v3988, 0.0
      %v4019 = vmax.f32 %v3989, 0.0
      %v4020 = vmax.f32 %v3990, 0.0
      %v4021 = vmin.f32 %v3991, 6.0
      %v4022 = vmin.f32 %v3992, 6.0
      %v4023 = vmin.f32 %v3993, 6.0
      %v4024 = vmin.f32 %v3994, 6.0
      %v4025 = vmin.f32 %v3995, 6.0
      %v4026 = vmin.f32 %v3996, 6.0
      %v4027 = vmin.f32 %v3997, 6.0
      %v4028 = vmin.f32 %v3998, 6.0
      %v4029 = vmin.f32 %v3999, 6.0
      %v4030 = vmin.f32 %v4000, 6.0
      %v4031 = vmin.f32 %v4001, 6.0
      %v4032 = vmin.f32 %v4002, 6.0
      %v4033 = vmin.f32 %v4003, 6.0
      %v4034 = vmin.f32 %v4004, 6.0
      %v4035 = vmin.f32 %v4005, 6.0
      %v4036 = vmin.f32 %v4006, 6.0
      %v4037 = vmin.f32 %v4007, 6.0
      %v4038 = vmin.f32 %v4008, 6.0
      %v4039 = vmin.f32 %v4009, 6.0
      %v4040 = vmin.f32 %v4010, 6.0
      %v4041 = vmin.f32 %v4011, 6.0
      %v4042 = vmin.f32 %v4012, 6.0
      %v4043 = vmin.f32 %v4013, 6.0
      %v4044 = vmin.f32 %v4014, 6.0
      %v4045 = vmin.f32 %v4015, 6.0
      %v4046 = vmin.f32 %v4016, 6.0
      %v4047 = vmin.f32 %v4017, 6.0
      %v4048 = vmin.f32 %v4018, 6.0
      %v4049 = vmin.f32 %v4019, 6.0
      %v4050 = vmin.f32 %v4020, 6.0
      %v4051 = vmul.f32 %v3931, %v4021
      %v4052 = vmul.f32 %v3932, %v4022
      %v4053 = vmul.f32 %v3933, %v4023
      %v4054 = vmul.f32 %v3934, %v4024
      %v4055 = vmul.f32 %v3935, %v4025
      %v4056 = vmul.f32 %v3936, %v4026
      %v4057 = vmul.f32 %v3937, %v4027
      %v4058 = vmul.f32 %v3938, %v4028
      %v4059 = vmul.f32 %v3939, %v4029
      %v4060 = vmul.f32 %v3940, %v4030
      %v4061 = vmul.f32 %v3941, %v4031
      %v4062 = vmul.f32 %v3942, %v4032
      %v4063 = vmul.f32 %v3943, %v4033
      %v4064 = vmul.f32 %v3944, %v4034
      %v4065 = vmul.f32 %v3945, %v4035
      %v4066 = vmul.f32 %v3946, %v4036
      %v4067 = vmul.f32 %v3947, %v4037
      %v4068 = vmul.f32 %v3948, %v4038
      %v4069 = vmul.f32 %v3949, %v4039
      %v4070 = vmul.f32 %v3950, %v4040
      %v4071 = vmul.f32 %v3951, %v4041
      %v4072 = vmul.f32 %v3952, %v4042
      %v4073 = vmul.f32 %v3953, %v4043
      %v4074 = vmul.f32 %v3954, %v4044
      %v4075 = vmul.f32 %v3955, %v4045
      %v4076 = vmul.f32 %v3956, %v4046
      %v4077 = vmul.f32 %v3957, %v4047
      %v4078 = vmul.f32 %v3958, %v4048
      %v4079 = vmul.f32 %v3959, %v4049
      %v4080 = vmul.f32 %v3960, %v4050
      %v4081 = vmul.f32 %v4051, 0.16666667
      %v4082 = vmul.f32 %v4052, 0.16666667
      %v4083 = vmul.f32 %v4053, 0.16666667
      %v4084 = vmul.f32 %v4054, 0.16666667
      %v4085 = vmul.f32 %v4055, 0.16666667
      %v4086 = vmul.f32 %v4056, 0.16666667
      %v4087 = vmul.f32 %v4057, 0.16666667
      %v4088 = vmul.f32 %v4058, 0.16666667
      %v4089 = vmul.f32 %v4059, 0.16666667
      %v4090 = vmul.f32 %v4060, 0.16666667
      %v4091 = vmul.f32 %v4061, 0.16666667
      %v4092 = vmul.f32 %v4062, 0.16666667
      %v4093 = vmul.f32 %v4063, 0.16666667
      %v4094 = vmul.f32 %v4064, 0.16666667
      %v4095 = vmul.f32 %v4065, 0.16666667
      %v4096 = vmul.f32 %v4066, 0.16666667
      %v4097 = vmul.f32 %v4067, 0.16666667
      %v4098 = vmul.f32 %v4068, 0.16666667
      %v4099 = vmul.f32 %v4069, 0.16666667
      %v4100 = vmul.f32 %v4070, 0.16666667
      %v4101 = vmul.f32 %v4071, 0.16666667
      %v4102 = vmul.f32 %v4072, 0.16666667
      %v4103 = vmul.f32 %v4073, 0.16666667
      %v4104 = vmul.f32 %v4074, 0.16666667
      %v4105 = vmul.f32 %v4075, 0.16666667
      %v4106 = vmul.f32 %v4076, 0.16666667
      %v4107 = vmul.f32 %v4077, 0.16666667
      %v4108 = vmul.f32 %v4078, 0.16666667
      %v4109 = vmul.f32 %v4079, 0.16666667
      %v4110 = vmul.f32 %v4080, 0.16666667
      %v4111 = vmax.f32 %v3931, 0.0
      %v4112 = vmax.f32 %v3932, 0.0
      %v4113 = vmax.f32 %v3933, 0.0
      %v4114 = vmax.f32 %v3934, 0.0
      %v4115 = vmax.f32 %v3935, 0.0
      %v4116 = vmax.f32 %v3936, 0.0
      %v4117 = vmax.f32 %v3937, 0.0
      %v4118 = vmax.f32 %v3938, 0.0
      %v4119 = vmax.f32 %v3939, 0.0
      %v4120 = vmax.f32 %v3940, 0.0
      %v4121 = vmax.f32 %v3941, 0.0
      %v4122 = vmax.f32 %v3942, 0.0
      %v4123 = vmax.f32 %v3943, 0.0
      %v4124 = vmax.f32 %v3944, 0.0
      %v4125 = vmax.f32 %v3945, 0.0
      %v4126 = vmax.f32 %v3946, 0.0
      %v4127 = vmax.f32 %v3947, 0.0
      %v4128 = vmax.f32 %v3948, 0.0
      %v4129 = vmax.f32 %v3949, 0.0
      %v4130 = vmax.f32 %v3950, 0.0
      %v4131 = vmax.f32 %v3951, 0.0
      %v4132 = vmax.f32 %v3952, 0.0
      %v4133 = vmax.f32 %v3953, 0.0
      %v4134 = vmax.f32 %v3954, 0.0
      %v4135 = vmax.f32 %v3955, 0.0
      %v4136 = vmax.f32 %v3956, 0.0
      %v4137 = vmax.f32 %v3957, 0.0
      %v4138 = vmax.f32 %v3958, 0.0
      %v4139 = vmax.f32 %v3959, 0.0
      %v4140 = vmax.f32 %v3960, 0.0
      %v4141 = vmin.f32 %v4111, 6.0
      %v4142 = vmin.f32 %v4112, 6.0
      %v4143 = vmin.f32 %v4113, 6.0
      %v4144 = vmin.f32 %v4114, 6.0
      %v4145 = vmin.f32 %v4115, 6.0
      %v4146 = vmin.f32 %v4116, 6.0
      %v4147 = vmin.f32 %v4117, 6.0
      %v4148 = vmin.f32 %v4118, 6.0
      %v4149 = vmin.f32 %v4119, 6.0
      %v4150 = vmin.f32 %v4120, 6.0
      %v4151 = vmin.f32 %v4121, 6.0
      %v4152 = vmin.f32 %v4122, 6.0
      %v4153 = vmin.f32 %v4123, 6.0
      %v4154 = vmin.f32 %v4124, 6.0
      %v4155 = vmin.f32 %v4125, 6.0
      %v4156 = vmin.f32 %v4126, 6.0
      %v4157 = vmin.f32 %v4127, 6.0
      %v4158 = vmin.f32 %v4128, 6.0
      %v4159 = vmin.f32 %v4129, 6.0
      %v4160 = vmin.f32 %v4130, 6.0
      %v4161 = vmin.f32 %v4131, 6.0
      %v4162 = vmin.f32 %v4132, 6.0
      %v4163 = vmin.f32 %v4133, 6.0
      %v4164 = vmin.f32 %v4134, 6.0
      %v4165 = vmin.f32 %v4135, 6.0
      %v4166 = vmin.f32 %v4136, 6.0
      %v4167 = vmin.f32 %v4137, 6.0
      %v4168 = vmin.f32 %v4138, 6.0
      %v4169 = vmin.f32 %v4139, 6.0
      %v4170 = vmin.f32 %v4140, 6.0
      %v4171 = vmin.f32 %v3931, 0.0
      %v4172 = vmin.f32 %v3932, 0.0
      %v4173 = vmin.f32 %v3933, 0.0
      %v4174 = vmin.f32 %v3934, 0.0
      %v4175 = vmin.f32 %v3935, 0.0
      %v4176 = vmin.f32 %v3936, 0.0
      %v4177 = vmin.f32 %v3937, 0.0
      %v4178 = vmin.f32 %v3938, 0.0
      %v4179 = vmin.f32 %v3939, 0.0
      %v4180 = vmin.f32 %v3940, 0.0
      %v4181 = vmin.f32 %v3941, 0.0
      %v4182 = vmin.f32 %v3942, 0.0
      %v4183 = vmin.f32 %v3943, 0.0
      %v4184 = vmin.f32 %v3944, 0.0
      %v4185 = vmin.f32 %v3945, 0.0
      %v4186 = vmin.f32 %v3946, 0.0
      %v4187 = vmin.f32 %v3947, 0.0
      %v4188 = vmin.f32 %v3948, 0.0
      %v4189 = vmin.f32 %v3949, 0.0
      %v4190 = vmin.f32 %v3950, 0.0
      %v4191 = vmin.f32 %v3951, 0.0
      %v4192 = vmin.f32 %v3952, 0.0
      %v4193 = vmin.f32 %v3953, 0.0
      %v4194 = vmin.f32 %v3954, 0.0
      %v4195 = vmin.f32 %v3955, 0.0
      %v4196 = vmin.f32 %v3956, 0.0
      %v4197 = vmin.f32 %v3957, 0.0
      %v4198 = vmin.f32 %v3958, 0.0
      %v4199 = vmin.f32 %v3959, 0.0
      %v4200 = vmin.f32 %v3960, 0.0
      %v4201 = vmul.f32 %v4171, 0.01
      %v4202 = vmul.f32 %v4172, 0.01
      %v4203 = vmul.f32 %v4173, 0.01
      %v4204 = vmul.f32 %v4174, 0.01
      %v4205 = vmul.f32 %v4175, 0.01
      %v4206 = vmul.f32 %v4176, 0.01
      %v4207 = vmul.f32 %v4177, 0.01
      %v4208 = vmul.f32 %v4178, 0.01
      %v4209 = vmul.f32 %v4179, 0.01
      %v4210 = vmul.f32 %v4180, 0.01
      %v4211 = vmul.f32 %v4181, 0.01
      %v4212 = vmul.f32 %v4182, 0.01
      %v4213 = vmul.f32 %v4183, 0.01
      %v4214 = vmul.f32 %v4184, 0.01
      %v4215 = vmul.f32 %v4185, 0.01
      %v4216 = vmul.f32 %v4186, 0.01
      %v4217 = vmul.f32 %v4187, 0.01
      %v4218 = vmul.f32 %v4188, 0.01
      %v4219 = vmul.f32 %v4189, 0.01
      %v4220 = vmul.f32 %v4190, 0.01
      %v4221 = vmul.f32 %v4191, 0.01
      %v4222 = vmul.f32 %v4192, 0.01
      %v4223 = vmul.f32 %v4193, 0.01
      %v4224 = vmul.f32 %v4194, 0.01
      %v4225 = vmul.f32 %v4195, 0.01
      %v4226 = vmul.f32 %v4196, 0.01
      %v4227 = vmul.f32 %v4197, 0.01
      %v4228 = vmul.f32 %v4198, 0.01
      %v4229 = vmul.f32 %v4199, 0.01
      %v4230 = vmul.f32 %v4200, 0.01
      %v4231 = vadd.f32 %v4141, %v4201
      %v4232 = vadd.f32 %v4142, %v4202
      %v4233 = vadd.f32 %v4143, %v4203
      %v4234 = vadd.f32 %v4144, %v4204
      %v4235 = vadd.f32 %v4145, %v4205
      %v4236 = vadd.f32 %v4146, %v4206
      %v4237 = vadd.f32 %v4147, %v4207
      %v4238 = vadd.f32 %v4148, %v4208
      %v4239 = vadd.f32 %v4149, %v4209
      %v4240 = vadd.f32 %v4150, %v4210
      %v4241 = vadd.f32 %v4151, %v4211
      %v4242 = vadd.f32 %v4152, %v4212
      %v4243 = vadd.f32 %v4153, %v4213
      %v4244 = vadd.f32 %v4154, %v4214
      %v4245 = vadd.f32 %v4155, %v4215
      %v4246 = vadd.f32 %v4156, %v4216
      %v4247 = vadd.f32 %v4157, %v4217
      %v4248 = vadd.f32 %v4158, %v4218
      %v4249 = vadd.f32 %v4159, %v4219
      %v4250 = vadd.f32 %v4160, %v4220
      %v4251 = vadd.f32 %v4161, %v4221
      %v4252 = vadd.f32 %v4162, %v4222
      %v4253 = vadd.f32 %v4163, %v4223
      %v4254 = vadd.f32 %v4164, %v4224
      %v4255 = vadd.f32 %v4165, %v4225
      %v4256 = vadd.f32 %v4166, %v4226
      %v4257 = vadd.f32 %v4167, %v4227
      %v4258 = vadd.f32 %v4168, %v4228
      %v4259 = vadd.f32 %v4169, %v4229
      %v4260 = vadd.f32 %v4170, %v4230
      %v4261 = vand.u32 2147483647, %v3931
      %v4262 = vand.u32 2147483647, %v3932
      %v4263 = vand.u32 2147483647, %v3933
      %v4264 = vand.u32 2147483647, %v3934
      %v4265 = vand.u32 2147483647, %v3935
      %v4266 = vand.u32 2147483647, %v3936
      %v4267 = vand.u32 2147483647, %v3937
      %v4268 = vand.u32 2147483647, %v3938
      %v4269 = vand.u32 2147483647, %v3939
      %v4270 = vand.u32 2147483647, %v3940
      %v4271 = vand.u32 2147483647, %v3941
      %v4272 = vand.u32 2147483647, %v3942
      %v4273 = vand.u32 2147483647, %v3943
      %v4274 = vand.u32 2147483647, %v3944
      %v4275 = vand.u32 2147483647, %v3945
      %v4276 = vand.u32 2147483647, %v3946
      %v4277 = vand.u32 2147483647, %v3947
      %v4278 = vand.u32 2147483647, %v3948
      %v4279 = vand.u32 2147483647, %v3949
      %v4280 = vand.u32 2147483647, %v3950
      %v4281 = vand.u32 2147483647, %v3951
      %v4282 = vand.u32 2147483647, %v3952
      %v4283 = vand.u32 2147483647, %v3953
      %v4284 = vand.u32 2147483647, %v3954
      %v4285 = vand.u32 2147483647, %v3955
      %v4286 = vand.u32 2147483647, %v3956
      %v4287 = vand.u32 2147483647, %v3957
      %v4288 = vand.u32 2147483647, %v3958
      %v4289 = vand.u32 2147483647, %v3959
      %v4290 = vand.u32 2147483647, %v3960
      %vm4291 = vcmp.le.f32.partialorder %v4261, 3.0
      %vm4292 = vcmp.le.f32.partialorder %v4262, 3.0
      %vm4293 = vcmp.le.f32.partialorder %v4263, 3.0
      %vm4294 = vcmp.le.f32.partialorder %v4264, 3.0
      %vm4295 = vcmp.le.f32.partialorder %v4265, 3.0
      %vm4296 = vcmp.le.f32.partialorder %v4266, 3.0
      %vm4297 = vcmp.le.f32.partialorder %v4267, 3.0
      %vm4298 = vcmp.le.f32.partialorder %v4268, 3.0
      %vm4299 = vcmp.le.f32.partialorder %v4269, 3.0
      %vm4300 = vcmp.le.f32.partialorder %v4270, 3.0
      %vm4301 = vcmp.le.f32.partialorder %v4271, 3.0
      %vm4302 = vcmp.le.f32.partialorder %v4272, 3.0
      %vm4303 = vcmp.le.f32.partialorder %v4273, 3.0
      %vm4304 = vcmp.le.f32.partialorder %v4274, 3.0
      %vm4305 = vcmp.le.f32.partialorder %v4275, 3.0
      %vm4306 = vcmp.le.f32.partialorder %v4276, 3.0
      %vm4307 = vcmp.le.f32.partialorder %v4277, 3.0
      %vm4308 = vcmp.le.f32.partialorder %v4278, 3.0
      %vm4309 = vcmp.le.f32.partialorder %v4279, 3.0
      %vm4310 = vcmp.le.f32.partialorder %v4280, 3.0
      %vm4311 = vcmp.le.f32.partialorder %v4281, 3.0
      %vm4312 = vcmp.le.f32.partialorder %v4282, 3.0
      %vm4313 = vcmp.le.f32.partialorder %v4283, 3.0
      %vm4314 = vcmp.le.f32.partialorder %v4284, 3.0
      %vm4315 = vcmp.le.f32.partialorder %v4285, 3.0
      %vm4316 = vcmp.le.f32.partialorder %v4286, 3.0
      %vm4317 = vcmp.le.f32.partialorder %v4287, 3.0
      %vm4318 = vcmp.le.f32.partialorder %v4288, 3.0
      %vm4319 = vcmp.le.f32.partialorder %v4289, 3.0
      %vm4320 = vcmp.le.f32.partialorder %v4290, 3.0
      %v4321 = vsel %vm4291, %v4081, %v4231
      %v4322 = vsel %vm4292, %v4082, %v4232
      %v4323 = vsel %vm4293, %v4083, %v4233
      %v4324 = vsel %vm4294, %v4084, %v4234
      %v4325 = vsel %vm4295, %v4085, %v4235
      %v4326 = vsel %vm4296, %v4086, %v4236
      %v4327 = vsel %vm4297, %v4087, %v4237
      %v4328 = vsel %vm4298, %v4088, %v4238
      %v4329 = vsel %vm4299, %v4089, %v4239
      %v4330 = vsel %vm4300, %v4090, %v4240
      %v4331 = vsel %vm4301, %v4091, %v4241
      %v4332 = vsel %vm4302, %v4092, %v4242
      %v4333 = vsel %vm4303, %v4093, %v4243
      %v4334 = vsel %vm4304, %v4094, %v4244
      %v4335 = vsel %vm4305, %v4095, %v4245
      %v4336 = vsel %vm4306, %v4096, %v4246
      %v4337 = vsel %vm4307, %v4097, %v4247
      %v4338 = vsel %vm4308, %v4098, %v4248
      %v4339 = vsel %vm4309, %v4099, %v4249
      %v4340 = vsel %vm4310, %v4100, %v4250
      %v4341 = vsel %vm4311, %v4101, %v4251
      %v4342 = vsel %vm4312, %v4102, %v4252
      %v4343 = vsel %vm4313, %v4103, %v4253
      %v4344 = vsel %vm4314, %v4104, %v4254
      %v4345 = vsel %vm4315, %v4105, %v4255
      %v4346 = vsel %vm4316, %v4106, %v4256
      %v4347 = vsel %vm4317, %v4107, %v4257
      %v4348 = vsel %vm4318, %v4108, %v4258
      %v4349 = vsel %vm4319, %v4109, %v4259
      %v4350 = vsel %vm4320, %v4110, %v4260
      %s4351 = sld [smem:[#allocation3]]
      %v4352 = vstv %s4351
      %v4353 = vmul.f32 %v4321, %v4352
      %v4354 = vmul.f32 %v4327, %v4352
      %v4355 = vmul.f32 %v4333, %v4352
      %v4356 = vmul.f32 %v4339, %v4352
      %v4357 = vmul.f32 %v4345, %v4352
      %s4358 = sld [smem:[#allocation3 + $0x1]]
      %v4359 = vstv %s4358
      %v4360 = vmul.f32 %v4323, %v4359
      %v4361 = vmul.f32 %v4329, %v4359
      %v4362 = vmul.f32 %v4335, %v4359
      %v4363 = vmul.f32 %v4341, %v4359
      %v4364 = vmul.f32 %v4347, %v4359
      %v4365 = vadd.f32 %v4353, %v4360
      %v4366 = vadd.f32 %v4354, %v4361
      %v4367 = vadd.f32 %v4355, %v4362
      %v4368 = vadd.f32 %v4356, %v4363
      %v4369 = vadd.f32 %v4357, %v4364
      %s4370 = sld [smem:[#allocation3 + $0x2]]
      %v4371 = vstv %s4370
      %v4372 = vmul.f32 %v4325, %v4371
      %v4373 = vmul.f32 %v4331, %v4371
      %v4374 = vmul.f32 %v4337, %v4371
      %v4375 = vmul.f32 %v4343, %v4371
      %v4376 = vmul.f32 %v4349, %v4371
      %v4377 = vadd.f32 %v4365, %v4372
      %v4378 = vadd.f32 %v4366, %v4373
      %v4379 = vadd.f32 %v4367, %v4374
      %v4380 = vadd.f32 %v4368, %v4375
      %v4381 = vadd.f32 %v4369, %v4376
      %s4382 = sld [smem:[#allocation3 + $0x3]]
      %v4383 = vstv %s4382
      %v4384 = vmul.f32 %v4322, %v4383
      %v4385 = vmul.f32 %v4328, %v4383
      %v4386 = vmul.f32 %v4334, %v4383
      %v4387 = vmul.f32 %v4340, %v4383
      %v4388 = vmul.f32 %v4346, %v4383
      %v4389 = vadd.f32 %v4377, %v4384
      %v4390 = vadd.f32 %v4378, %v4385
      %v4391 = vadd.f32 %v4379, %v4386
      %v4392 = vadd.f32 %v4380, %v4387
      %v4393 = vadd.f32 %v4381, %v4388
      %s4394 = sld [smem:[#allocation3 + $0x4]]
      %v4395 = vstv %s4394
      %v4396 = vmul.f32 %v4324, %v4395
      %v4397 = vmul.f32 %v4330, %v4395
      %v4398 = vmul.f32 %v4336, %v4395
      %v4399 = vmul.f32 %v4342, %v4395
      %v4400 = vmul.f32 %v4348, %v4395
      %v4401 = vadd.f32 %v4389, %v4396
      %v4402 = vadd.f32 %v4390, %v4397
      %v4403 = vadd.f32 %v4391, %v4398
      %v4404 = vadd.f32 %v4392, %v4399
      %v4405 = vadd.f32 %v4393, %v4400
      %s4406 = sld [smem:[#allocation3 + $0x5]]
      %v4407 = vstv %s4406
      %v4408 = vmul.f32 %v4326, %v4407
      %v4409 = vmul.f32 %v4332, %v4407
      %v4410 = vmul.f32 %v4338, %v4407
      %v4411 = vmul.f32 %v4344, %v4407
      %v4412 = vmul.f32 %v4350, %v4407
      %v4413 = vadd.f32 %v4401, %v4408
      %v4414 = vadd.f32 %v4402, %v4409
      %v4415 = vadd.f32 %v4403, %v4410
      %v4416 = vadd.f32 %v4404, %v4411
      %v4417 = vadd.f32 %v4405, %v4412
      %v4418 = vsub.f32 0.0, %v4413
      %v4419 = vsub.f32 0.0, %v4414
      %v4420 = vsub.f32 0.0, %v4415
      %v4421 = vsub.f32 0.0, %v4416
      %v4422 = vsub.f32 0.0, %v4417
      %v4423 = vmul.f32 %v4418, 1.442695
      %v4424 = vpow.pop %v4423
      %v4425 = vmul.f32 %v4419, 1.442695
      %v4426 = vpow.pop %v4425
      %v4427 = vmul.f32 %v4420, 1.442695
      %v4428 = vpow.pop %v4427
      %v4429 = vmul.f32 %v4421, 1.442695
      %v4430 = vpow.pop %v4429
      %v4431 = vmul.f32 %v4422, 1.442695
      %v4432 = vpow.pop %v4431
      %v4433 = vadd.f32 %v4424, 1.0
      %v4434 = vadd.f32 %v4426, 1.0
      %v4435 = vadd.f32 %v4428, 1.0
      %v4436 = vadd.f32 %v4430, 1.0
      %v4437 = vadd.f32 %v4432, 1.0
      %v4438 = vrcp.pop %v4433
      %v4439 = vrcp.pop %v4434
      %v4440 = vrcp.pop %v4435
      %v4441 = vrcp.pop %v4436
      %v4442 = vrcp.pop %v4437
      %v4443 = vsel %vm3481, %v4321, 0.0
      %v4444 = vsel %vm3481, %v4327, 0.0
      %v4445 = vadd.f32 %v4443, %v4444
      %v4446 = vsel %vm3481, %v4333, 0.0
      %v4447 = vadd.f32 %v4445, %v4446
      %v4448 = vsel %vm3481, %v4339, 0.0
      %v4449 = vadd.f32 %v4447, %v4448
      %v4450 = vsel %vm3489, %v4345, 0.0
      %v4451 = vadd.f32 %v4449, %v4450
      %4452 = vadd.xlane.f32.xlu0 %v4451
      %v4453 = vpop.xlane.xlu0 %4452
      %v4454 = vrot.slane %v4453, 4
      %v4455 = vadd.f32 %v4453, %v4454
      %v4456 = vrot.slane %v4455, 2
      %v4457 = vadd.f32 %v4455, %v4456
      %v4458 = vrot.slane %v4457, 1
      %v4459 = vadd.f32 %v4457, %v4458
      %s4460 = vtos %v4459
      %s4461 = smul.f32 %s4460, 0.00081632653
      %v4462 = vsel %vm3481, %v4322, 0.0
      %v4463 = vsel %vm3481, %v4328, 0.0
      %v4464 = vadd.f32 %v4462, %v4463
      %v4465 = vsel %vm3481, %v4334, 0.0
      %v4466 = vadd.f32 %v4464, %v4465
      %v4467 = vsel %vm3481, %v4340, 0.0
      %v4468 = vadd.f32 %v4466, %v4467
      %v4469 = vsel %vm3489, %v4346, 0.0
      %v4470 = vadd.f32 %v4468, %v4469
      %4471 = vadd.xlane.f32.xlu0 %v4470
      %v4472 = vpop.xlane.xlu0 %4471
      %v4473 = vrot.slane %v4472, 4
      %v4474 = vadd.f32 %v4472, %v4473
      %v4475 = vrot.slane %v4474, 2
      %v4476 = vadd.f32 %v4474, %v4475
      %v4477 = vrot.slane %v4476, 1
      %v4478 = vadd.f32 %v4476, %v4477
      %s4479 = vtos %v4478
      %s4480 = smul.f32 %s4479, 0.00081632653
      %v4481 = vsel %vm3481, %v4323, 0.0
      %v4482 = vsel %vm3481, %v4329, 0.0
      %v4483 = vadd.f32 %v4481, %v4482
      %v4484 = vsel %vm3481, %v4335, 0.0
      %v4485 = vadd.f32 %v4483, %v4484
      %v4486 = vsel %vm3481, %v4341, 0.0
      %v4487 = vadd.f32 %v4485, %v4486
      %v4488 = vsel %vm3489, %v4347, 0.0
      %v4489 = vadd.f32 %v4487, %v4488
      %4490 = vadd.xlane.f32.xlu0 %v4489
      %v4491 = vpop.xlane.xlu0 %4490
      %v4492 = vrot.slane %v4491, 4
      %v4493 = vadd.f32 %v4491, %v4492
      %v4494 = vrot.slane %v4493, 2
      %v4495 = vadd.f32 %v4493, %v4494
      %v4496 = vrot.slane %v4495, 1
      %v4497 = vadd.f32 %v4495, %v4496
      %s4498 = vtos %v4497
      %s4499 = smul.f32 %s4498, 0.00081632653
      %v4500 = vsel %vm3481, %v4324, 0.0
      %v4501 = vsel %vm3481, %v4330, 0.0
      %v4502 = vadd.f32 %v4500, %v4501
      %v4503 = vsel %vm3481, %v4336, 0.0
      %v4504 = vadd.f32 %v4502, %v4503
      %v4505 = vsel %vm3481, %v4342, 0.0
      %v4506 = vadd.f32 %v4504, %v4505
      %v4507 = vsel %vm3489, %v4348, 0.0
      %v4508 = vadd.f32 %v4506, %v4507
      %4509 = vadd.xlane.f32.xlu0 %v4508
      %v4510 = vpop.xlane.xlu0 %4509
      %v4511 = vrot.slane %v4510, 4
      %v4512 = vadd.f32 %v4510, %v4511
      %v4513 = vrot.slane %v4512, 2
      %v4514 = vadd.f32 %v4512, %v4513
      %v4515 = vrot.slane %v4514, 1
      %v4516 = vadd.f32 %v4514, %v4515
      %s4517 = vtos %v4516
      %s4518 = smul.f32 %s4517, 0.00081632653
      %v4519 = vsel %vm3481, %v4325, 0.0
      %v4520 = vsel %vm3481, %v4331, 0.0
      %v4521 = vadd.f32 %v4519, %v4520
      %v4522 = vsel %vm3481, %v4337, 0.0
      %v4523 = vadd.f32 %v4521, %v4522
      %v4524 = vsel %vm3481, %v4343, 0.0
      %v4525 = vadd.f32 %v4523, %v4524
      %v4526 = vsel %vm3489, %v4349, 0.0
      %v4527 = vadd.f32 %v4525, %v4526
      %4528 = vadd.xlane.f32.xlu0 %v4527
      %v4529 = vpop.xlane.xlu0 %4528
      %v4530 = vrot.slane %v4529, 4
      %v4531 = vadd.f32 %v4529, %v4530
      %v4532 = vrot.slane %v4531, 2
      %v4533 = vadd.f32 %v4531, %v4532
      %v4534 = vrot.slane %v4533, 1
      %v4535 = vadd.f32 %v4533, %v4534
      %s4536 = vtos %v4535
      %s4537 = smul.f32 %s4536, 0.00081632653
      %v4538 = vsel %vm3481, %v4326, 0.0
      %v4539 = vsel %vm3481, %v4332, 0.0
      %v4540 = vadd.f32 %v4538, %v4539
      %v4541 = vsel %vm3481, %v4338, 0.0
      %v4542 = vadd.f32 %v4540, %v4541
      %v4543 = vsel %vm3481, %v4344, 0.0
      %v4544 = vadd.f32 %v4542, %v4543
      %v4545 = vsel %vm3489, %v4350, 0.0
      %v4546 = vadd.f32 %v4544, %v4545
      %4547 = vadd.xlane.f32.xlu0 %v4546
      %v4548 = vpop.xlane.xlu0 %4547
      %v4549 = vrot.slane %v4548, 4
      %v4550 = vadd.f32 %v4548, %v4549
      %v4551 = vrot.slane %v4550, 2
      %v4552 = vadd.f32 %v4550, %v4551
      %v4553 = vrot.slane %v4552, 1
      %v4554 = vadd.f32 %v4552, %v4553
      %s4555 = vtos %v4554
      %s4556 = smul.f32 %s4555, 0.00081632653
      %s4557 = sld [smem:[#allocation3 + $0x6]]
      %s4558 = smul.f32 %s4461, %s4557
      %s4559 = sld [smem:[#allocation3 + $0x7]]
      %s4560 = smul.f32 %s4499, %s4559
      %s4561 = sadd.f32 %s4558, %s4560
      %s4562 = sld [smem:[#allocation3 + $0x8]]
      %s4563 = smul.f32 %s4537, %s4562
      %s4564 = sadd.f32 %s4561, %s4563
      %s4565 = sld [smem:[#allocation3 + $0x9]]
      %s4566 = smul.f32 %s4480, %s4565
      %s4567 = sadd.f32 %s4564, %s4566
      %s4568 = sld [smem:[#allocation3 + $0xa]]
      %s4569 = smul.f32 %s4518, %s4568
      %s4570 = sadd.f32 %s4567, %s4569
      %s4571 = sld [smem:[#allocation3 + $0xb]]
      %s4572 = smul.f32 %s4556, %s4571
      %s4573 = sadd.f32 %s4570, %s4572
      %s4574 = smax.f32 %s4573, 0.0
      %s4575 = sld [smem:[#allocation3 + $0xc]]
      %s4576 = smul.f32 %s4461, %s4575
      %s4577 = sld [smem:[#allocation3 + $0xd]]
      %s4578 = smul.f32 %s4499, %s4577
      %s4579 = sadd.f32 %s4576, %s4578
      %s4580 = sld [smem:[#allocation3 + $0xe]]
      %s4581 = smul.f32 %s4537, %s4580
      %s4582 = sadd.f32 %s4579, %s4581
      %s4583 = sld [smem:[#allocation3 + $0xf]]
      %s4584 = smul.f32 %s4480, %s4583
      %s4585 = sadd.f32 %s4582, %s4584
      %s4586 = sld [smem:[#allocation3 + $0x10]]
      %s4587 = smul.f32 %s4518, %s4586
      %s4588 = sadd.f32 %s4585, %s4587
      %s4589 = sld [smem:[#allocation3 + $0x11]]
      %s4590 = smul.f32 %s4556, %s4589
      %s4591 = sadd.f32 %s4588, %s4590
      %s4592 = smax.f32 %s4591, 0.0
      %s4593 = sld [smem:[#allocation3 + $0x12]]
      %s4594 = smul.f32 %s4574, %s4593
      %s4595 = sld [smem:[#allocation3 + $0x13]]
      %s4596 = smul.f32 %s4592, %s4595
      %s4597 = sadd.f32 %s4594, %s4596
      %s4598 = smul.f32 %s4597, 0.16666667
      %s4599 = sadd.f32 %s4598, 0.5
      %s4600 = smax.f32 %s4599, 0.0
      %s4601 = smin.f32 %s4600, 1.0
      %v4602 = vstv %s4601
      %v4603 = vadd.f32 %v4438, %v4602
      %v4604 = vadd.f32 %v4439, %v4602
      %v4605 = vadd.f32 %v4440, %v4602
      %v4606 = vadd.f32 %v4441, %v4602
      %v4607 = vadd.f32 %v4442, %v4602
      %v4608 = vmul.f32 %v4321, %v4603
      %v4609 = vmul.f32 %v4327, %v4604
      %v4610 = vmul.f32 %v4333, %v4605
      %v4611 = vmul.f32 %v4339, %v4606
      %v4612 = vmul.f32 %v4345, %v4607
      %4613 = vst.msk [vmem:[%s258] sm:$0xff] %vm3481, %v4608
      %4614 = vst.msk [vmem:[%s258 + $0x8] sm:$0xff] %vm3481, %v4609
      %4615 = vst.msk [vmem:[%s258 + $0x10] sm:$0xff] %vm3481, %v4610
      %4616 = vst.msk [vmem:[%s258 + $0x18] sm:$0xff] %vm3481, %v4611
      %4617 = vst.msk [vmem:[%s258 + $0x20] sm:$0x7] %vm3489, %v4612
      %s4618 = sld [smem:[#allocation3 + $0x14]]
      %s4619 = smul.f32 %s4574, %s4618
      %s4620 = sld [smem:[#allocation3 + $0x15]]
      %s4621 = smul.f32 %s4592, %s4620
      %s4622 = sadd.f32 %s4619, %s4621
      %s4623 = smul.f32 %s4622, 0.16666667
      %s4624 = sadd.f32 %s4623, 0.5
      %s4625 = smax.f32 %s4624, 0.0
      %s4626 = smin.f32 %s4625, 1.0
      %v4627 = vstv %s4626
      %v4628 = vadd.f32 %v4438, %v4627
      %v4629 = vadd.f32 %v4439, %v4627
      %v4630 = vadd.f32 %v4440, %v4627
      %v4631 = vadd.f32 %v4441, %v4627
      %v4632 = vadd.f32 %v4442, %v4627
      %v4633 = vmul.f32 %v4323, %v4628
      %v4634 = vmul.f32 %v4329, %v4629
      %v4635 = vmul.f32 %v4335, %v4630
      %v4636 = vmul.f32 %v4341, %v4631
      %v4637 = vmul.f32 %v4347, %v4632
      %s4638 = scalar_lea.vmem %s258, 40
      %4639 = vst.msk [vmem:[%s4638] sm:$0xff] %vm3481, %v4633
      %4640 = vst.msk [vmem:[%s4638 + $0x8] sm:$0xff] %vm3481, %v4634
      %4641 = vst.msk [vmem:[%s4638 + $0x10] sm:$0xff] %vm3481, %v4635
      %4642 = vst.msk [vmem:[%s4638 + $0x18] sm:$0xff] %vm3481, %v4636
      %4643 = vst.msk [vmem:[%s4638 + $0x20] sm:$0x7] %vm3489, %v4637
      %s4644 = sld [smem:[#allocation3 + $0x16]]
      %s4645 = smul.f32 %s4574, %s4644
      %s4646 = sld [smem:[#allocation3 + $0x17]]
      %s4647 = smul.f32 %s4592, %s4646
      %s4648 = sadd.f32 %s4645, %s4647
      %s4649 = smul.f32 %s4648, 0.16666667
      %s4650 = sadd.f32 %s4649, 0.5
      %s4651 = smax.f32 %s4650, 0.0
      %s4652 = smin.f32 %s4651, 1.0
      %v4653 = vstv %s4652
      %v4654 = vadd.f32 %v4438, %v4653
      %v4655 = vadd.f32 %v4439, %v4653
      %v4656 = vadd.f32 %v4440, %v4653
      %v4657 = vadd.f32 %v4441, %v4653
      %v4658 = vadd.f32 %v4442, %v4653
      %v4659 = vmul.f32 %v4325, %v4654
      %v4660 = vmul.f32 %v4331, %v4655
      %v4661 = vmul.f32 %v4337, %v4656
      %v4662 = vmul.f32 %v4343, %v4657
      %v4663 = vmul.f32 %v4349, %v4658
      %s4664 = scalar_lea.vmem %s258, 80
      %4665 = vst.msk [vmem:[%s4664] sm:$0xff] %vm3481, %v4659
      %4666 = vst.msk [vmem:[%s4664 + $0x8] sm:$0xff] %vm3481, %v4660
      %4667 = vst.msk [vmem:[%s4664 + $0x10] sm:$0xff] %vm3481, %v4661
      %4668 = vst.msk [vmem:[%s4664 + $0x18] sm:$0xff] %vm3481, %v4662
      %4669 = vst.msk [vmem:[%s4664 + $0x20] sm:$0x7] %vm3489, %v4663
      %s4670 = sld [smem:[#allocation3 + $0x18]]
      %s4671 = smul.f32 %s4574, %s4670
      %s4672 = sld [smem:[#allocation3 + $0x19]]
      %s4673 = smul.f32 %s4592, %s4672
      %s4674 = sadd.f32 %s4671, %s4673
      %s4675 = smul.f32 %s4674, 0.16666667
      %s4676 = sadd.f32 %s4675, 0.5
      %s4677 = smax.f32 %s4676, 0.0
      %s4678 = smin.f32 %s4677, 1.0
      %v4679 = vstv %s4678
      %v4680 = vadd.f32 %v4438, %v4679
      %v4681 = vadd.f32 %v4439, %v4679
      %v4682 = vadd.f32 %v4440, %v4679
      %v4683 = vadd.f32 %v4441, %v4679
      %v4684 = vadd.f32 %v4442, %v4679
      %v4685 = vmul.f32 %v4322, %v4680
      %v4686 = vmul.f32 %v4328, %v4681
      %v4687 = vmul.f32 %v4334, %v4682
      %v4688 = vmul.f32 %v4340, %v4683
      %v4689 = vmul.f32 %v4346, %v4684
      %s4690 = scalar_lea.vmem %s258, 120
      %4691 = vst.msk [vmem:[%s4690] sm:$0xff] %vm3481, %v4685
      %4692 = vst.msk [vmem:[%s4690 + $0x8] sm:$0xff] %vm3481, %v4686
      %4693 = vst.msk [vmem:[%s4690 + $0x10] sm:$0xff] %vm3481, %v4687
      %4694 = vst.msk [vmem:[%s4690 + $0x18] sm:$0xff] %vm3481, %v4688
      %4695 = vst.msk [vmem:[%s4690 + $0x20] sm:$0x7] %vm3489, %v4689
      %s4696 = sld [smem:[#allocation3 + $0x1a]]
      %s4697 = smul.f32 %s4574, %s4696
      %s4698 = sld [smem:[#allocation3 + $0x1b]]
      %s4699 = smul.f32 %s4592, %s4698
      %s4700 = sadd.f32 %s4697, %s4699
      %s4701 = smul.f32 %s4700, 0.16666667
      %s4702 = sadd.f32 %s4701, 0.5
      %s4703 = smax.f32 %s4702, 0.0
      %s4704 = smin.f32 %s4703, 1.0
      %v4705 = vstv %s4704
      %v4706 = vadd.f32 %v4438, %v4705
      %v4707 = vadd.f32 %v4439, %v4705
      %v4708 = vadd.f32 %v4440, %v4705
      %v4709 = vadd.f32 %v4441, %v4705
      %v4710 = vadd.f32 %v4442, %v4705
      %v4711 = vmul.f32 %v4324, %v4706
      %v4712 = vmul.f32 %v4330, %v4707
      %v4713 = vmul.f32 %v4336, %v4708
      %v4714 = vmul.f32 %v4342, %v4709
      %v4715 = vmul.f32 %v4348, %v4710
      %s4716 = scalar_lea.vmem %s258, 160
      %4717 = vst.msk [vmem:[%s4716] sm:$0xff] %vm3481, %v4711
      %4718 = vst.msk [vmem:[%s4716 + $0x8] sm:$0xff] %vm3481, %v4712
      %4719 = vst.msk [vmem:[%s4716 + $0x10] sm:$0xff] %vm3481, %v4713
      %4720 = vst.msk [vmem:[%s4716 + $0x18] sm:$0xff] %vm3481, %v4714
      %4721 = vst.msk [vmem:[%s4716 + $0x20] sm:$0x7] %vm3489, %v4715
      %s4722 = sld [smem:[#allocation3 + $0x1c]]
      %s4723 = smul.f32 %s4574, %s4722
      %s4724 = sld [smem:[#allocation3 + $0x1d]]
      %s4725 = smul.f32 %s4592, %s4724
      %s4726 = sadd.f32 %s4723, %s4725
      %s4727 = smul.f32 %s4726, 0.16666667
      %s4728 = sadd.f32 %s4727, 0.5
      %s4729 = smax.f32 %s4728, 0.0
      %s4730 = smin.f32 %s4729, 1.0
      %v4731 = vstv %s4730
      %v4732 = vadd.f32 %v4438, %v4731
      %v4733 = vadd.f32 %v4439, %v4731
      %v4734 = vadd.f32 %v4440, %v4731
      %v4735 = vadd.f32 %v4441, %v4731
      %v4736 = vadd.f32 %v4442, %v4731
      %v4737 = vmul.f32 %v4326, %v4732
      %v4738 = vmul.f32 %v4332, %v4733
      %v4739 = vmul.f32 %v4338, %v4734
      %v4740 = vmul.f32 %v4344, %v4735
      %v4741 = vmul.f32 %v4350, %v4736
      %s4742 = scalar_lea.vmem %s258, 200
      %4743 = vst.msk [vmem:[%s4742] sm:$0xff] %vm3481, %v4737
      %4744 = vst.msk [vmem:[%s4742 + $0x8] sm:$0xff] %vm3481, %v4738
      %4745 = vst.msk [vmem:[%s4742 + $0x10] sm:$0xff] %vm3481, %v4739
      %4746 = vst.msk [vmem:[%s4742 + $0x18] sm:$0xff] %vm3481, %v4740
      %4747 = vst.msk [vmem:[%s4742 + $0x20] sm:$0x7] %vm3489, %v4741
      %p4748 = scmp.lt.s32.totalorder %s24, 1
      %s4749 = scalar_select %p4748, %s24, 1
      %s4750 = smul.addr %s4749, 30
      %s4751 = smul.addr %s4750, 8
      %s4752 = scalar_lea.vmem %s7, %s4751
      // Predicated region
      $region45: #{dilated_upsample_down_forward.1} parent=43 // pred_check
        %p4753 = pneg %p173
      $region46: #{dilated_upsample_down_forward.1} parent=43 // pred_check_branch
        %4755 = sbr.rel (%p4753) target = $region48
      $region47: #{dilated_upsample_down_forward.1} parent=43 // pred_region
        _
      $region48: #{dilated_upsample_down_forward.1} parent=43 // pred_fallthru
        _
    $region44: #{dilated_upsample_down_forward.1} parent=5 // pred_fallthru
      _
    %p4756 = scmp.le.s32.totalorder 2, %s19
    // Predicated region
    $region49: #{dilated_upsample_down_forward.1} parent=5 // pred_check
      %p4757 = pneg %p4756
    $region50: #{dilated_upsample_down_forward.1} parent=5 // pred_check_branch
      %4759 = sbr.rel (%p4757) target = $region52
    $region51: #{dilated_upsample_down_forward.1} parent=5 // pred_region
      %s4760 = ssub.s32 %s19, 2
      // Predicated region
      $region53: #{dilated_upsample_down_forward.1} parent=51 // pred_check
        %p4761 = pneg %p179
      $region54: #{dilated_upsample_down_forward.1} parent=51 // pred_check_branch
        %4763 = sbr.rel (%p4761) target = $region56
      $region55: #{dilated_upsample_down_forward.1} parent=51 // pred_region
        %p4764 = scmp.lt.s32.totalorder %s25, 1
        %s4765 = scalar_select %p4764, %s25, 1
        %s4766 = smul.addr %s4765, 30
        %s4767 = smul.addr %s4766, 8
        %s4768 = scalar_lea.vmem %s7, %s4767
      $region56: #{dilated_upsample_down_forward.1} parent=51 // pred_fallthru
        _
    $region52: #{dilated_upsample_down_forward.1} parent=5 // pred_fallthru
      _
  $region6: #{dilated_upsample_down_forward.1} parent=0 // loop_footer
    %s23 = sadd.s32 1, %s19
  $region7: #{dilated_upsample_down_forward.1} parent=0 // loop_footer_branch
    %18 = sbr.rel target = $region3
  $region8: #{dilated_upsample_down_forward.1} parent=0 // loop_exit
    _

</llo_original>
